<compile_context>
chip_gen: v7x
topology: tpu7x:2x2x1
jax: 0.10.0
libtpu: 0.0.40
codegen_flags: <defaults>
</compile_context>

<pallas_src>
import functools
import math

import numpy as np
import jax
import jax.numpy as jnp
from jax.experimental import pallas as pl
from jax.experimental.pallas import tpu as pltpu


def _round_up(x, m):
    return (x + m - 1) // m * m


def _pos_emb_kernel(n_dims, coords_ref, freq_ref, phase_ref, o_ref):
    # coords_ref: (TM, CP)   flattened coordinate rows (f32), CP >= n_dims (pad cols unread)
    # freq_ref  : (8, Dp)    per-column scale/temperature factors (0 in pad rows/cols)
    # phase_ref : (8, Dp)    0 -> sin column, pi/2 -> cos column, 0 -> pad
    # o_ref     : (TM, Dp)
    coords = coords_ref[...]
    freq = freq_ref[...]
    # Unrolled broadcast-FMA over the tiny n_dims contraction (VPU work; an MXU
    # push at K=2-3 would be almost entirely padding).
    ang = phase_ref[0:1, :] + coords[:, 0:1] * freq[0:1, :]
    for d in range(1, n_dims):  # n_dims is a small static constant (2-3)
        ang = ang + coords[:, d:d + 1] * freq[d:d + 1, :]
    # Compute in f32, cast only on the store (no-op for f32 output, halves HBM
    # write traffic for bf16 output).
    o_ref[...] = jnp.sin(ang).astype(o_ref.dtype)


def _make_tables(n_dims, d_model, d_pad, temperature, scale):
    """Fold dim_t, scale, sin/cos interleave and zero padding into constants.

    Tables are (8, d_pad): 8 sublane-full rows (rows >= n_dims are zero and
    never read), d_pad a multiple of 128 so downstream blocks are lane-dense.
    """
    npf = d_model // n_dims // 2 * 2
    scale_val = (1.0 if scale is None else scale) * 2.0 * math.pi
    freq = np.zeros((8, d_pad), np.float32)
    phase = np.zeros((8, d_pad), np.float32)
    for d in range(n_dims):
        for f in range(npf):
            j = d * npf + f
            dim_t = temperature ** (2.0 * (f // 2) / npf)
            freq[d, j] = scale_val / dim_t
            phase[:, j] = 0.0 if (f % 2 == 0) else (math.pi / 2.0)
    return jnp.asarray(freq), jnp.asarray(phase)


def position_embedding_forward(coords, *, n_dims, d_model,
                               temperature=10000.0, scale=None,
                               tile_m=1024, out_dtype=jnp.float32):
    assert coords.shape[-1] == n_dims, (
        f"input dimension = {coords.shape} n_dims = {n_dims}")
    lead = coords.shape[:-1]
    m = 1
    for s in lead:
        m *= int(s)
    x = coords.reshape(m, n_dims).astype(jnp.float32)

    # Lane-dense output feature width (multiple of 128); extra columns are zero
    # in the tables so they come out as sin(0)=0 and are sliced off below.
    d_pad = _round_up(d_model, 128)
    freq, phase = _make_tables(n_dims, d_model, d_pad, temperature, scale)

    # Row tiling: align to 8 (16 for bf16 output), cap at ceil(m/2) so the grid
    # has >= 2 parallel steps whenever m > one aligned tile (v7x has 2 TCs).
    row_align = 16 if jnp.dtype(out_dtype) == jnp.dtype(jnp.bfloat16) else 8
    tile_m = _round_up(max(int(tile_m), row_align), row_align)
    half = _round_up(max((m + 1) // 2, row_align), row_align)
    tm = min(tile_m, half)
    m_pad = _round_up(m, tm)

    # Pad coords rows to the tile and lanes to 8 for a clean, aligned DMA
    # (extra columns are never read by the kernel).
    c_pad = max(_round_up(n_dims, 8), 8)
    x = jnp.pad(x, ((0, m_pad - m), (0, c_pad - n_dims)))

    kernel_fn = functools.partial(_pos_emb_kernel, n_dims)

    out_bytes = jnp.dtype(out_dtype).itemsize
    cost = pl.CostEstimate(
        flops=2 * n_dims * m * d_model,
        transcendentals=m * d_model,
        bytes_accessed=4 * m * n_dims + 2 * 4 * 8 * d_pad + out_bytes * m * d_model,
    )

    out = pl.pallas_call(
        kernel_fn,
        out_shape=jax.ShapeDtypeStruct((m_pad, d_pad), out_dtype),
        grid=(m_pad // tm,),
        in_specs=[
            pl.BlockSpec((tm, c_pad), lambda i: (i, 0)),    # coords rows
            pl.BlockSpec((8, d_pad), lambda i: (0, 0)),     # freq table
            pl.BlockSpec((8, d_pad), lambda i: (0, 0)),     # phase table
        ],
        out_specs=pl.BlockSpec((tm, d_pad), lambda i: (i, 0)),
        compiler_params=pltpu.CompilerParams(
            dimension_semantics=("parallel",)),
        cost_estimate=cost,
    )(x, freq, phase)

    return out[:m, :d_model].reshape(*lead, d_model)


def position_embedding_reference(coords, *, n_dims, d_model,
                                 temperature=10000.0, scale=None):
    """Pure-JAX mirror of the PyTorch module."""
    npf = d_model // n_dims // 2 * 2
    pad = d_model - npf * n_dims
    scale_val = (1.0 if scale is None else scale) * 2.0 * math.pi
    dim_t = jnp.arange(npf, dtype=jnp.float32)
    exponent = 2.0 * jnp.floor(dim_t / 2.0) / npf
    dim_t = temperature ** exponent
    c = coords.astype(jnp.float32) * scale_val
    pos_divided = c[..., None] / dim_t                     # (*, n_dims, npf)
    pos_sin = jnp.sin(pos_divided[..., 0::2])
    pos_cos = jnp.cos(pos_divided[..., 1::2])
    pos_emb = jnp.stack([pos_sin, pos_cos], axis=-1)
    pos_emb = pos_emb.reshape(*coords.shape[:-1], -1)
    pad_widths = [(0, 0)] * (coords.ndim - 1) + [(0, pad)]
    return jnp.pad(pos_emb, pad_widths)


if __name__ == "__main__":
    key = jax.random.PRNGKey(0)

    # Case 1: 3-D point coordinates, d_model already a multiple of 128.
    # batch=2, 16x16 points, n_dims=3, d_model=128 -> num_pos_feats=42,
    # 2 intrinsically zero-padded channels, 512 rows -> 2 parallel 256-row tiles.
    n_dims, d_model = 3, 128
    B, H, W = 2, 16, 16
    coords = jax.random.uniform(key, (B, H, W, n_dims), jnp.float32)

    out = position_embedding_forward(coords, n_dims=n_dims, d_model=d_model)
    out = jax.block_until_ready(out)
    ref = position_embedding_reference(coords, n_dims=n_dims, d_model=d_model)
    assert out.shape == (B, H, W, d_model)
    max_err = float(jnp.max(jnp.abs(out - ref)))
    assert max_err < 1e-4, f"case1 max abs diff {max_err}"

    # Case 2: non-128-multiple d_model exercises the lane-dense output padding
    # (Dp=128, 28 extra zero columns sliced off) plus 4 intrinsic pad channels.
    n_dims2, d_model2 = 3, 100
    coords2 = jax.random.uniform(jax.random.PRNGKey(1), (2, 8, 8, n_dims2),
                                 jnp.float32)
    out2 = position_embedding_forward(coords2, n_dims=n_dims2, d_model=d_model2)
    out2 = jax.block_until_ready(out2)
    ref2 = position_embedding_reference(coords2, n_dims=n_dims2, d_model=d_model2)
    assert out2.shape == (2, 8, 8, d_model2)
    max_err2 = float(jnp.max(jnp.abs(out2 - ref2)))
    assert max_err2 < 1e-4, f"case2 max abs diff {max_err2}"

    print("KERNEL_OK")
</pallas_src>

<mosaic_0001>
module attributes {stable_mosaic.version = 11 : i64} {
  func.func @_pos_emb_kernel(%arg0: i32, %arg1: memref<256x8xf32, #tpu.memory_space<vmem>>, %arg2: memref<8x128xf32, #tpu.memory_space<vmem>>, %arg3: memref<8x128xf32, #tpu.memory_space<vmem>>, %arg4: memref<256x128xf32, #tpu.memory_space<vmem>>) attributes {dimension_semantics = [#tpu.dimension_semantics<parallel>], iteration_bounds = array<i64: 2>, scalar_prefetch = 0 : i64, scratch_operands = 0 : i64, tpu.core_type = #tpu.core_type<tc>, window_params = [{transform_indices = @transform_0, window_bounds = array<i64: 256, 8>}, {pipeline_mode = #tpu.pipeline_mode<synchronous>, transform_indices = @transform_1, window_bounds = array<i64: 8, 128>}, {pipeline_mode = #tpu.pipeline_mode<synchronous>, transform_indices = @transform_2, window_bounds = array<i64: 8, 128>}, {transform_indices = @transform_3, window_bounds = array<i64: 256, 128>}]} {
    %c0 = arith.constant 0 : index
    %c0_0 = arith.constant 0 : index
    %0 = vector.load %arg1[%c0, %c0_0] : memref<256x8xf32, #tpu.memory_space<vmem>>, vector<256x8xf32>
    %c0_1 = arith.constant 0 : index
    %c0_2 = arith.constant 0 : index
    %1 = vector.load %arg2[%c0_1, %c0_2] : memref<8x128xf32, #tpu.memory_space<vmem>>, vector<8x128xf32>
    %c0_3 = arith.constant 0 : index
    %c0_4 = arith.constant 0 : index
    %2 = vector.load %arg3[%c0_3, %c0_4] : memref<8x128xf32, #tpu.memory_space<vmem>>, vector<1x128xf32>
    %3 = vector.extract_strided_slice %0 {offsets = [0, 0], sizes = [256, 1], strides = [1, 1]} : vector<256x8xf32> to vector<256x1xf32>
    %4 = vector.extract_strided_slice %1 {offsets = [0, 0], sizes = [1, 128], strides = [1, 1]} : vector<8x128xf32> to vector<1x128xf32>
    %5 = vector.broadcast %3 : vector<256x1xf32> to vector<256x128xf32>
    %6 = vector.broadcast %4 : vector<1x128xf32> to vector<256x128xf32>
    %7 = arith.mulf %5, %6 : vector<256x128xf32>
    %8 = vector.broadcast %2 : vector<1x128xf32> to vector<256x128xf32>
    %9 = arith.addf %8, %7 : vector<256x128xf32>
    %10 = vector.extract_strided_slice %0 {offsets = [0, 1], sizes = [256, 1], strides = [1, 1]} : vector<256x8xf32> to vector<256x1xf32>
    %11 = vector.extract_strided_slice %1 {offsets = [1, 0], sizes = [1, 128], strides = [1, 1]} : vector<8x128xf32> to vector<1x128xf32>
    %12 = vector.broadcast %10 : vector<256x1xf32> to vector<256x128xf32>
    %13 = vector.broadcast %11 : vector<1x128xf32> to vector<256x128xf32>
    %14 = arith.mulf %12, %13 : vector<256x128xf32>
    %15 = arith.addf %9, %14 : vector<256x128xf32>
    %16 = vector.extract_strided_slice %0 {offsets = [0, 2], sizes = [256, 1], strides = [1, 1]} : vector<256x8xf32> to vector<256x1xf32>
    %17 = vector.extract_strided_slice %1 {offsets = [2, 0], sizes = [1, 128], strides = [1, 1]} : vector<8x128xf32> to vector<1x128xf32>
    %18 = vector.broadcast %16 : vector<256x1xf32> to vector<256x128xf32>
    %19 = vector.broadcast %17 : vector<1x128xf32> to vector<256x128xf32>
    %20 = arith.mulf %18, %19 : vector<256x128xf32>
    %21 = arith.addf %15, %20 : vector<256x128xf32>
    %22 = math.sin %21 : vector<256x128xf32>
    %c0_5 = arith.constant 0 : index
    %c0_6 = arith.constant 0 : index
    %23 = vector.load %arg4[%c0_5, %c0_6] : memref<256x128xf32, #tpu.memory_space<vmem>>, vector<256x128xf32>
    tpu.vector_store %arg4[%c0_5, %c0_6], %22 {strides = array<i32>} : memref<256x128xf32, #tpu.memory_space<vmem>>, vector<256x128xf32>,
    return
  }
  func.func @transform_0(%arg0: i32) -> (i32, i32) {
    %c0_i32 = arith.constant 0 : i32
    %c0_i32_0 = arith.constant 0 : i32
    return %arg0, %c0_i32 : i32, i32
  }
  func.func @transform_1(%arg0: i32) -> (i32, i32) {
    %c0_i32 = arith.constant 0 : i32
    %c0_i32_0 = arith.constant 0 : i32
    %c0_i32_1 = arith.constant 0 : i32
    return %c0_i32, %c0_i32_0 : i32, i32
  }
  func.func @transform_2(%arg0: i32) -> (i32, i32) {
    %c0_i32 = arith.constant 0 : i32
    %c0_i32_0 = arith.constant 0 : i32
    %c0_i32_1 = arith.constant 0 : i32
    return %c0_i32, %c0_i32_0 : i32, i32
  }
  func.func @transform_3(%arg0: i32) -> (i32, i32) {
    %c0_i32 = arith.constant 0 : i32
    %c0_i32_0 = arith.constant 0 : i32
    return %arg0, %c0_i32 : i32, i32
  }
}

</mosaic_0001>

<llo_original>
// kernel: tpu_custom_call.1
$region0: #{tpu_custom_call.1}
  #allocation0 [shape = 'u32[]', space=smem, size = 0x4, offset = 0x4, fixed_abs, tag = 'smem constant byte address 0x4 - core index']
  #allocation1 [shape = 'u32[144,128]{1,0:T(1,128)}', space=vmem, size = 0x12000, scoped, tag = 'internal scratch']
  %s0 = inlined_call_operand.vmem [shape: f32[512,8], index: 0, kind: input, shape index: {}]
  %s1 = inlined_call_operand.vmem [shape: f32[8,128], index: 1, kind: input, shape index: {}]
  %s2 = inlined_call_operand.vmem [shape: f32[8,128], index: 2, kind: input, shape index: {}]
  %s3 = inlined_call_operand.hbm [shape: f32[512,128], index: 3, kind: output, shape index: {}]
  %s4 = sld [smem:[#allocation0]]
  $region45: #{tpu_custom_call.1} parent=0
    _
  %s6 = ssub.s32 1, %s4
  %s7 = scalar_select 0, %s6, %s4
  $region1: #{tpu_custom_call.1} parent=0
    #allocation2 [shape = 'u8[262144]{0}', space=vmem, size = 0x40000, scoped, tag = 'output window, operand 0']
    #allocation3 [shape = 's32[2]{0}', space=sflag, size = 0x8, scoped, tag = 'scoped memory for tpu_custom_call.1']
    %8 = vsyncpa [#allocation3], 0
    %s9 = scalar_lea.sflag [#allocation3], 1
    %10 = vsyncpa %s9, 0
    loop: start=0, step=1, limit=4
    $region2: #{tpu_custom_call.1} parent=1 // loop_pre_header
      _
    $region3: #{tpu_custom_call.1} parent=1 // loop_header
      %s12 = sphi 0, %s16
      %p13 = scmp.ge.s32.totalorder %s12, 4
      %s22 = sphi 0, %s24
      %s25 = sphi 0, %s22
      %s26 = sphi 0, %s25
      %s42 = sphi 0, %s26
      %s46 = sphi 0, %s46
      %s48 = sphi 0, %s46
      %s49 = sphi 0, %s48
      %s63 = sphi 0, %s49
      %s67 = sphi 0, %s67
      %s69 = sphi 0, %s67
      %s70 = sphi 0, %s69
      %s84 = sphi 0, %s70
      %s90 = sphi 0, %s92
      %s93 = sphi 0, %s90
      %s94 = sphi 0, %s93
      %s110 = sphi 0, %s94
    $region4: #{tpu_custom_call.1} parent=1 // loop_header_branch
      %15 = sbr.rel (%p13) target = $region8
    $region5: #{tpu_custom_call.1} parent=1 // loop_body
      %s17 = ssub.s32 %s12, 1
      %s18 = ssub.s32 %s12, 2
      %s19 = sadd.s32 %s12, 1
      %s20 = ssub.s32 %s12, %s19
      %p21 = scmp.eq.s32.totalorder %s20, 0
      %s23 = sadd.s32 %s22, 1
      %s24 = scalar_select %p21, %s22, %s23
      %p27 = pneg %p21
      %p28 = scmp.eq.s32.totalorder %s12, 1
      %p29 = por %p27, %p28
      %p30 = scmp.ne.s32.totalorder %s22, %s25
      %p31 = scmp.eq.s32.totalorder %s12, 0
      %p32 = por %p30, %p31
      %p33 = scmp.ne.s32.totalorder %s22, %s25
      %p34 = scmp.eq.s32.totalorder %s17, 1
      %p35 = por %p33, %p34
      %p36 = scmp.ne.s32.totalorder %s25, %s26
      %p37 = scmp.eq.s32.totalorder %s17, 0
      %p38 = por %p36, %p37
      %p39 = scmp.ne.s32.totalorder %s25, %s26
      %p40 = scmp.eq.s32.totalorder %s18, 1
      %p41 = por %p39, %p40
      %p43 = scmp.ne.s32.totalorder %s26, %s42
      %p44 = scmp.eq.s32.totalorder %s18, 0
      %p45 = por %p43, %p44
      %s47 = sadd.s32 %s46, 1
      %p50 = scmp.eq.s32.totalorder %s12, 1
      %p51 = scmp.ne.s32.totalorder %s46, %s48
      %p52 = scmp.eq.s32.totalorder %s12, 0
      %p53 = por %p51, %p52
      %p54 = scmp.ne.s32.totalorder %s46, %s48
      %p55 = scmp.eq.s32.totalorder %s17, 1
      %p56 = por %p54, %p55
      %p57 = scmp.ne.s32.totalorder %s48, %s49
      %p58 = scmp.eq.s32.totalorder %s17, 0
      %p59 = por %p57, %p58
      %p60 = scmp.ne.s32.totalorder %s48, %s49
      %p61 = scmp.eq.s32.totalorder %s18, 1
      %p62 = por %p60, %p61
      %p64 = scmp.ne.s32.totalorder %s49, %s63
      %p65 = scmp.eq.s32.totalorder %s18, 0
      %p66 = por %p64, %p65
      %s68 = sadd.s32 %s67, 1
      %p71 = scmp.eq.s32.totalorder %s12, 1
      %p72 = scmp.ne.s32.totalorder %s67, %s69
      %p73 = scmp.eq.s32.totalorder %s12, 0
      %p74 = por %p72, %p73
      %p75 = scmp.ne.s32.totalorder %s67, %s69
      %p76 = scmp.eq.s32.totalorder %s17, 1
      %p77 = por %p75, %p76
      %p78 = scmp.ne.s32.totalorder %s69, %s70
      %p79 = scmp.eq.s32.totalorder %s17, 0
      %p80 = por %p78, %p79
      %p81 = scmp.ne.s32.totalorder %s69, %s70
      %p82 = scmp.eq.s32.totalorder %s18, 1
      %p83 = por %p81, %p82
      %p85 = scmp.ne.s32.totalorder %s70, %s84
      %p86 = scmp.eq.s32.totalorder %s18, 0
      %p87 = por %p85, %p86
      %s88 = ssub.s32 %s12, %s19
      %p89 = scmp.eq.s32.totalorder %s88, 0
      %s91 = sadd.s32 %s90, 1
      %s92 = scalar_select %p89, %s90, %s91
      %p95 = pneg %p89
      %p96 = scmp.eq.s32.totalorder %s12, 1
      %p97 = por %p95, %p96
      %p98 = scmp.ne.s32.totalorder %s90, %s93
      %p99 = scmp.eq.s32.totalorder %s12, 0
      %p100 = por %p98, %p99
      %p101 = scmp.ne.s32.totalorder %s90, %s93
      %p102 = scmp.eq.s32.totalorder %s17, 1
      %p103 = por %p101, %p102
      %p104 = scmp.ne.s32.totalorder %s93, %s94
      %p105 = scmp.eq.s32.totalorder %s17, 0
      %p106 = por %p104, %p105
      %p107 = scmp.ne.s32.totalorder %s93, %s94
      %p108 = scmp.eq.s32.totalorder %s18, 1
      %p109 = por %p107, %p108
      %p111 = scmp.ne.s32.totalorder %s94, %s110
      %p112 = scmp.eq.s32.totalorder %s18, 0
      %p113 = por %p111, %p112
      %p114 = scmp.le.s32.totalorder 1, %s12
      %p115 = scmp.lt.s32.totalorder %s12, 3
      %p116 = pnand %p114, %p115
      %p117 = pneg %p116
      // Predicated region
      $region9: #{tpu_custom_call.1} parent=5 // pred_check
        _
      $region10: #{tpu_custom_call.1} parent=5 // pred_check_branch
        %119 = sbr.rel (%p116) target = $region12
      $region11: #{tpu_custom_call.1} parent=5 // pred_region
        %s120 = ssub.s32 %s12, 1
        // Predicated region
        $region13: #{tpu_custom_call.1} parent=11 // pred_check
          %p121 = pneg %p59
        $region14: #{tpu_custom_call.1} parent=11 // pred_check_branch
          %123 = sbr.rel (%p121) target = $region16
        $region15: #{tpu_custom_call.1} parent=11 // pred_region
          _
        $region16: #{tpu_custom_call.1} parent=11 // pred_fallthru
          _
        // Predicated region
        $region17: #{tpu_custom_call.1} parent=11 // pred_check
          %p124 = pneg %p80
        $region18: #{tpu_custom_call.1} parent=11 // pred_check_branch
          %126 = sbr.rel (%p124) target = $region20
        $region19: #{tpu_custom_call.1} parent=11 // pred_region
          _
        $region20: #{tpu_custom_call.1} parent=11 // pred_fallthru
          _
      $region12: #{tpu_custom_call.1} parent=5 // pred_fallthru
        _
      %p127 = scmp.lt.s32.totalorder %s12, 2
      // Predicated region
      $region21: #{tpu_custom_call.1} parent=5 // pred_check
        %p128 = pneg %p127
      $region22: #{tpu_custom_call.1} parent=5 // pred_check_branch
        %130 = sbr.rel (%p128) target = $region24
      $region23: #{tpu_custom_call.1} parent=5 // pred_region
        // Predicated region
        $region25: #{tpu_custom_call.1} parent=23 // pred_check
          %p131 = pneg %p32
        $region26: #{tpu_custom_call.1} parent=23 // pred_check_branch
          %133 = sbr.rel (%p131) target = $region28
        $region27: #{tpu_custom_call.1} parent=23 // pred_region
          %s134 = smul.u32 32, %s12
          %p135 = scmp.lt.s32.totalorder %s134, 63
          %s136 = scalar_select %p135, %s134, 63
          %s137 = smul.addr %s136, 8
          %s138 = scalar_lea.vmem %s0, %s137
          %s139 = smul.u32 32, %s12
        $region28: #{tpu_custom_call.1} parent=23 // pred_fallthru
          _
      $region24: #{tpu_custom_call.1} parent=5 // pred_fallthru
        _
      %p140 = scmp.le.s32.totalorder 1, %s12
      %p141 = scmp.lt.s32.totalorder %s12, 3
      %p142 = pnand %p140, %p141
      %p143 = pneg %p142
      // Predicated region
      $region29: #{tpu_custom_call.1} parent=5 // pred_check
        _
      $region30: #{tpu_custom_call.1} parent=5 // pred_check_branch
        %145 = sbr.rel (%p142) target = $region32
      $region31: #{tpu_custom_call.1} parent=5 // pred_region
        %s146 = ssub.s32 %s12, 1
        %s147 = smul.u32 32, %s17
        %p148 = scmp.lt.s32.totalorder %s147, 63
        %s149 = scalar_select %p148, %s147, 63
        %s150 = smul.addr %s149, 8
        %s151 = scalar_lea.vmem %s0, %s150
        %p152 = pneg %p38
        %p153 = pneg %p35
        %p154 = pneg %p59
        %p155 = pneg %p56
        %p156 = pneg %p80
        %p157 = pneg %p77
        %p158 = pneg %p106
        %p159 = pneg %p103
        %s160 = sand.u32 %s93, 1
        %s161 = scalar_lea.sflag [#allocation3], %s160
        %s162 = sand.u32 %s93, 1
        %s163 = smul.addr %s162, 256
        %s164 = scalar_lea.vmem [#allocation2], %s163
        %s165 = smul.u32 32, %s17
        %p166 = scmp.lt.s32.totalorder %s165, 63
        %s167 = scalar_select %p166, %s165, 63
        %s168 = smul.addr %s167, 8
        %s169 = scalar_lea.vmem %s0, %s168
        %s170 = smul.u32 32, %s17
        %s171 = smul.u32 32, %s17
        %v172 = vld [vmem:[%s169] sm:$0xff]
        %v173 = vld [vmem:[%s169 + $0x8] sm:$0xff]
        %v174 = vld [vmem:[%s169 + $0x10] sm:$0xff]
        %v175 = vld [vmem:[%s169 + $0x18] sm:$0xff]
        %v176 = vld [vmem:[%s169 + $0x20] sm:$0xff]
        %v177 = vld [vmem:[%s169 + $0x28] sm:$0xff]
        %v178 = vld [vmem:[%s169 + $0x30] sm:$0xff]
        %v179 = vld [vmem:[%s169 + $0x38] sm:$0xff]
        %v180 = vld [vmem:[%s169 + $0x40] sm:$0xff]
        %v181 = vld [vmem:[%s169 + $0x48] sm:$0xff]
        %v182 = vld [vmem:[%s169 + $0x50] sm:$0xff]
        %v183 = vld [vmem:[%s169 + $0x58] sm:$0xff]
        %v184 = vld [vmem:[%s169 + $0x60] sm:$0xff]
        %v185 = vld [vmem:[%s169 + $0x68] sm:$0xff]
        %v186 = vld [vmem:[%s169 + $0x70] sm:$0xff]
        %v187 = vld [vmem:[%s169 + $0x78] sm:$0xff]
        %v188 = vld [vmem:[%s169 + $0x80] sm:$0xff]
        %v189 = vld [vmem:[%s169 + $0x88] sm:$0xff]
        %v190 = vld [vmem:[%s169 + $0x90] sm:$0xff]
        %v191 = vld [vmem:[%s169 + $0x98] sm:$0xff]
        %v192 = vld [vmem:[%s169 + $0xa0] sm:$0xff]
        %v193 = vld [vmem:[%s169 + $0xa8] sm:$0xff]
        %v194 = vld [vmem:[%s169 + $0xb0] sm:$0xff]
        %v195 = vld [vmem:[%s169 + $0xb8] sm:$0xff]
        %v196 = vld [vmem:[%s169 + $0xc0] sm:$0xff]
        %v197 = vld [vmem:[%s169 + $0xc8] sm:$0xff]
        %v198 = vld [vmem:[%s169 + $0xd0] sm:$0xff]
        %v199 = vld [vmem:[%s169 + $0xd8] sm:$0xff]
        %v200 = vld [vmem:[%s169 + $0xe0] sm:$0xff]
        %v201 = vld [vmem:[%s169 + $0xe8] sm:$0xff]
        %v202 = vld [vmem:[%s169 + $0xf0] sm:$0xff]
        %v203 = vld [vmem:[%s169 + $0xf8] sm:$0xff]
        %v204 = vld [vmem:[%s1] sm:$0xff]
        %v205 = vld [vmem:[%s2] sm:$0x1]
        %207 = vset.pattern.permute.xlu0 0
        %208 = vperm.xlu0 %207, %v172
        %v209 = vpop.permute.xlu0 %208
        %212 = vset.pattern.permute.xlu0 0
        %213 = vperm.xlu0 %212, %v173
        %v214 = vpop.permute.xlu0 %213
        %217 = vset.pattern.permute.xlu0 0
        %218 = vperm.xlu0 %217, %v174
        %v219 = vpop.permute.xlu0 %218
        %222 = vset.pattern.permute.xlu0 0
        %223 = vperm.xlu0 %222, %v175
        %v224 = vpop.permute.xlu0 %223
        %227 = vset.pattern.permute.xlu0 0
        %228 = vperm.xlu0 %227, %v176
        %v229 = vpop.permute.xlu0 %228
        %232 = vset.pattern.permute.xlu0 0
        %233 = vperm.xlu0 %232, %v177
        %v234 = vpop.permute.xlu0 %233
        %237 = vset.pattern.permute.xlu0 0
        %238 = vperm.xlu0 %237, %v178
        %v239 = vpop.permute.xlu0 %238
        %242 = vset.pattern.permute.xlu0 0
        %243 = vperm.xlu0 %242, %v179
        %v244 = vpop.permute.xlu0 %243
        %247 = vset.pattern.permute.xlu0 0
        %248 = vperm.xlu0 %247, %v180
        %v249 = vpop.permute.xlu0 %248
        %252 = vset.pattern.permute.xlu0 0
        %253 = vperm.xlu0 %252, %v181
        %v254 = vpop.permute.xlu0 %253
        %257 = vset.pattern.permute.xlu0 0
        %258 = vperm.xlu0 %257, %v182
        %v259 = vpop.permute.xlu0 %258
        %262 = vset.pattern.permute.xlu0 0
        %263 = vperm.xlu0 %262, %v183
        %v264 = vpop.permute.xlu0 %263
        %267 = vset.pattern.permute.xlu0 0
        %268 = vperm.xlu0 %267, %v184
        %v269 = vpop.permute.xlu0 %268
        %272 = vset.pattern.permute.xlu0 0
        %273 = vperm.xlu0 %272, %v185
        %v274 = vpop.permute.xlu0 %273
        %277 = vset.pattern.permute.xlu0 0
        %278 = vperm.xlu0 %277, %v186
        %v279 = vpop.permute.xlu0 %278
        %282 = vset.pattern.permute.xlu0 0
        %283 = vperm.xlu0 %282, %v187
        %v284 = vpop.permute.xlu0 %283
        %287 = vset.pattern.permute.xlu0 0
        %288 = vperm.xlu0 %287, %v188
        %v289 = vpop.permute.xlu0 %288
        %292 = vset.pattern.permute.xlu0 0
        %293 = vperm.xlu0 %292, %v189
        %v294 = vpop.permute.xlu0 %293
        %297 = vset.pattern.permute.xlu0 0
        %298 = vperm.xlu0 %297, %v190
        %v299 = vpop.permute.xlu0 %298
        %302 = vset.pattern.permute.xlu0 0
        %303 = vperm.xlu0 %302, %v191
        %v304 = vpop.permute.xlu0 %303
        %307 = vset.pattern.permute.xlu0 0
        %308 = vperm.xlu0 %307, %v192
        %v309 = vpop.permute.xlu0 %308
        %312 = vset.pattern.permute.xlu0 0
        %313 = vperm.xlu0 %312, %v193
        %v314 = vpop.permute.xlu0 %313
        %317 = vset.pattern.permute.xlu0 0
        %318 = vperm.xlu0 %317, %v194
        %v319 = vpop.permute.xlu0 %318
        %322 = vset.pattern.permute.xlu0 0
        %323 = vperm.xlu0 %322, %v195
        %v324 = vpop.permute.xlu0 %323
        %327 = vset.pattern.permute.xlu0 0
        %328 = vperm.xlu0 %327, %v196
        %v329 = vpop.permute.xlu0 %328
        %332 = vset.pattern.permute.xlu0 0
        %333 = vperm.xlu0 %332, %v197
        %v334 = vpop.permute.xlu0 %333
        %337 = vset.pattern.permute.xlu0 0
        %338 = vperm.xlu0 %337, %v198
        %v339 = vpop.permute.xlu0 %338
        %342 = vset.pattern.permute.xlu0 0
        %343 = vperm.xlu0 %342, %v199
        %v344 = vpop.permute.xlu0 %343
        %347 = vset.pattern.permute.xlu0 0
        %348 = vperm.xlu0 %347, %v200
        %v349 = vpop.permute.xlu0 %348
        %352 = vset.pattern.permute.xlu0 0
        %353 = vperm.xlu0 %352, %v201
        %v354 = vpop.permute.xlu0 %353
        %357 = vset.pattern.permute.xlu0 0
        %358 = vperm.xlu0 %357, %v202
        %v359 = vpop.permute.xlu0 %358
        %362 = vset.pattern.permute.xlu0 0
        %363 = vperm.xlu0 %362, %v203
        %v364 = vpop.permute.xlu0 %363
        %v366 = vlaneseq
        %v367 = vshrl.u32 %v366, 7
        %v368 = vsub.s32 0, %v367
        %v369 = vrot.slane %v204, %v368
        %v370 = vmul.f32 %v209, %v369
        %v371 = vmul.f32 %v214, %v369
        %v372 = vmul.f32 %v219, %v369
        %v373 = vmul.f32 %v224, %v369
        %v374 = vmul.f32 %v229, %v369
        %v375 = vmul.f32 %v234, %v369
        %v376 = vmul.f32 %v239, %v369
        %v377 = vmul.f32 %v244, %v369
        %v378 = vmul.f32 %v249, %v369
        %v379 = vmul.f32 %v254, %v369
        %v380 = vmul.f32 %v259, %v369
        %v381 = vmul.f32 %v264, %v369
        %v382 = vmul.f32 %v269, %v369
        %v383 = vmul.f32 %v274, %v369
        %v384 = vmul.f32 %v279, %v369
        %v385 = vmul.f32 %v284, %v369
        %v386 = vmul.f32 %v289, %v369
        %v387 = vmul.f32 %v294, %v369
        %v388 = vmul.f32 %v299, %v369
        %v389 = vmul.f32 %v304, %v369
        %v390 = vmul.f32 %v309, %v369
        %v391 = vmul.f32 %v314, %v369
        %v392 = vmul.f32 %v319, %v369
        %v393 = vmul.f32 %v324, %v369
        %v394 = vmul.f32 %v329, %v369
        %v395 = vmul.f32 %v334, %v369
        %v396 = vmul.f32 %v339, %v369
        %v397 = vmul.f32 %v344, %v369
        %v398 = vmul.f32 %v349, %v369
        %v399 = vmul.f32 %v354, %v369
        %v400 = vmul.f32 %v359, %v369
        %v401 = vmul.f32 %v364, %v369
        %v402 = vlaneseq
        %v403 = vshrl.u32 %v402, 7
        %v404 = vsub.s32 0, %v403
        %v405 = vrot.slane %v205, %v404
        %v406 = vadd.f32 %v405, %v370
        %v407 = vadd.f32 %v405, %v371
        %v408 = vadd.f32 %v405, %v372
        %v409 = vadd.f32 %v405, %v373
        %v410 = vadd.f32 %v405, %v374
        %v411 = vadd.f32 %v405, %v375
        %v412 = vadd.f32 %v405, %v376
        %v413 = vadd.f32 %v405, %v377
        %v414 = vadd.f32 %v405, %v378
        %v415 = vadd.f32 %v405, %v379
        %v416 = vadd.f32 %v405, %v380
        %v417 = vadd.f32 %v405, %v381
        %v418 = vadd.f32 %v405, %v382
        %v419 = vadd.f32 %v405, %v383
        %v420 = vadd.f32 %v405, %v384
        %v421 = vadd.f32 %v405, %v385
        %v422 = vadd.f32 %v405, %v386
        %v423 = vadd.f32 %v405, %v387
        %v424 = vadd.f32 %v405, %v388
        %v425 = vadd.f32 %v405, %v389
        %v426 = vadd.f32 %v405, %v390
        %v427 = vadd.f32 %v405, %v391
        %v428 = vadd.f32 %v405, %v392
        %v429 = vadd.f32 %v405, %v393
        %v430 = vadd.f32 %v405, %v394
        %v431 = vadd.f32 %v405, %v395
        %v432 = vadd.f32 %v405, %v396
        %v433 = vadd.f32 %v405, %v397
        %v434 = vadd.f32 %v405, %v398
        %v435 = vadd.f32 %v405, %v399
        %v436 = vadd.f32 %v405, %v400
        %v437 = vadd.f32 %v405, %v401
        %438 = vset.pattern.permute.xlu0 1
        %439 = vperm.xlu0 %438, %v172
        %v440 = vpop.permute.xlu0 %439
        %442 = vset.pattern.permute.xlu0 1
        %443 = vperm.xlu0 %442, %v173
        %v444 = vpop.permute.xlu0 %443
        %446 = vset.pattern.permute.xlu0 1
        %447 = vperm.xlu0 %446, %v174
        %v448 = vpop.permute.xlu0 %447
        %450 = vset.pattern.permute.xlu0 1
        %451 = vperm.xlu0 %450, %v175
        %v452 = vpop.permute.xlu0 %451
        %454 = vset.pattern.permute.xlu0 1
        %455 = vperm.xlu0 %454, %v176
        %v456 = vpop.permute.xlu0 %455
        %458 = vset.pattern.permute.xlu0 1
        %459 = vperm.xlu0 %458, %v177
        %v460 = vpop.permute.xlu0 %459
        %462 = vset.pattern.permute.xlu0 1
        %463 = vperm.xlu0 %462, %v178
        %v464 = vpop.permute.xlu0 %463
        %466 = vset.pattern.permute.xlu0 1
        %467 = vperm.xlu0 %466, %v179
        %v468 = vpop.permute.xlu0 %467
        %470 = vset.pattern.permute.xlu0 1
        %471 = vperm.xlu0 %470, %v180
        %v472 = vpop.permute.xlu0 %471
        %474 = vset.pattern.permute.xlu0 1
        %475 = vperm.xlu0 %474, %v181
        %v476 = vpop.permute.xlu0 %475
        %478 = vset.pattern.permute.xlu0 1
        %479 = vperm.xlu0 %478, %v182
        %v480 = vpop.permute.xlu0 %479
        %482 = vset.pattern.permute.xlu0 1
        %483 = vperm.xlu0 %482, %v183
        %v484 = vpop.permute.xlu0 %483
        %486 = vset.pattern.permute.xlu0 1
        %487 = vperm.xlu0 %486, %v184
        %v488 = vpop.permute.xlu0 %487
        %490 = vset.pattern.permute.xlu0 1
        %491 = vperm.xlu0 %490, %v185
        %v492 = vpop.permute.xlu0 %491
        %494 = vset.pattern.permute.xlu0 1
        %495 = vperm.xlu0 %494, %v186
        %v496 = vpop.permute.xlu0 %495
        %498 = vset.pattern.permute.xlu0 1
        %499 = vperm.xlu0 %498, %v187
        %v500 = vpop.permute.xlu0 %499
        %502 = vset.pattern.permute.xlu0 1
        %503 = vperm.xlu0 %502, %v188
        %v504 = vpop.permute.xlu0 %503
        %506 = vset.pattern.permute.xlu0 1
        %507 = vperm.xlu0 %506, %v189
        %v508 = vpop.permute.xlu0 %507
        %510 = vset.pattern.permute.xlu0 1
        %511 = vperm.xlu0 %510, %v190
        %v512 = vpop.permute.xlu0 %511
        %514 = vset.pattern.permute.xlu0 1
        %515 = vperm.xlu0 %514, %v191
        %v516 = vpop.permute.xlu0 %515
        %518 = vset.pattern.permute.xlu0 1
        %519 = vperm.xlu0 %518, %v192
        %v520 = vpop.permute.xlu0 %519
        %522 = vset.pattern.permute.xlu0 1
        %523 = vperm.xlu0 %522, %v193
        %v524 = vpop.permute.xlu0 %523
        %526 = vset.pattern.permute.xlu0 1
        %527 = vperm.xlu0 %526, %v194
        %v528 = vpop.permute.xlu0 %527
        %530 = vset.pattern.permute.xlu0 1
        %531 = vperm.xlu0 %530, %v195
        %v532 = vpop.permute.xlu0 %531
        %534 = vset.pattern.permute.xlu0 1
        %535 = vperm.xlu0 %534, %v196
        %v536 = vpop.permute.xlu0 %535
        %538 = vset.pattern.permute.xlu0 1
        %539 = vperm.xlu0 %538, %v197
        %v540 = vpop.permute.xlu0 %539
        %542 = vset.pattern.permute.xlu0 1
        %543 = vperm.xlu0 %542, %v198
        %v544 = vpop.permute.xlu0 %543
        %546 = vset.pattern.permute.xlu0 1
        %547 = vperm.xlu0 %546, %v199
        %v548 = vpop.permute.xlu0 %547
        %550 = vset.pattern.permute.xlu0 1
        %551 = vperm.xlu0 %550, %v200
        %v552 = vpop.permute.xlu0 %551
        %554 = vset.pattern.permute.xlu0 1
        %555 = vperm.xlu0 %554, %v201
        %v556 = vpop.permute.xlu0 %555
        %558 = vset.pattern.permute.xlu0 1
        %559 = vperm.xlu0 %558, %v202
        %v560 = vpop.permute.xlu0 %559
        %562 = vset.pattern.permute.xlu0 1
        %563 = vperm.xlu0 %562, %v203
        %v564 = vpop.permute.xlu0 %563
        %v566 = vlaneseq
        %v567 = vshrl.u32 %v566, 7
        %v568 = vsub.s32 1, %v567
        %v569 = vrot.slane %v204, %v568
        %v570 = vmul.f32 %v440, %v569
        %v571 = vmul.f32 %v444, %v569
        %v572 = vmul.f32 %v448, %v569
        %v573 = vmul.f32 %v452, %v569
        %v574 = vmul.f32 %v456, %v569
        %v575 = vmul.f32 %v460, %v569
        %v576 = vmul.f32 %v464, %v569
        %v577 = vmul.f32 %v468, %v569
        %v578 = vmul.f32 %v472, %v569
        %v579 = vmul.f32 %v476, %v569
        %v580 = vmul.f32 %v480, %v569
        %v581 = vmul.f32 %v484, %v569
        %v582 = vmul.f32 %v488, %v569
        %v583 = vmul.f32 %v492, %v569
        %v584 = vmul.f32 %v496, %v569
        %v585 = vmul.f32 %v500, %v569
        %v586 = vmul.f32 %v504, %v569
        %v587 = vmul.f32 %v508, %v569
        %v588 = vmul.f32 %v512, %v569
        %v589 = vmul.f32 %v516, %v569
        %v590 = vmul.f32 %v520, %v569
        %v591 = vmul.f32 %v524, %v569
        %v592 = vmul.f32 %v528, %v569
        %v593 = vmul.f32 %v532, %v569
        %v594 = vmul.f32 %v536, %v569
        %v595 = vmul.f32 %v540, %v569
        %v596 = vmul.f32 %v544, %v569
        %v597 = vmul.f32 %v548, %v569
        %v598 = vmul.f32 %v552, %v569
        %v599 = vmul.f32 %v556, %v569
        %v600 = vmul.f32 %v560, %v569
        %v601 = vmul.f32 %v564, %v569
        %v602 = vadd.f32 %v406, %v570
        %v603 = vadd.f32 %v407, %v571
        %v604 = vadd.f32 %v408, %v572
        %v605 = vadd.f32 %v409, %v573
        %v606 = vadd.f32 %v410, %v574
        %v607 = vadd.f32 %v411, %v575
        %v608 = vadd.f32 %v412, %v576
        %v609 = vadd.f32 %v413, %v577
        %v610 = vadd.f32 %v414, %v578
        %v611 = vadd.f32 %v415, %v579
        %v612 = vadd.f32 %v416, %v580
        %v613 = vadd.f32 %v417, %v581
        %v614 = vadd.f32 %v418, %v582
        %v615 = vadd.f32 %v419, %v583
        %v616 = vadd.f32 %v420, %v584
        %v617 = vadd.f32 %v421, %v585
        %v618 = vadd.f32 %v422, %v586
        %v619 = vadd.f32 %v423, %v587
        %v620 = vadd.f32 %v424, %v588
        %v621 = vadd.f32 %v425, %v589
        %v622 = vadd.f32 %v426, %v590
        %v623 = vadd.f32 %v427, %v591
        %v624 = vadd.f32 %v428, %v592
        %v625 = vadd.f32 %v429, %v593
        %v626 = vadd.f32 %v430, %v594
        %v627 = vadd.f32 %v431, %v595
        %v628 = vadd.f32 %v432, %v596
        %v629 = vadd.f32 %v433, %v597
        %v630 = vadd.f32 %v434, %v598
        %v631 = vadd.f32 %v435, %v599
        %v632 = vadd.f32 %v436, %v600
        %v633 = vadd.f32 %v437, %v601
        %634 = vset.pattern.permute.xlu0 2
        %635 = vperm.xlu0 %634, %v172
        %v636 = vpop.permute.xlu0 %635
        %638 = vset.pattern.permute.xlu0 2
        %639 = vperm.xlu0 %638, %v173
        %v640 = vpop.permute.xlu0 %639
        %642 = vset.pattern.permute.xlu0 2
        %643 = vperm.xlu0 %642, %v174
        %v644 = vpop.permute.xlu0 %643
        %646 = vset.pattern.permute.xlu0 2
        %647 = vperm.xlu0 %646, %v175
        %v648 = vpop.permute.xlu0 %647
        %650 = vset.pattern.permute.xlu0 2
        %651 = vperm.xlu0 %650, %v176
        %v652 = vpop.permute.xlu0 %651
        %654 = vset.pattern.permute.xlu0 2
        %655 = vperm.xlu0 %654, %v177
        %v656 = vpop.permute.xlu0 %655
        %658 = vset.pattern.permute.xlu0 2
        %659 = vperm.xlu0 %658, %v178
        %v660 = vpop.permute.xlu0 %659
        %662 = vset.pattern.permute.xlu0 2
        %663 = vperm.xlu0 %662, %v179
        %v664 = vpop.permute.xlu0 %663
        %666 = vset.pattern.permute.xlu0 2
        %667 = vperm.xlu0 %666, %v180
        %v668 = vpop.permute.xlu0 %667
        %670 = vset.pattern.permute.xlu0 2
        %671 = vperm.xlu0 %670, %v181
        %v672 = vpop.permute.xlu0 %671
        %674 = vset.pattern.permute.xlu0 2
        %675 = vperm.xlu0 %674, %v182
        %v676 = vpop.permute.xlu0 %675
        %678 = vset.pattern.permute.xlu0 2
        %679 = vperm.xlu0 %678, %v183
        %v680 = vpop.permute.xlu0 %679
        %682 = vset.pattern.permute.xlu0 2
        %683 = vperm.xlu0 %682, %v184
        %v684 = vpop.permute.xlu0 %683
        %686 = vset.pattern.permute.xlu0 2
        %687 = vperm.xlu0 %686, %v185
        %v688 = vpop.permute.xlu0 %687
        %690 = vset.pattern.permute.xlu0 2
        %691 = vperm.xlu0 %690, %v186
        %v692 = vpop.permute.xlu0 %691
        %694 = vset.pattern.permute.xlu0 2
        %695 = vperm.xlu0 %694, %v187
        %v696 = vpop.permute.xlu0 %695
        %698 = vset.pattern.permute.xlu0 2
        %699 = vperm.xlu0 %698, %v188
        %v700 = vpop.permute.xlu0 %699
        %702 = vset.pattern.permute.xlu0 2
        %703 = vperm.xlu0 %702, %v189
        %v704 = vpop.permute.xlu0 %703
        %706 = vset.pattern.permute.xlu0 2
        %707 = vperm.xlu0 %706, %v190
        %v708 = vpop.permute.xlu0 %707
        %710 = vset.pattern.permute.xlu0 2
        %711 = vperm.xlu0 %710, %v191
        %v712 = vpop.permute.xlu0 %711
        %714 = vset.pattern.permute.xlu0 2
        %715 = vperm.xlu0 %714, %v192
        %v716 = vpop.permute.xlu0 %715
        %718 = vset.pattern.permute.xlu0 2
        %719 = vperm.xlu0 %718, %v193
        %v720 = vpop.permute.xlu0 %719
        %722 = vset.pattern.permute.xlu0 2
        %723 = vperm.xlu0 %722, %v194
        %v724 = vpop.permute.xlu0 %723
        %726 = vset.pattern.permute.xlu0 2
        %727 = vperm.xlu0 %726, %v195
        %v728 = vpop.permute.xlu0 %727
        %730 = vset.pattern.permute.xlu0 2
        %731 = vperm.xlu0 %730, %v196
        %v732 = vpop.permute.xlu0 %731
        %734 = vset.pattern.permute.xlu0 2
        %735 = vperm.xlu0 %734, %v197
        %v736 = vpop.permute.xlu0 %735
        %738 = vset.pattern.permute.xlu0 2
        %739 = vperm.xlu0 %738, %v198
        %v740 = vpop.permute.xlu0 %739
        %742 = vset.pattern.permute.xlu0 2
        %743 = vperm.xlu0 %742, %v199
        %v744 = vpop.permute.xlu0 %743
        %746 = vset.pattern.permute.xlu0 2
        %747 = vperm.xlu0 %746, %v200
        %v748 = vpop.permute.xlu0 %747
        %750 = vset.pattern.permute.xlu0 2
        %751 = vperm.xlu0 %750, %v201
        %v752 = vpop.permute.xlu0 %751
        %754 = vset.pattern.permute.xlu0 2
        %755 = vperm.xlu0 %754, %v202
        %v756 = vpop.permute.xlu0 %755
        %758 = vset.pattern.permute.xlu0 2
        %759 = vperm.xlu0 %758, %v203
        %v760 = vpop.permute.xlu0 %759
        %v762 = vlaneseq
        %v763 = vshrl.u32 %v762, 7
        %v764 = vsub.s32 2, %v763
        %v765 = vrot.slane %v204, %v764
        %v766 = vmul.f32 %v636, %v765
        %v767 = vmul.f32 %v640, %v765
        %v768 = vmul.f32 %v644, %v765
        %v769 = vmul.f32 %v648, %v765
        %v770 = vmul.f32 %v652, %v765
        %v771 = vmul.f32 %v656, %v765
        %v772 = vmul.f32 %v660, %v765
        %v773 = vmul.f32 %v664, %v765
        %v774 = vmul.f32 %v668, %v765
        %v775 = vmul.f32 %v672, %v765
        %v776 = vmul.f32 %v676, %v765
        %v777 = vmul.f32 %v680, %v765
        %v778 = vmul.f32 %v684, %v765
        %v779 = vmul.f32 %v688, %v765
        %v780 = vmul.f32 %v692, %v765
        %v781 = vmul.f32 %v696, %v765
        %v782 = vmul.f32 %v700, %v765
        %v783 = vmul.f32 %v704, %v765
        %v784 = vmul.f32 %v708, %v765
        %v785 = vmul.f32 %v712, %v765
        %v786 = vmul.f32 %v716, %v765
        %v787 = vmul.f32 %v720, %v765
        %v788 = vmul.f32 %v724, %v765
        %v789 = vmul.f32 %v728, %v765
        %v790 = vmul.f32 %v732, %v765
        %v791 = vmul.f32 %v736, %v765
        %v792 = vmul.f32 %v740, %v765
        %v793 = vmul.f32 %v744, %v765
        %v794 = vmul.f32 %v748, %v765
        %v795 = vmul.f32 %v752, %v765
        %v796 = vmul.f32 %v756, %v765
        %v797 = vmul.f32 %v760, %v765
        %v798 = vadd.f32 %v602, %v766
        %v799 = vadd.f32 %v603, %v767
        %v800 = vadd.f32 %v604, %v768
        %v801 = vadd.f32 %v605, %v769
        %v802 = vadd.f32 %v606, %v770
        %v803 = vadd.f32 %v607, %v771
        %v804 = vadd.f32 %v608, %v772
        %v805 = vadd.f32 %v609, %v773
        %v806 = vadd.f32 %v610, %v774
        %v807 = vadd.f32 %v611, %v775
        %v808 = vadd.f32 %v612, %v776
        %v809 = vadd.f32 %v613, %v777
        %v810 = vadd.f32 %v614, %v778
        %v811 = vadd.f32 %v615, %v779
        %v812 = vadd.f32 %v616, %v780
        %v813 = vadd.f32 %v617, %v781
        %v814 = vadd.f32 %v618, %v782
        %v815 = vadd.f32 %v619, %v783
        %v816 = vadd.f32 %v620, %v784
        %v817 = vadd.f32 %v621, %v785
        %v818 = vadd.f32 %v622, %v786
        %v819 = vadd.f32 %v623, %v787
        %v820 = vadd.f32 %v624, %v788
        %v821 = vadd.f32 %v625, %v789
        %v822 = vadd.f32 %v626, %v790
        %v823 = vadd.f32 %v627, %v791
        %v824 = vadd.f32 %v628, %v792
        %v825 = vadd.f32 %v629, %v793
        %v826 = vadd.f32 %v630, %v794
        %v827 = vadd.f32 %v631, %v795
        %v828 = vadd.f32 %v632, %v796
        %v829 = vadd.f32 %v633, %v797
        %v830 = vand.u32 2147483647, %v798
        %vm831 = vcmp.le.f32.partialorder %v830, 0.7853982
        %vm832 = vcmp.lt.s32.totalorder %v798, 0
        %v833 = vand.u32 %v798, 2139095040
        %v834 = vshrl.u32 %v833, 23
        %v835 = vsub.s32 %v834, 127
        %v836 = vand.u32 2147483647, %v798
        %v837 = vand.u32 %v836, 8388607
        %v838 = vor.u32 %v837, 8388608
        %v839 = vsub.s32 0, %v838
        %v840 = vadd.s32 %v835, 1
        %vm841 = vcmp.gt.s32.totalorder %v840, 0
        %v842 = vsel %vm841, %v840, 0
        %v843 = vshrl.u32 %v842, 5
        %v844 = vand.u32 %v842, 31
        %v845 = vsub.s32 32, %v844
        %v846 = vshrl.u32 683565275, %v845
        %v847 = vshll.u32 683565275, %v844
        %v848 = vshrl.u32 2475754826, %v845
        %v849 = vor.u32 %v847, %v848
        %v850 = vshll.u32 2475754826, %v844
        %v851 = vshrl.u32 2131351028, %v845
        %v852 = vor.u32 %v850, %v851
        %v853 = vshll.u32 2131351028, %v844
        %v854 = vshrl.u32 2102212464, %v845
        %v855 = vor.u32 %v853, %v854
        %v856 = vshll.u32 2102212464, %v844
        %v857 = vshrl.u32 920167782, %v845
        %v858 = vor.u32 %v856, %v857
        %v859 = vshll.u32 920167782, %v844
        %v860 = vshrl.u32 1326507024, %v845
        %v861 = vor.u32 %v859, %v860
        %vm862 = vcmp.lt.s32.totalorder %v843, 1
        %vm863 = vcmp.lt.s32.totalorder %v843, 2
        %vm864 = vcmp.lt.s32.totalorder %v843, 3
        %vm865 = vcmp.lt.s32.totalorder %v843, 4
        %v866 = vsel %vm862, %v846, %v849
        %v867 = vsel %vm865, %v855, 2102212464
        %v868 = vsel %vm864, %v852, %v867
        %v869 = vsel %vm863, %v866, %v868
        %v870 = vsel %vm862, %v849, %v852
        %v871 = vsel %vm865, %v858, 920167782
        %v872 = vsel %vm864, %v855, %v871
        %v873 = vsel %vm863, %v870, %v872
        %v874 = vsel %vm862, %v852, %v855
        %v875 = vsel %vm865, %v861, 1326507024
        %v876 = vsel %vm864, %v858, %v875
        %v877 = vsel %vm863, %v874, %v876
        %v878 = vshll.u32 %v838, 8
        %v879 = vmul.u32.u64.compose %v878, %v877
        %v880 = vextract.low.u32 %v879
        %v881 = vextract.high.u32 %v879
        %v882 = vmul.u32.u64.compose %v878, %v873
        %v883 = vextract.low.u32 %v882
        %v884 = vextract.high.u32 %v882
        %v885 = vmul.u32 %v878, %v869
        %v886 = vadd.s32 %v881, %v883
        %vm887 = vc.u32 %v881, %v883
        %v888 = vadd.s32 %v884, 1
        %v889 = vsel %vm887, %v888, %v884
        %v890 = vadd.s32 %v885, %v889
        %v891 = vadd.s32 %v890, 536870912
        %v892 = vshrl.u32 %v891, 30
        %v893 = vshll.u32 %v892, 30
        %v894 = vsub.s32 %v890, %v893
        %vm895 = vcmp.lt.s32.totalorder %v894, 0
        %v896 = vsub.s32 0, %v894
        %v897 = vsel %vm895, %v896, %v894
        %v898 = vclz %v897
        %v899 = vsub.s32 %v898, 2
        %vm900 = vcmp.gt.s32.totalorder 0, %v899
        %v901 = vsel %vm900, 0, %v899
        %v902 = vsub.s32 32, %v901
        %v903 = vshll.u32 %v894, %v901
        %v904 = vshrl.u32 %v886, %v902
        %v905 = vor.u32 %v903, %v904
        %v906 = vsub.s32 4294967266, %v901
        %v907 = vadd.s32 %v906, 127
        %v908 = vshll.u32 %v907, 23
        %v909 = vor.u32 4788187, %v908
        %v910 = vand.u32 2147483647, %v909
        %v912 = vcvt.s32.f32 %v905
        %v913 = vmul.f32 %v912, %v910
        %v914 = vxor.u32 %v913, 2147483648
        %v915 = vsel %vm832, %v914, %v913
        %v916 = vsub.s32 4, %v892
        %v917 = vsel %vm832, %v916, %v892
        %v918 = vsel %vm831, %v798, %v915
        %v919 = vsel %vm831, 0, %v917
        %v920 = vcosq.f32.pop %v918
        %v921 = vsinq.f32.pop %v918
        %vm922 = vweird.f32 %v798
        %v923 = vadd.s32 %v919, 3
        %v924 = vand.u32 %v923, 3
        %vm925 = vcmp.lt.s32.totalorder %v924, 2
        %vm926 = vcmp.eq.s32.totalorder %v924, 0
        %v927 = vxor.u32 %v921, 2147483648
        %v928 = vsel %vm926, %v920, %v927
        %vm929 = vcmp.eq.s32.totalorder %v924, 2
        %v930 = vxor.u32 %v920, 2147483648
        %v931 = vsel %vm929, %v930, %v921
        %v932 = vsel %vm925, %v928, %v931
        %v933 = vsel %vm922, nan, %v932
        %v934 = vand.u32 2147483647, %v799
        %vm935 = vcmp.le.f32.partialorder %v934, 0.7853982
        %vm936 = vcmp.lt.s32.totalorder %v799, 0
        %v937 = vand.u32 %v799, 2139095040
        %v938 = vshrl.u32 %v937, 23
        %v939 = vsub.s32 %v938, 127
        %v940 = vand.u32 2147483647, %v799
        %v941 = vand.u32 %v940, 8388607
        %v942 = vor.u32 %v941, 8388608
        %v943 = vsub.s32 0, %v942
        %v944 = vadd.s32 %v939, 1
        %vm945 = vcmp.gt.s32.totalorder %v944, 0
        %v946 = vsel %vm945, %v944, 0
        %v947 = vshrl.u32 %v946, 5
        %v948 = vand.u32 %v946, 31
        %v949 = vsub.s32 32, %v948
        %v950 = vshrl.u32 683565275, %v949
        %v951 = vshll.u32 683565275, %v948
        %v952 = vshrl.u32 2475754826, %v949
        %v953 = vor.u32 %v951, %v952
        %v954 = vshll.u32 2475754826, %v948
        %v955 = vshrl.u32 2131351028, %v949
        %v956 = vor.u32 %v954, %v955
        %v957 = vshll.u32 2131351028, %v948
        %v958 = vshrl.u32 2102212464, %v949
        %v959 = vor.u32 %v957, %v958
        %v960 = vshll.u32 2102212464, %v948
        %v961 = vshrl.u32 920167782, %v949
        %v962 = vor.u32 %v960, %v961
        %v963 = vshll.u32 920167782, %v948
        %v964 = vshrl.u32 1326507024, %v949
        %v965 = vor.u32 %v963, %v964
        %vm966 = vcmp.lt.s32.totalorder %v947, 1
        %vm967 = vcmp.lt.s32.totalorder %v947, 2
        %vm968 = vcmp.lt.s32.totalorder %v947, 3
        %vm969 = vcmp.lt.s32.totalorder %v947, 4
        %v970 = vsel %vm966, %v950, %v953
        %v971 = vsel %vm969, %v959, 2102212464
        %v972 = vsel %vm968, %v956, %v971
        %v973 = vsel %vm967, %v970, %v972
        %v974 = vsel %vm966, %v953, %v956
        %v975 = vsel %vm969, %v962, 920167782
        %v976 = vsel %vm968, %v959, %v975
        %v977 = vsel %vm967, %v974, %v976
        %v978 = vsel %vm966, %v956, %v959
        %v979 = vsel %vm969, %v965, 1326507024
        %v980 = vsel %vm968, %v962, %v979
        %v981 = vsel %vm967, %v978, %v980
        %v982 = vshll.u32 %v942, 8
        %v983 = vmul.u32.u64.compose %v982, %v981
        %v984 = vextract.low.u32 %v983
        %v985 = vextract.high.u32 %v983
        %v986 = vmul.u32.u64.compose %v982, %v977
        %v987 = vextract.low.u32 %v986
        %v988 = vextract.high.u32 %v986
        %v989 = vmul.u32 %v982, %v973
        %v990 = vadd.s32 %v985, %v987
        %vm991 = vc.u32 %v985, %v987
        %v992 = vadd.s32 %v988, 1
        %v993 = vsel %vm991, %v992, %v988
        %v994 = vadd.s32 %v989, %v993
        %v995 = vadd.s32 %v994, 536870912
        %v996 = vshrl.u32 %v995, 30
        %v997 = vshll.u32 %v996, 30
        %v998 = vsub.s32 %v994, %v997
        %vm999 = vcmp.lt.s32.totalorder %v998, 0
        %v1000 = vsub.s32 0, %v998
        %v1001 = vsel %vm999, %v1000, %v998
        %v1002 = vclz %v1001
        %v1003 = vsub.s32 %v1002, 2
        %vm1004 = vcmp.gt.s32.totalorder 0, %v1003
        %v1005 = vsel %vm1004, 0, %v1003
        %v1006 = vsub.s32 32, %v1005
        %v1007 = vshll.u32 %v998, %v1005
        %v1008 = vshrl.u32 %v990, %v1006
        %v1009 = vor.u32 %v1007, %v1008
        %v1010 = vsub.s32 4294967266, %v1005
        %v1011 = vadd.s32 %v1010, 127
        %v1012 = vshll.u32 %v1011, 23
        %v1013 = vor.u32 4788187, %v1012
        %v1014 = vand.u32 2147483647, %v1013
        %v1016 = vcvt.s32.f32 %v1009
        %v1017 = vmul.f32 %v1016, %v1014
        %v1018 = vxor.u32 %v1017, 2147483648
        %v1019 = vsel %vm936, %v1018, %v1017
        %v1020 = vsub.s32 4, %v996
        %v1021 = vsel %vm936, %v1020, %v996
        %v1022 = vsel %vm935, %v799, %v1019
        %v1023 = vsel %vm935, 0, %v1021
        %v1024 = vcosq.f32.pop %v1022
        %v1025 = vsinq.f32.pop %v1022
        %vm1026 = vweird.f32 %v799
        %v1027 = vadd.s32 %v1023, 3
        %v1028 = vand.u32 %v1027, 3
        %vm1029 = vcmp.lt.s32.totalorder %v1028, 2
        %vm1030 = vcmp.eq.s32.totalorder %v1028, 0
        %v1031 = vxor.u32 %v1025, 2147483648
        %v1032 = vsel %vm1030, %v1024, %v1031
        %vm1033 = vcmp.eq.s32.totalorder %v1028, 2
        %v1034 = vxor.u32 %v1024, 2147483648
        %v1035 = vsel %vm1033, %v1034, %v1025
        %v1036 = vsel %vm1029, %v1032, %v1035
        %v1037 = vsel %vm1026, nan, %v1036
        %v1038 = vand.u32 2147483647, %v800
        %vm1039 = vcmp.le.f32.partialorder %v1038, 0.7853982
        %vm1040 = vcmp.lt.s32.totalorder %v800, 0
        %v1041 = vand.u32 %v800, 2139095040
        %v1042 = vshrl.u32 %v1041, 23
        %v1043 = vsub.s32 %v1042, 127
        %v1044 = vand.u32 2147483647, %v800
        %v1045 = vand.u32 %v1044, 8388607
        %v1046 = vor.u32 %v1045, 8388608
        %v1047 = vsub.s32 0, %v1046
        %v1048 = vadd.s32 %v1043, 1
        %vm1049 = vcmp.gt.s32.totalorder %v1048, 0
        %v1050 = vsel %vm1049, %v1048, 0
        %v1051 = vshrl.u32 %v1050, 5
        %v1052 = vand.u32 %v1050, 31
        %v1053 = vsub.s32 32, %v1052
        %v1054 = vshrl.u32 683565275, %v1053
        %v1055 = vshll.u32 683565275, %v1052
        %v1056 = vshrl.u32 2475754826, %v1053
        %v1057 = vor.u32 %v1055, %v1056
        %v1058 = vshll.u32 2475754826, %v1052
        %v1059 = vshrl.u32 2131351028, %v1053
        %v1060 = vor.u32 %v1058, %v1059
        %v1061 = vshll.u32 2131351028, %v1052
        %v1062 = vshrl.u32 2102212464, %v1053
        %v1063 = vor.u32 %v1061, %v1062
        %v1064 = vshll.u32 2102212464, %v1052
        %v1065 = vshrl.u32 920167782, %v1053
        %v1066 = vor.u32 %v1064, %v1065
        %v1067 = vshll.u32 920167782, %v1052
        %v1068 = vshrl.u32 1326507024, %v1053
        %v1069 = vor.u32 %v1067, %v1068
        %vm1070 = vcmp.lt.s32.totalorder %v1051, 1
        %vm1071 = vcmp.lt.s32.totalorder %v1051, 2
        %vm1072 = vcmp.lt.s32.totalorder %v1051, 3
        %vm1073 = vcmp.lt.s32.totalorder %v1051, 4
        %v1074 = vsel %vm1070, %v1054, %v1057
        %v1075 = vsel %vm1073, %v1063, 2102212464
        %v1076 = vsel %vm1072, %v1060, %v1075
        %v1077 = vsel %vm1071, %v1074, %v1076
        %v1078 = vsel %vm1070, %v1057, %v1060
        %v1079 = vsel %vm1073, %v1066, 920167782
        %v1080 = vsel %vm1072, %v1063, %v1079
        %v1081 = vsel %vm1071, %v1078, %v1080
        %v1082 = vsel %vm1070, %v1060, %v1063
        %v1083 = vsel %vm1073, %v1069, 1326507024
        %v1084 = vsel %vm1072, %v1066, %v1083
        %v1085 = vsel %vm1071, %v1082, %v1084
        %v1086 = vshll.u32 %v1046, 8
        %v1087 = vmul.u32.u64.compose %v1086, %v1085
        %v1088 = vextract.low.u32 %v1087
        %v1089 = vextract.high.u32 %v1087
        %v1090 = vmul.u32.u64.compose %v1086, %v1081
        %v1091 = vextract.low.u32 %v1090
        %v1092 = vextract.high.u32 %v1090
        %v1093 = vmul.u32 %v1086, %v1077
        %v1094 = vadd.s32 %v1089, %v1091
        %vm1095 = vc.u32 %v1089, %v1091
        %v1096 = vadd.s32 %v1092, 1
        %v1097 = vsel %vm1095, %v1096, %v1092
        %v1098 = vadd.s32 %v1093, %v1097
        %v1099 = vadd.s32 %v1098, 536870912
        %v1100 = vshrl.u32 %v1099, 30
        %v1101 = vshll.u32 %v1100, 30
        %v1102 = vsub.s32 %v1098, %v1101
        %vm1103 = vcmp.lt.s32.totalorder %v1102, 0
        %v1104 = vsub.s32 0, %v1102
        %v1105 = vsel %vm1103, %v1104, %v1102
        %v1106 = vclz %v1105
        %v1107 = vsub.s32 %v1106, 2
        %vm1108 = vcmp.gt.s32.totalorder 0, %v1107
        %v1109 = vsel %vm1108, 0, %v1107
        %v1110 = vsub.s32 32, %v1109
        %v1111 = vshll.u32 %v1102, %v1109
        %v1112 = vshrl.u32 %v1094, %v1110
        %v1113 = vor.u32 %v1111, %v1112
        %v1114 = vsub.s32 4294967266, %v1109
        %v1115 = vadd.s32 %v1114, 127
        %v1116 = vshll.u32 %v1115, 23
        %v1117 = vor.u32 4788187, %v1116
        %v1118 = vand.u32 2147483647, %v1117
        %v1120 = vcvt.s32.f32 %v1113
        %v1121 = vmul.f32 %v1120, %v1118
        %v1122 = vxor.u32 %v1121, 2147483648
        %v1123 = vsel %vm1040, %v1122, %v1121
        %v1124 = vsub.s32 4, %v1100
        %v1125 = vsel %vm1040, %v1124, %v1100
        %v1126 = vsel %vm1039, %v800, %v1123
        %v1127 = vsel %vm1039, 0, %v1125
        %v1128 = vcosq.f32.pop %v1126
        %v1129 = vsinq.f32.pop %v1126
        %vm1130 = vweird.f32 %v800
        %v1131 = vadd.s32 %v1127, 3
        %v1132 = vand.u32 %v1131, 3
        %vm1133 = vcmp.lt.s32.totalorder %v1132, 2
        %vm1134 = vcmp.eq.s32.totalorder %v1132, 0
        %v1135 = vxor.u32 %v1129, 2147483648
        %v1136 = vsel %vm1134, %v1128, %v1135
        %vm1137 = vcmp.eq.s32.totalorder %v1132, 2
        %v1138 = vxor.u32 %v1128, 2147483648
        %v1139 = vsel %vm1137, %v1138, %v1129
        %v1140 = vsel %vm1133, %v1136, %v1139
        %v1141 = vsel %vm1130, nan, %v1140
        %v1142 = vand.u32 2147483647, %v801
        %vm1143 = vcmp.le.f32.partialorder %v1142, 0.7853982
        %vm1144 = vcmp.lt.s32.totalorder %v801, 0
        %v1145 = vand.u32 %v801, 2139095040
        %v1146 = vshrl.u32 %v1145, 23
        %v1147 = vsub.s32 %v1146, 127
        %v1148 = vand.u32 2147483647, %v801
        %v1149 = vand.u32 %v1148, 8388607
        %v1150 = vor.u32 %v1149, 8388608
        %v1151 = vsub.s32 0, %v1150
        %v1152 = vadd.s32 %v1147, 1
        %vm1153 = vcmp.gt.s32.totalorder %v1152, 0
        %v1154 = vsel %vm1153, %v1152, 0
        %v1155 = vshrl.u32 %v1154, 5
        %v1156 = vand.u32 %v1154, 31
        %v1157 = vsub.s32 32, %v1156
        %v1158 = vshrl.u32 683565275, %v1157
        %v1159 = vshll.u32 683565275, %v1156
        %v1160 = vshrl.u32 2475754826, %v1157
        %v1161 = vor.u32 %v1159, %v1160
        %v1162 = vshll.u32 2475754826, %v1156
        %v1163 = vshrl.u32 2131351028, %v1157
        %v1164 = vor.u32 %v1162, %v1163
        %v1165 = vshll.u32 2131351028, %v1156
        %v1166 = vshrl.u32 2102212464, %v1157
        %v1167 = vor.u32 %v1165, %v1166
        %v1168 = vshll.u32 2102212464, %v1156
        %v1169 = vshrl.u32 920167782, %v1157
        %v1170 = vor.u32 %v1168, %v1169
        %v1171 = vshll.u32 920167782, %v1156
        %v1172 = vshrl.u32 1326507024, %v1157
        %v1173 = vor.u32 %v1171, %v1172
        %vm1174 = vcmp.lt.s32.totalorder %v1155, 1
        %vm1175 = vcmp.lt.s32.totalorder %v1155, 2
        %vm1176 = vcmp.lt.s32.totalorder %v1155, 3
        %vm1177 = vcmp.lt.s32.totalorder %v1155, 4
        %v1178 = vsel %vm1174, %v1158, %v1161
        %v1179 = vsel %vm1177, %v1167, 2102212464
        %v1180 = vsel %vm1176, %v1164, %v1179
        %v1181 = vsel %vm1175, %v1178, %v1180
        %v1182 = vsel %vm1174, %v1161, %v1164
        %v1183 = vsel %vm1177, %v1170, 920167782
        %v1184 = vsel %vm1176, %v1167, %v1183
        %v1185 = vsel %vm1175, %v1182, %v1184
        %v1186 = vsel %vm1174, %v1164, %v1167
        %v1187 = vsel %vm1177, %v1173, 1326507024
        %v1188 = vsel %vm1176, %v1170, %v1187
        %v1189 = vsel %vm1175, %v1186, %v1188
        %v1190 = vshll.u32 %v1150, 8
        %v1191 = vmul.u32.u64.compose %v1190, %v1189
        %v1192 = vextract.low.u32 %v1191
        %v1193 = vextract.high.u32 %v1191
        %v1194 = vmul.u32.u64.compose %v1190, %v1185
        %v1195 = vextract.low.u32 %v1194
        %v1196 = vextract.high.u32 %v1194
        %v1197 = vmul.u32 %v1190, %v1181
        %v1198 = vadd.s32 %v1193, %v1195
        %vm1199 = vc.u32 %v1193, %v1195
        %v1200 = vadd.s32 %v1196, 1
        %v1201 = vsel %vm1199, %v1200, %v1196
        %v1202 = vadd.s32 %v1197, %v1201
        %v1203 = vadd.s32 %v1202, 536870912
        %v1204 = vshrl.u32 %v1203, 30
        %v1205 = vshll.u32 %v1204, 30
        %v1206 = vsub.s32 %v1202, %v1205
        %vm1207 = vcmp.lt.s32.totalorder %v1206, 0
        %v1208 = vsub.s32 0, %v1206
        %v1209 = vsel %vm1207, %v1208, %v1206
        %v1210 = vclz %v1209
        %v1211 = vsub.s32 %v1210, 2
        %vm1212 = vcmp.gt.s32.totalorder 0, %v1211
        %v1213 = vsel %vm1212, 0, %v1211
        %v1214 = vsub.s32 32, %v1213
        %v1215 = vshll.u32 %v1206, %v1213
        %v1216 = vshrl.u32 %v1198, %v1214
        %v1217 = vor.u32 %v1215, %v1216
        %v1218 = vsub.s32 4294967266, %v1213
        %v1219 = vadd.s32 %v1218, 127
        %v1220 = vshll.u32 %v1219, 23
        %v1221 = vor.u32 4788187, %v1220
        %v1222 = vand.u32 2147483647, %v1221
        %v1224 = vcvt.s32.f32 %v1217
        %v1225 = vmul.f32 %v1224, %v1222
        %v1226 = vxor.u32 %v1225, 2147483648
        %v1227 = vsel %vm1144, %v1226, %v1225
        %v1228 = vsub.s32 4, %v1204
        %v1229 = vsel %vm1144, %v1228, %v1204
        %v1230 = vsel %vm1143, %v801, %v1227
        %v1231 = vsel %vm1143, 0, %v1229
        %v1232 = vcosq.f32.pop %v1230
        %v1233 = vsinq.f32.pop %v1230
        %vm1234 = vweird.f32 %v801
        %v1235 = vadd.s32 %v1231, 3
        %v1236 = vand.u32 %v1235, 3
        %vm1237 = vcmp.lt.s32.totalorder %v1236, 2
        %vm1238 = vcmp.eq.s32.totalorder %v1236, 0
        %v1239 = vxor.u32 %v1233, 2147483648
        %v1240 = vsel %vm1238, %v1232, %v1239
        %vm1241 = vcmp.eq.s32.totalorder %v1236, 2
        %v1242 = vxor.u32 %v1232, 2147483648
        %v1243 = vsel %vm1241, %v1242, %v1233
        %v1244 = vsel %vm1237, %v1240, %v1243
        %v1245 = vsel %vm1234, nan, %v1244
        %v1246 = vand.u32 2147483647, %v802
        %vm1247 = vcmp.le.f32.partialorder %v1246, 0.7853982
        %vm1248 = vcmp.lt.s32.totalorder %v802, 0
        %v1249 = vand.u32 %v802, 2139095040
        %v1250 = vshrl.u32 %v1249, 23
        %v1251 = vsub.s32 %v1250, 127
        %v1252 = vand.u32 2147483647, %v802
        %v1253 = vand.u32 %v1252, 8388607
        %v1254 = vor.u32 %v1253, 8388608
        %v1255 = vsub.s32 0, %v1254
        %v1256 = vadd.s32 %v1251, 1
        %vm1257 = vcmp.gt.s32.totalorder %v1256, 0
        %v1258 = vsel %vm1257, %v1256, 0
        %v1259 = vshrl.u32 %v1258, 5
        %v1260 = vand.u32 %v1258, 31
        %v1261 = vsub.s32 32, %v1260
        %v1262 = vshrl.u32 683565275, %v1261
        %v1263 = vshll.u32 683565275, %v1260
        %v1264 = vshrl.u32 2475754826, %v1261
        %v1265 = vor.u32 %v1263, %v1264
        %v1266 = vshll.u32 2475754826, %v1260
        %v1267 = vshrl.u32 2131351028, %v1261
        %v1268 = vor.u32 %v1266, %v1267
        %v1269 = vshll.u32 2131351028, %v1260
        %v1270 = vshrl.u32 2102212464, %v1261
        %v1271 = vor.u32 %v1269, %v1270
        %v1272 = vshll.u32 2102212464, %v1260
        %v1273 = vshrl.u32 920167782, %v1261
        %v1274 = vor.u32 %v1272, %v1273
        %v1275 = vshll.u32 920167782, %v1260
        %v1276 = vshrl.u32 1326507024, %v1261
        %v1277 = vor.u32 %v1275, %v1276
        %vm1278 = vcmp.lt.s32.totalorder %v1259, 1
        %vm1279 = vcmp.lt.s32.totalorder %v1259, 2
        %vm1280 = vcmp.lt.s32.totalorder %v1259, 3
        %vm1281 = vcmp.lt.s32.totalorder %v1259, 4
        %v1282 = vsel %vm1278, %v1262, %v1265
        %v1283 = vsel %vm1281, %v1271, 2102212464
        %v1284 = vsel %vm1280, %v1268, %v1283
        %v1285 = vsel %vm1279, %v1282, %v1284
        %v1286 = vsel %vm1278, %v1265, %v1268
        %v1287 = vsel %vm1281, %v1274, 920167782
        %v1288 = vsel %vm1280, %v1271, %v1287
        %v1289 = vsel %vm1279, %v1286, %v1288
        %v1290 = vsel %vm1278, %v1268, %v1271
        %v1291 = vsel %vm1281, %v1277, 1326507024
        %v1292 = vsel %vm1280, %v1274, %v1291
        %v1293 = vsel %vm1279, %v1290, %v1292
        %v1294 = vshll.u32 %v1254, 8
        %v1295 = vmul.u32.u64.compose %v1294, %v1293
        %v1296 = vextract.low.u32 %v1295
        %v1297 = vextract.high.u32 %v1295
        %v1298 = vmul.u32.u64.compose %v1294, %v1289
        %v1299 = vextract.low.u32 %v1298
        %v1300 = vextract.high.u32 %v1298
        %v1301 = vmul.u32 %v1294, %v1285
        %v1302 = vadd.s32 %v1297, %v1299
        %vm1303 = vc.u32 %v1297, %v1299
        %v1304 = vadd.s32 %v1300, 1
        %v1305 = vsel %vm1303, %v1304, %v1300
        %v1306 = vadd.s32 %v1301, %v1305
        %v1307 = vadd.s32 %v1306, 536870912
        %v1308 = vshrl.u32 %v1307, 30
        %v1309 = vshll.u32 %v1308, 30
        %v1310 = vsub.s32 %v1306, %v1309
        %vm1311 = vcmp.lt.s32.totalorder %v1310, 0
        %v1312 = vsub.s32 0, %v1310
        %v1313 = vsel %vm1311, %v1312, %v1310
        %v1314 = vclz %v1313
        %v1315 = vsub.s32 %v1314, 2
        %vm1316 = vcmp.gt.s32.totalorder 0, %v1315
        %v1317 = vsel %vm1316, 0, %v1315
        %v1318 = vsub.s32 32, %v1317
        %v1319 = vshll.u32 %v1310, %v1317
        %v1320 = vshrl.u32 %v1302, %v1318
        %v1321 = vor.u32 %v1319, %v1320
        %v1322 = vsub.s32 4294967266, %v1317
        %v1323 = vadd.s32 %v1322, 127
        %v1324 = vshll.u32 %v1323, 23
        %v1325 = vor.u32 4788187, %v1324
        %v1326 = vand.u32 2147483647, %v1325
        %v1328 = vcvt.s32.f32 %v1321
        %v1329 = vmul.f32 %v1328, %v1326
        %v1330 = vxor.u32 %v1329, 2147483648
        %v1331 = vsel %vm1248, %v1330, %v1329
        %v1332 = vsub.s32 4, %v1308
        %v1333 = vsel %vm1248, %v1332, %v1308
        %v1334 = vsel %vm1247, %v802, %v1331
        %v1335 = vsel %vm1247, 0, %v1333
        %v1336 = vcosq.f32.pop %v1334
        %v1337 = vsinq.f32.pop %v1334
        %vm1338 = vweird.f32 %v802
        %v1339 = vadd.s32 %v1335, 3
        %v1340 = vand.u32 %v1339, 3
        %vm1341 = vcmp.lt.s32.totalorder %v1340, 2
        %vm1342 = vcmp.eq.s32.totalorder %v1340, 0
        %v1343 = vxor.u32 %v1337, 2147483648
        %v1344 = vsel %vm1342, %v1336, %v1343
        %vm1345 = vcmp.eq.s32.totalorder %v1340, 2
        %v1346 = vxor.u32 %v1336, 2147483648
        %v1347 = vsel %vm1345, %v1346, %v1337
        %v1348 = vsel %vm1341, %v1344, %v1347
        %v1349 = vsel %vm1338, nan, %v1348
        %v1350 = vand.u32 2147483647, %v803
        %vm1351 = vcmp.le.f32.partialorder %v1350, 0.7853982
        %vm1352 = vcmp.lt.s32.totalorder %v803, 0
        %v1353 = vand.u32 %v803, 2139095040
        %v1354 = vshrl.u32 %v1353, 23
        %v1355 = vsub.s32 %v1354, 127
        %v1356 = vand.u32 2147483647, %v803
        %v1357 = vand.u32 %v1356, 8388607
        %v1358 = vor.u32 %v1357, 8388608
        %v1359 = vsub.s32 0, %v1358
        %v1360 = vadd.s32 %v1355, 1
        %vm1361 = vcmp.gt.s32.totalorder %v1360, 0
        %v1362 = vsel %vm1361, %v1360, 0
        %v1363 = vshrl.u32 %v1362, 5
        %v1364 = vand.u32 %v1362, 31
        %v1365 = vsub.s32 32, %v1364
        %v1366 = vshrl.u32 683565275, %v1365
        %v1367 = vshll.u32 683565275, %v1364
        %v1368 = vshrl.u32 2475754826, %v1365
        %v1369 = vor.u32 %v1367, %v1368
        %v1370 = vshll.u32 2475754826, %v1364
        %v1371 = vshrl.u32 2131351028, %v1365
        %v1372 = vor.u32 %v1370, %v1371
        %v1373 = vshll.u32 2131351028, %v1364
        %v1374 = vshrl.u32 2102212464, %v1365
        %v1375 = vor.u32 %v1373, %v1374
        %v1376 = vshll.u32 2102212464, %v1364
        %v1377 = vshrl.u32 920167782, %v1365
        %v1378 = vor.u32 %v1376, %v1377
        %v1379 = vshll.u32 920167782, %v1364
        %v1380 = vshrl.u32 1326507024, %v1365
        %v1381 = vor.u32 %v1379, %v1380
        %vm1382 = vcmp.lt.s32.totalorder %v1363, 1
        %vm1383 = vcmp.lt.s32.totalorder %v1363, 2
        %vm1384 = vcmp.lt.s32.totalorder %v1363, 3
        %vm1385 = vcmp.lt.s32.totalorder %v1363, 4
        %v1386 = vsel %vm1382, %v1366, %v1369
        %v1387 = vsel %vm1385, %v1375, 2102212464
        %v1388 = vsel %vm1384, %v1372, %v1387
        %v1389 = vsel %vm1383, %v1386, %v1388
        %v1390 = vsel %vm1382, %v1369, %v1372
        %v1391 = vsel %vm1385, %v1378, 920167782
        %v1392 = vsel %vm1384, %v1375, %v1391
        %v1393 = vsel %vm1383, %v1390, %v1392
        %v1394 = vsel %vm1382, %v1372, %v1375
        %v1395 = vsel %vm1385, %v1381, 1326507024
        %v1396 = vsel %vm1384, %v1378, %v1395
        %v1397 = vsel %vm1383, %v1394, %v1396
        %v1398 = vshll.u32 %v1358, 8
        %v1399 = vmul.u32.u64.compose %v1398, %v1397
        %v1400 = vextract.low.u32 %v1399
        %v1401 = vextract.high.u32 %v1399
        %v1402 = vmul.u32.u64.compose %v1398, %v1393
        %v1403 = vextract.low.u32 %v1402
        %v1404 = vextract.high.u32 %v1402
        %v1405 = vmul.u32 %v1398, %v1389
        %v1406 = vadd.s32 %v1401, %v1403
        %vm1407 = vc.u32 %v1401, %v1403
        %v1408 = vadd.s32 %v1404, 1
        %v1409 = vsel %vm1407, %v1408, %v1404
        %v1410 = vadd.s32 %v1405, %v1409
        %v1411 = vadd.s32 %v1410, 536870912
        %v1412 = vshrl.u32 %v1411, 30
        %v1413 = vshll.u32 %v1412, 30
        %v1414 = vsub.s32 %v1410, %v1413
        %vm1415 = vcmp.lt.s32.totalorder %v1414, 0
        %v1416 = vsub.s32 0, %v1414
        %v1417 = vsel %vm1415, %v1416, %v1414
        %v1418 = vclz %v1417
        %v1419 = vsub.s32 %v1418, 2
        %vm1420 = vcmp.gt.s32.totalorder 0, %v1419
        %v1421 = vsel %vm1420, 0, %v1419
        %v1422 = vsub.s32 32, %v1421
        %v1423 = vshll.u32 %v1414, %v1421
        %v1424 = vshrl.u32 %v1406, %v1422
        %v1425 = vor.u32 %v1423, %v1424
        %v1426 = vsub.s32 4294967266, %v1421
        %v1427 = vadd.s32 %v1426, 127
        %v1428 = vshll.u32 %v1427, 23
        %v1429 = vor.u32 4788187, %v1428
        %v1430 = vand.u32 2147483647, %v1429
        %v1432 = vcvt.s32.f32 %v1425
        %v1433 = vmul.f32 %v1432, %v1430
        %v1434 = vxor.u32 %v1433, 2147483648
        %v1435 = vsel %vm1352, %v1434, %v1433
        %v1436 = vsub.s32 4, %v1412
        %v1437 = vsel %vm1352, %v1436, %v1412
        %v1438 = vsel %vm1351, %v803, %v1435
        %v1439 = vsel %vm1351, 0, %v1437
        %v1440 = vcosq.f32.pop %v1438
        %v1441 = vsinq.f32.pop %v1438
        %vm1442 = vweird.f32 %v803
        %v1443 = vadd.s32 %v1439, 3
        %v1444 = vand.u32 %v1443, 3
        %vm1445 = vcmp.lt.s32.totalorder %v1444, 2
        %vm1446 = vcmp.eq.s32.totalorder %v1444, 0
        %v1447 = vxor.u32 %v1441, 2147483648
        %v1448 = vsel %vm1446, %v1440, %v1447
        %vm1449 = vcmp.eq.s32.totalorder %v1444, 2
        %v1450 = vxor.u32 %v1440, 2147483648
        %v1451 = vsel %vm1449, %v1450, %v1441
        %v1452 = vsel %vm1445, %v1448, %v1451
        %v1453 = vsel %vm1442, nan, %v1452
        %v1454 = vand.u32 2147483647, %v804
        %vm1455 = vcmp.le.f32.partialorder %v1454, 0.7853982
        %vm1456 = vcmp.lt.s32.totalorder %v804, 0
        %v1457 = vand.u32 %v804, 2139095040
        %v1458 = vshrl.u32 %v1457, 23
        %v1459 = vsub.s32 %v1458, 127
        %v1460 = vand.u32 2147483647, %v804
        %v1461 = vand.u32 %v1460, 8388607
        %v1462 = vor.u32 %v1461, 8388608
        %v1463 = vsub.s32 0, %v1462
        %v1464 = vadd.s32 %v1459, 1
        %vm1465 = vcmp.gt.s32.totalorder %v1464, 0
        %v1466 = vsel %vm1465, %v1464, 0
        %v1467 = vshrl.u32 %v1466, 5
        %v1468 = vand.u32 %v1466, 31
        %v1469 = vsub.s32 32, %v1468
        %v1470 = vshrl.u32 683565275, %v1469
        %v1471 = vshll.u32 683565275, %v1468
        %v1472 = vshrl.u32 2475754826, %v1469
        %v1473 = vor.u32 %v1471, %v1472
        %v1474 = vshll.u32 2475754826, %v1468
        %v1475 = vshrl.u32 2131351028, %v1469
        %v1476 = vor.u32 %v1474, %v1475
        %v1477 = vshll.u32 2131351028, %v1468
        %v1478 = vshrl.u32 2102212464, %v1469
        %v1479 = vor.u32 %v1477, %v1478
        %v1480 = vshll.u32 2102212464, %v1468
        %v1481 = vshrl.u32 920167782, %v1469
        %v1482 = vor.u32 %v1480, %v1481
        %v1483 = vshll.u32 920167782, %v1468
        %v1484 = vshrl.u32 1326507024, %v1469
        %v1485 = vor.u32 %v1483, %v1484
        %vm1486 = vcmp.lt.s32.totalorder %v1467, 1
        %vm1487 = vcmp.lt.s32.totalorder %v1467, 2
        %vm1488 = vcmp.lt.s32.totalorder %v1467, 3
        %vm1489 = vcmp.lt.s32.totalorder %v1467, 4
        %v1490 = vsel %vm1486, %v1470, %v1473
        %v1491 = vsel %vm1489, %v1479, 2102212464
        %v1492 = vsel %vm1488, %v1476, %v1491
        %v1493 = vsel %vm1487, %v1490, %v1492
        %v1494 = vsel %vm1486, %v1473, %v1476
        %v1495 = vsel %vm1489, %v1482, 920167782
        %v1496 = vsel %vm1488, %v1479, %v1495
        %v1497 = vsel %vm1487, %v1494, %v1496
        %v1498 = vsel %vm1486, %v1476, %v1479
        %v1499 = vsel %vm1489, %v1485, 1326507024
        %v1500 = vsel %vm1488, %v1482, %v1499
        %v1501 = vsel %vm1487, %v1498, %v1500
        %v1502 = vshll.u32 %v1462, 8
        %v1503 = vmul.u32.u64.compose %v1502, %v1501
        %v1504 = vextract.low.u32 %v1503
        %v1505 = vextract.high.u32 %v1503
        %v1506 = vmul.u32.u64.compose %v1502, %v1497
        %v1507 = vextract.low.u32 %v1506
        %v1508 = vextract.high.u32 %v1506
        %v1509 = vmul.u32 %v1502, %v1493
        %v1510 = vadd.s32 %v1505, %v1507
        %vm1511 = vc.u32 %v1505, %v1507
        %v1512 = vadd.s32 %v1508, 1
        %v1513 = vsel %vm1511, %v1512, %v1508
        %v1514 = vadd.s32 %v1509, %v1513
        %v1515 = vadd.s32 %v1514, 536870912
        %v1516 = vshrl.u32 %v1515, 30
        %v1517 = vshll.u32 %v1516, 30
        %v1518 = vsub.s32 %v1514, %v1517
        %vm1519 = vcmp.lt.s32.totalorder %v1518, 0
        %v1520 = vsub.s32 0, %v1518
        %v1521 = vsel %vm1519, %v1520, %v1518
        %v1522 = vclz %v1521
        %v1523 = vsub.s32 %v1522, 2
        %vm1524 = vcmp.gt.s32.totalorder 0, %v1523
        %v1525 = vsel %vm1524, 0, %v1523
        %v1526 = vsub.s32 32, %v1525
        %v1527 = vshll.u32 %v1518, %v1525
        %v1528 = vshrl.u32 %v1510, %v1526
        %v1529 = vor.u32 %v1527, %v1528
        %v1530 = vsub.s32 4294967266, %v1525
        %v1531 = vadd.s32 %v1530, 127
        %v1532 = vshll.u32 %v1531, 23
        %v1533 = vor.u32 4788187, %v1532
        %v1534 = vand.u32 2147483647, %v1533
        %v1536 = vcvt.s32.f32 %v1529
        %v1537 = vmul.f32 %v1536, %v1534
        %v1538 = vxor.u32 %v1537, 2147483648
        %v1539 = vsel %vm1456, %v1538, %v1537
        %v1540 = vsub.s32 4, %v1516
        %v1541 = vsel %vm1456, %v1540, %v1516
        %v1542 = vsel %vm1455, %v804, %v1539
        %v1543 = vsel %vm1455, 0, %v1541
        %v1544 = vcosq.f32.pop %v1542
        %v1545 = vsinq.f32.pop %v1542
        %vm1546 = vweird.f32 %v804
        %v1547 = vadd.s32 %v1543, 3
        %v1548 = vand.u32 %v1547, 3
        %vm1549 = vcmp.lt.s32.totalorder %v1548, 2
        %vm1550 = vcmp.eq.s32.totalorder %v1548, 0
        %v1551 = vxor.u32 %v1545, 2147483648
        %v1552 = vsel %vm1550, %v1544, %v1551
        %vm1553 = vcmp.eq.s32.totalorder %v1548, 2
        %v1554 = vxor.u32 %v1544, 2147483648
        %v1555 = vsel %vm1553, %v1554, %v1545
        %v1556 = vsel %vm1549, %v1552, %v1555
        %v1557 = vsel %vm1546, nan, %v1556
        %v1558 = vand.u32 2147483647, %v805
        %vm1559 = vcmp.le.f32.partialorder %v1558, 0.7853982
        %vm1560 = vcmp.lt.s32.totalorder %v805, 0
        %v1561 = vand.u32 %v805, 2139095040
        %v1562 = vshrl.u32 %v1561, 23
        %v1563 = vsub.s32 %v1562, 127
        %v1564 = vand.u32 2147483647, %v805
        %v1565 = vand.u32 %v1564, 8388607
        %v1566 = vor.u32 %v1565, 8388608
        %v1567 = vsub.s32 0, %v1566
        %v1568 = vadd.s32 %v1563, 1
        %vm1569 = vcmp.gt.s32.totalorder %v1568, 0
        %v1570 = vsel %vm1569, %v1568, 0
        %v1571 = vshrl.u32 %v1570, 5
        %v1572 = vand.u32 %v1570, 31
        %v1573 = vsub.s32 32, %v1572
        %v1574 = vshrl.u32 683565275, %v1573
        %v1575 = vshll.u32 683565275, %v1572
        %v1576 = vshrl.u32 2475754826, %v1573
        %v1577 = vor.u32 %v1575, %v1576
        %v1578 = vshll.u32 2475754826, %v1572
        %v1579 = vshrl.u32 2131351028, %v1573
        %v1580 = vor.u32 %v1578, %v1579
        %v1581 = vshll.u32 2131351028, %v1572
        %v1582 = vshrl.u32 2102212464, %v1573
        %v1583 = vor.u32 %v1581, %v1582
        %v1584 = vshll.u32 2102212464, %v1572
        %v1585 = vshrl.u32 920167782, %v1573
        %v1586 = vor.u32 %v1584, %v1585
        %v1587 = vshll.u32 920167782, %v1572
        %v1588 = vshrl.u32 1326507024, %v1573
        %v1589 = vor.u32 %v1587, %v1588
        %vm1590 = vcmp.lt.s32.totalorder %v1571, 1
        %vm1591 = vcmp.lt.s32.totalorder %v1571, 2
        %vm1592 = vcmp.lt.s32.totalorder %v1571, 3
        %vm1593 = vcmp.lt.s32.totalorder %v1571, 4
        %v1594 = vsel %vm1590, %v1574, %v1577
        %v1595 = vsel %vm1593, %v1583, 2102212464
        %v1596 = vsel %vm1592, %v1580, %v1595
        %v1597 = vsel %vm1591, %v1594, %v1596
        %v1598 = vsel %vm1590, %v1577, %v1580
        %v1599 = vsel %vm1593, %v1586, 920167782
        %v1600 = vsel %vm1592, %v1583, %v1599
        %v1601 = vsel %vm1591, %v1598, %v1600
        %v1602 = vsel %vm1590, %v1580, %v1583
        %v1603 = vsel %vm1593, %v1589, 1326507024
        %v1604 = vsel %vm1592, %v1586, %v1603
        %v1605 = vsel %vm1591, %v1602, %v1604
        %v1606 = vshll.u32 %v1566, 8
        %v1607 = vmul.u32.u64.compose %v1606, %v1605
        %v1608 = vextract.low.u32 %v1607
        %v1609 = vextract.high.u32 %v1607
        %v1610 = vmul.u32.u64.compose %v1606, %v1601
        %v1611 = vextract.low.u32 %v1610
        %v1612 = vextract.high.u32 %v1610
        %v1613 = vmul.u32 %v1606, %v1597
        %v1614 = vadd.s32 %v1609, %v1611
        %vm1615 = vc.u32 %v1609, %v1611
        %v1616 = vadd.s32 %v1612, 1
        %v1617 = vsel %vm1615, %v1616, %v1612
        %v1618 = vadd.s32 %v1613, %v1617
        %v1619 = vadd.s32 %v1618, 536870912
        %v1620 = vshrl.u32 %v1619, 30
        %v1621 = vshll.u32 %v1620, 30
        %v1622 = vsub.s32 %v1618, %v1621
        %vm1623 = vcmp.lt.s32.totalorder %v1622, 0
        %v1624 = vsub.s32 0, %v1622
        %v1625 = vsel %vm1623, %v1624, %v1622
        %v1626 = vclz %v1625
        %v1627 = vsub.s32 %v1626, 2
        %vm1628 = vcmp.gt.s32.totalorder 0, %v1627
        %v1629 = vsel %vm1628, 0, %v1627
        %v1630 = vsub.s32 32, %v1629
        %v1631 = vshll.u32 %v1622, %v1629
        %v1632 = vshrl.u32 %v1614, %v1630
        %v1633 = vor.u32 %v1631, %v1632
        %v1634 = vsub.s32 4294967266, %v1629
        %v1635 = vadd.s32 %v1634, 127
        %v1636 = vshll.u32 %v1635, 23
        %v1637 = vor.u32 4788187, %v1636
        %v1638 = vand.u32 2147483647, %v1637
        %v1640 = vcvt.s32.f32 %v1633
        %v1641 = vmul.f32 %v1640, %v1638
        %v1642 = vxor.u32 %v1641, 2147483648
        %v1643 = vsel %vm1560, %v1642, %v1641
        %v1644 = vsub.s32 4, %v1620
        %v1645 = vsel %vm1560, %v1644, %v1620
        %v1646 = vsel %vm1559, %v805, %v1643
        %v1647 = vsel %vm1559, 0, %v1645
        %v1648 = vcosq.f32.pop %v1646
        %v1649 = vsinq.f32.pop %v1646
        %vm1650 = vweird.f32 %v805
        %v1651 = vadd.s32 %v1647, 3
        %v1652 = vand.u32 %v1651, 3
        %vm1653 = vcmp.lt.s32.totalorder %v1652, 2
        %vm1654 = vcmp.eq.s32.totalorder %v1652, 0
        %v1655 = vxor.u32 %v1649, 2147483648
        %v1656 = vsel %vm1654, %v1648, %v1655
        %vm1657 = vcmp.eq.s32.totalorder %v1652, 2
        %v1658 = vxor.u32 %v1648, 2147483648
        %v1659 = vsel %vm1657, %v1658, %v1649
        %v1660 = vsel %vm1653, %v1656, %v1659
        %v1661 = vsel %vm1650, nan, %v1660
        %v1662 = vand.u32 2147483647, %v806
        %vm1663 = vcmp.le.f32.partialorder %v1662, 0.7853982
        %vm1664 = vcmp.lt.s32.totalorder %v806, 0
        %v1665 = vand.u32 %v806, 2139095040
        %v1666 = vshrl.u32 %v1665, 23
        %v1667 = vsub.s32 %v1666, 127
        %v1668 = vand.u32 2147483647, %v806
        %v1669 = vand.u32 %v1668, 8388607
        %v1670 = vor.u32 %v1669, 8388608
        %v1671 = vsub.s32 0, %v1670
        %v1672 = vadd.s32 %v1667, 1
        %vm1673 = vcmp.gt.s32.totalorder %v1672, 0
        %v1674 = vsel %vm1673, %v1672, 0
        %v1675 = vshrl.u32 %v1674, 5
        %v1676 = vand.u32 %v1674, 31
        %v1677 = vsub.s32 32, %v1676
        %v1678 = vshrl.u32 683565275, %v1677
        %v1679 = vshll.u32 683565275, %v1676
        %v1680 = vshrl.u32 2475754826, %v1677
        %v1681 = vor.u32 %v1679, %v1680
        %v1682 = vshll.u32 2475754826, %v1676
        %v1683 = vshrl.u32 2131351028, %v1677
        %v1684 = vor.u32 %v1682, %v1683
        %v1685 = vshll.u32 2131351028, %v1676
        %v1686 = vshrl.u32 2102212464, %v1677
        %v1687 = vor.u32 %v1685, %v1686
        %v1688 = vshll.u32 2102212464, %v1676
        %v1689 = vshrl.u32 920167782, %v1677
        %v1690 = vor.u32 %v1688, %v1689
        %v1691 = vshll.u32 920167782, %v1676
        %v1692 = vshrl.u32 1326507024, %v1677
        %v1693 = vor.u32 %v1691, %v1692
        %vm1694 = vcmp.lt.s32.totalorder %v1675, 1
        %vm1695 = vcmp.lt.s32.totalorder %v1675, 2
        %vm1696 = vcmp.lt.s32.totalorder %v1675, 3
        %vm1697 = vcmp.lt.s32.totalorder %v1675, 4
        %v1698 = vsel %vm1694, %v1678, %v1681
        %v1699 = vsel %vm1697, %v1687, 2102212464
        %v1700 = vsel %vm1696, %v1684, %v1699
        %v1701 = vsel %vm1695, %v1698, %v1700
        %v1702 = vsel %vm1694, %v1681, %v1684
        %v1703 = vsel %vm1697, %v1690, 920167782
        %v1704 = vsel %vm1696, %v1687, %v1703
        %v1705 = vsel %vm1695, %v1702, %v1704
        %v1706 = vsel %vm1694, %v1684, %v1687
        %v1707 = vsel %vm1697, %v1693, 1326507024
        %v1708 = vsel %vm1696, %v1690, %v1707
        %v1709 = vsel %vm1695, %v1706, %v1708
        %v1710 = vshll.u32 %v1670, 8
        %v1711 = vmul.u32.u64.compose %v1710, %v1709
        %v1712 = vextract.low.u32 %v1711
        %v1713 = vextract.high.u32 %v1711
        %v1714 = vmul.u32.u64.compose %v1710, %v1705
        %v1715 = vextract.low.u32 %v1714
        %v1716 = vextract.high.u32 %v1714
        %v1717 = vmul.u32 %v1710, %v1701
        %v1718 = vadd.s32 %v1713, %v1715
        %vm1719 = vc.u32 %v1713, %v1715
        %v1720 = vadd.s32 %v1716, 1
        %v1721 = vsel %vm1719, %v1720, %v1716
        %v1722 = vadd.s32 %v1717, %v1721
        %v1723 = vadd.s32 %v1722, 536870912
        %v1724 = vshrl.u32 %v1723, 30
        %v1725 = vshll.u32 %v1724, 30
        %v1726 = vsub.s32 %v1722, %v1725
        %vm1727 = vcmp.lt.s32.totalorder %v1726, 0
        %v1728 = vsub.s32 0, %v1726
        %v1729 = vsel %vm1727, %v1728, %v1726
        %v1730 = vclz %v1729
        %v1731 = vsub.s32 %v1730, 2
        %vm1732 = vcmp.gt.s32.totalorder 0, %v1731
        %v1733 = vsel %vm1732, 0, %v1731
        %v1734 = vsub.s32 32, %v1733
        %v1735 = vshll.u32 %v1726, %v1733
        %v1736 = vshrl.u32 %v1718, %v1734
        %v1737 = vor.u32 %v1735, %v1736
        %v1738 = vsub.s32 4294967266, %v1733
        %v1739 = vadd.s32 %v1738, 127
        %v1740 = vshll.u32 %v1739, 23
        %v1741 = vor.u32 4788187, %v1740
        %v1742 = vand.u32 2147483647, %v1741
        %v1744 = vcvt.s32.f32 %v1737
        %v1745 = vmul.f32 %v1744, %v1742
        %v1746 = vxor.u32 %v1745, 2147483648
        %v1747 = vsel %vm1664, %v1746, %v1745
        %v1748 = vsub.s32 4, %v1724
        %v1749 = vsel %vm1664, %v1748, %v1724
        %v1750 = vsel %vm1663, %v806, %v1747
        %v1751 = vsel %vm1663, 0, %v1749
        %v1752 = vcosq.f32.pop %v1750
        %v1753 = vsinq.f32.pop %v1750
        %vm1754 = vweird.f32 %v806
        %v1755 = vadd.s32 %v1751, 3
        %v1756 = vand.u32 %v1755, 3
        %vm1757 = vcmp.lt.s32.totalorder %v1756, 2
        %vm1758 = vcmp.eq.s32.totalorder %v1756, 0
        %v1759 = vxor.u32 %v1753, 2147483648
        %v1760 = vsel %vm1758, %v1752, %v1759
        %vm1761 = vcmp.eq.s32.totalorder %v1756, 2
        %v1762 = vxor.u32 %v1752, 2147483648
        %v1763 = vsel %vm1761, %v1762, %v1753
        %v1764 = vsel %vm1757, %v1760, %v1763
        %v1765 = vsel %vm1754, nan, %v1764
        %v1766 = vand.u32 2147483647, %v807
        %vm1767 = vcmp.le.f32.partialorder %v1766, 0.7853982
        %vm1768 = vcmp.lt.s32.totalorder %v807, 0
        %v1769 = vand.u32 %v807, 2139095040
        %v1770 = vshrl.u32 %v1769, 23
        %v1771 = vsub.s32 %v1770, 127
        %v1772 = vand.u32 2147483647, %v807
        %v1773 = vand.u32 %v1772, 8388607
        %v1774 = vor.u32 %v1773, 8388608
        %v1775 = vsub.s32 0, %v1774
        %v1776 = vadd.s32 %v1771, 1
        %vm1777 = vcmp.gt.s32.totalorder %v1776, 0
        %v1778 = vsel %vm1777, %v1776, 0
        %v1779 = vshrl.u32 %v1778, 5
        %v1780 = vand.u32 %v1778, 31
        %v1781 = vsub.s32 32, %v1780
        %v1782 = vshrl.u32 683565275, %v1781
        %v1783 = vshll.u32 683565275, %v1780
        %v1784 = vshrl.u32 2475754826, %v1781
        %v1785 = vor.u32 %v1783, %v1784
        %v1786 = vshll.u32 2475754826, %v1780
        %v1787 = vshrl.u32 2131351028, %v1781
        %v1788 = vor.u32 %v1786, %v1787
        %v1789 = vshll.u32 2131351028, %v1780
        %v1790 = vshrl.u32 2102212464, %v1781
        %v1791 = vor.u32 %v1789, %v1790
        %v1792 = vshll.u32 2102212464, %v1780
        %v1793 = vshrl.u32 920167782, %v1781
        %v1794 = vor.u32 %v1792, %v1793
        %v1795 = vshll.u32 920167782, %v1780
        %v1796 = vshrl.u32 1326507024, %v1781
        %v1797 = vor.u32 %v1795, %v1796
        %vm1798 = vcmp.lt.s32.totalorder %v1779, 1
        %vm1799 = vcmp.lt.s32.totalorder %v1779, 2
        %vm1800 = vcmp.lt.s32.totalorder %v1779, 3
        %vm1801 = vcmp.lt.s32.totalorder %v1779, 4
        %v1802 = vsel %vm1798, %v1782, %v1785
        %v1803 = vsel %vm1801, %v1791, 2102212464
        %v1804 = vsel %vm1800, %v1788, %v1803
        %v1805 = vsel %vm1799, %v1802, %v1804
        %v1806 = vsel %vm1798, %v1785, %v1788
        %v1807 = vsel %vm1801, %v1794, 920167782
        %v1808 = vsel %vm1800, %v1791, %v1807
        %v1809 = vsel %vm1799, %v1806, %v1808
        %v1810 = vsel %vm1798, %v1788, %v1791
        %v1811 = vsel %vm1801, %v1797, 1326507024
        %v1812 = vsel %vm1800, %v1794, %v1811
        %v1813 = vsel %vm1799, %v1810, %v1812
        %v1814 = vshll.u32 %v1774, 8
        %v1815 = vmul.u32.u64.compose %v1814, %v1813
        %v1816 = vextract.low.u32 %v1815
        %v1817 = vextract.high.u32 %v1815
        %v1818 = vmul.u32.u64.compose %v1814, %v1809
        %v1819 = vextract.low.u32 %v1818
        %v1820 = vextract.high.u32 %v1818
        %v1821 = vmul.u32 %v1814, %v1805
        %v1822 = vadd.s32 %v1817, %v1819
        %vm1823 = vc.u32 %v1817, %v1819
        %v1824 = vadd.s32 %v1820, 1
        %v1825 = vsel %vm1823, %v1824, %v1820
        %v1826 = vadd.s32 %v1821, %v1825
        %v1827 = vadd.s32 %v1826, 536870912
        %v1828 = vshrl.u32 %v1827, 30
        %v1829 = vshll.u32 %v1828, 30
        %v1830 = vsub.s32 %v1826, %v1829
        %vm1831 = vcmp.lt.s32.totalorder %v1830, 0
        %v1832 = vsub.s32 0, %v1830
        %v1833 = vsel %vm1831, %v1832, %v1830
        %v1834 = vclz %v1833
        %v1835 = vsub.s32 %v1834, 2
        %vm1836 = vcmp.gt.s32.totalorder 0, %v1835
        %v1837 = vsel %vm1836, 0, %v1835
        %v1838 = vsub.s32 32, %v1837
        %v1839 = vshll.u32 %v1830, %v1837
        %v1840 = vshrl.u32 %v1822, %v1838
        %v1841 = vor.u32 %v1839, %v1840
        %v1842 = vsub.s32 4294967266, %v1837
        %v1843 = vadd.s32 %v1842, 127
        %v1844 = vshll.u32 %v1843, 23
        %v1845 = vor.u32 4788187, %v1844
        %v1846 = vand.u32 2147483647, %v1845
        %v1848 = vcvt.s32.f32 %v1841
        %v1849 = vmul.f32 %v1848, %v1846
        %v1850 = vxor.u32 %v1849, 2147483648
        %v1851 = vsel %vm1768, %v1850, %v1849
        %v1852 = vsub.s32 4, %v1828
        %v1853 = vsel %vm1768, %v1852, %v1828
        %v1854 = vsel %vm1767, %v807, %v1851
        %v1855 = vsel %vm1767, 0, %v1853
        %v1856 = vcosq.f32.pop %v1854
        %v1857 = vsinq.f32.pop %v1854
        %vm1858 = vweird.f32 %v807
        %v1859 = vadd.s32 %v1855, 3
        %v1860 = vand.u32 %v1859, 3
        %vm1861 = vcmp.lt.s32.totalorder %v1860, 2
        %vm1862 = vcmp.eq.s32.totalorder %v1860, 0
        %v1863 = vxor.u32 %v1857, 2147483648
        %v1864 = vsel %vm1862, %v1856, %v1863
        %vm1865 = vcmp.eq.s32.totalorder %v1860, 2
        %v1866 = vxor.u32 %v1856, 2147483648
        %v1867 = vsel %vm1865, %v1866, %v1857
        %v1868 = vsel %vm1861, %v1864, %v1867
        %v1869 = vsel %vm1858, nan, %v1868
        %v1870 = vand.u32 2147483647, %v808
        %vm1871 = vcmp.le.f32.partialorder %v1870, 0.7853982
        %vm1872 = vcmp.lt.s32.totalorder %v808, 0
        %v1873 = vand.u32 %v808, 2139095040
        %v1874 = vshrl.u32 %v1873, 23
        %v1875 = vsub.s32 %v1874, 127
        %v1876 = vand.u32 2147483647, %v808
        %v1877 = vand.u32 %v1876, 8388607
        %v1878 = vor.u32 %v1877, 8388608
        %v1879 = vsub.s32 0, %v1878
        %v1880 = vadd.s32 %v1875, 1
        %vm1881 = vcmp.gt.s32.totalorder %v1880, 0
        %v1882 = vsel %vm1881, %v1880, 0
        %v1883 = vshrl.u32 %v1882, 5
        %v1884 = vand.u32 %v1882, 31
        %v1885 = vsub.s32 32, %v1884
        %v1886 = vshrl.u32 683565275, %v1885
        %v1887 = vshll.u32 683565275, %v1884
        %v1888 = vshrl.u32 2475754826, %v1885
        %v1889 = vor.u32 %v1887, %v1888
        %v1890 = vshll.u32 2475754826, %v1884
        %v1891 = vshrl.u32 2131351028, %v1885
        %v1892 = vor.u32 %v1890, %v1891
        %v1893 = vshll.u32 2131351028, %v1884
        %v1894 = vshrl.u32 2102212464, %v1885
        %v1895 = vor.u32 %v1893, %v1894
        %v1896 = vshll.u32 2102212464, %v1884
        %v1897 = vshrl.u32 920167782, %v1885
        %v1898 = vor.u32 %v1896, %v1897
        %v1899 = vshll.u32 920167782, %v1884
        %v1900 = vshrl.u32 1326507024, %v1885
        %v1901 = vor.u32 %v1899, %v1900
        %vm1902 = vcmp.lt.s32.totalorder %v1883, 1
        %vm1903 = vcmp.lt.s32.totalorder %v1883, 2
        %vm1904 = vcmp.lt.s32.totalorder %v1883, 3
        %vm1905 = vcmp.lt.s32.totalorder %v1883, 4
        %v1906 = vsel %vm1902, %v1886, %v1889
        %v1907 = vsel %vm1905, %v1895, 2102212464
        %v1908 = vsel %vm1904, %v1892, %v1907
        %v1909 = vsel %vm1903, %v1906, %v1908
        %v1910 = vsel %vm1902, %v1889, %v1892
        %v1911 = vsel %vm1905, %v1898, 920167782
        %v1912 = vsel %vm1904, %v1895, %v1911
        %v1913 = vsel %vm1903, %v1910, %v1912
        %v1914 = vsel %vm1902, %v1892, %v1895
        %v1915 = vsel %vm1905, %v1901, 1326507024
        %v1916 = vsel %vm1904, %v1898, %v1915
        %v1917 = vsel %vm1903, %v1914, %v1916
        %v1918 = vshll.u32 %v1878, 8
        %v1919 = vmul.u32.u64.compose %v1918, %v1917
        %v1920 = vextract.low.u32 %v1919
        %v1921 = vextract.high.u32 %v1919
        %v1922 = vmul.u32.u64.compose %v1918, %v1913
        %v1923 = vextract.low.u32 %v1922
        %v1924 = vextract.high.u32 %v1922
        %v1925 = vmul.u32 %v1918, %v1909
        %v1926 = vadd.s32 %v1921, %v1923
        %vm1927 = vc.u32 %v1921, %v1923
        %v1928 = vadd.s32 %v1924, 1
        %v1929 = vsel %vm1927, %v1928, %v1924
        %v1930 = vadd.s32 %v1925, %v1929
        %v1931 = vadd.s32 %v1930, 536870912
        %v1932 = vshrl.u32 %v1931, 30
        %v1933 = vshll.u32 %v1932, 30
        %v1934 = vsub.s32 %v1930, %v1933
        %vm1935 = vcmp.lt.s32.totalorder %v1934, 0
        %v1936 = vsub.s32 0, %v1934
        %v1937 = vsel %vm1935, %v1936, %v1934
        %v1938 = vclz %v1937
        %v1939 = vsub.s32 %v1938, 2
        %vm1940 = vcmp.gt.s32.totalorder 0, %v1939
        %v1941 = vsel %vm1940, 0, %v1939
        %v1942 = vsub.s32 32, %v1941
        %v1943 = vshll.u32 %v1934, %v1941
        %v1944 = vshrl.u32 %v1926, %v1942
        %v1945 = vor.u32 %v1943, %v1944
        %v1946 = vsub.s32 4294967266, %v1941
        %v1947 = vadd.s32 %v1946, 127
        %v1948 = vshll.u32 %v1947, 23
        %v1949 = vor.u32 4788187, %v1948
        %v1950 = vand.u32 2147483647, %v1949
        %v1952 = vcvt.s32.f32 %v1945
        %v1953 = vmul.f32 %v1952, %v1950
        %v1954 = vxor.u32 %v1953, 2147483648
        %v1955 = vsel %vm1872, %v1954, %v1953
        %v1956 = vsub.s32 4, %v1932
        %v1957 = vsel %vm1872, %v1956, %v1932
        %v1958 = vsel %vm1871, %v808, %v1955
        %v1959 = vsel %vm1871, 0, %v1957
        %v1960 = vcosq.f32.pop %v1958
        %v1961 = vsinq.f32.pop %v1958
        %vm1962 = vweird.f32 %v808
        %v1963 = vadd.s32 %v1959, 3
        %v1964 = vand.u32 %v1963, 3
        %vm1965 = vcmp.lt.s32.totalorder %v1964, 2
        %vm1966 = vcmp.eq.s32.totalorder %v1964, 0
        %v1967 = vxor.u32 %v1961, 2147483648
        %v1968 = vsel %vm1966, %v1960, %v1967
        %vm1969 = vcmp.eq.s32.totalorder %v1964, 2
        %v1970 = vxor.u32 %v1960, 2147483648
        %v1971 = vsel %vm1969, %v1970, %v1961
        %v1972 = vsel %vm1965, %v1968, %v1971
        %v1973 = vsel %vm1962, nan, %v1972
        %v1974 = vand.u32 2147483647, %v809
        %vm1975 = vcmp.le.f32.partialorder %v1974, 0.7853982
        %vm1976 = vcmp.lt.s32.totalorder %v809, 0
        %v1977 = vand.u32 %v809, 2139095040
        %v1978 = vshrl.u32 %v1977, 23
        %v1979 = vsub.s32 %v1978, 127
        %v1980 = vand.u32 2147483647, %v809
        %v1981 = vand.u32 %v1980, 8388607
        %v1982 = vor.u32 %v1981, 8388608
        %v1983 = vsub.s32 0, %v1982
        %v1984 = vadd.s32 %v1979, 1
        %vm1985 = vcmp.gt.s32.totalorder %v1984, 0
        %v1986 = vsel %vm1985, %v1984, 0
        %v1987 = vshrl.u32 %v1986, 5
        %v1988 = vand.u32 %v1986, 31
        %v1989 = vsub.s32 32, %v1988
        %v1990 = vshrl.u32 683565275, %v1989
        %v1991 = vshll.u32 683565275, %v1988
        %v1992 = vshrl.u32 2475754826, %v1989
        %v1993 = vor.u32 %v1991, %v1992
        %v1994 = vshll.u32 2475754826, %v1988
        %v1995 = vshrl.u32 2131351028, %v1989
        %v1996 = vor.u32 %v1994, %v1995
        %v1997 = vshll.u32 2131351028, %v1988
        %v1998 = vshrl.u32 2102212464, %v1989
        %v1999 = vor.u32 %v1997, %v1998
        %v2000 = vshll.u32 2102212464, %v1988
        %v2001 = vshrl.u32 920167782, %v1989
        %v2002 = vor.u32 %v2000, %v2001
        %v2003 = vshll.u32 920167782, %v1988
        %v2004 = vshrl.u32 1326507024, %v1989
        %v2005 = vor.u32 %v2003, %v2004
        %vm2006 = vcmp.lt.s32.totalorder %v1987, 1
        %vm2007 = vcmp.lt.s32.totalorder %v1987, 2
        %vm2008 = vcmp.lt.s32.totalorder %v1987, 3
        %vm2009 = vcmp.lt.s32.totalorder %v1987, 4
        %v2010 = vsel %vm2006, %v1990, %v1993
        %v2011 = vsel %vm2009, %v1999, 2102212464
        %v2012 = vsel %vm2008, %v1996, %v2011
        %v2013 = vsel %vm2007, %v2010, %v2012
        %v2014 = vsel %vm2006, %v1993, %v1996
        %v2015 = vsel %vm2009, %v2002, 920167782
        %v2016 = vsel %vm2008, %v1999, %v2015
        %v2017 = vsel %vm2007, %v2014, %v2016
        %v2018 = vsel %vm2006, %v1996, %v1999
        %v2019 = vsel %vm2009, %v2005, 1326507024
        %v2020 = vsel %vm2008, %v2002, %v2019
        %v2021 = vsel %vm2007, %v2018, %v2020
        %v2022 = vshll.u32 %v1982, 8
        %v2023 = vmul.u32.u64.compose %v2022, %v2021
        %v2024 = vextract.low.u32 %v2023
        %v2025 = vextract.high.u32 %v2023
        %v2026 = vmul.u32.u64.compose %v2022, %v2017
        %v2027 = vextract.low.u32 %v2026
        %v2028 = vextract.high.u32 %v2026
        %v2029 = vmul.u32 %v2022, %v2013
        %v2030 = vadd.s32 %v2025, %v2027
        %vm2031 = vc.u32 %v2025, %v2027
        %v2032 = vadd.s32 %v2028, 1
        %v2033 = vsel %vm2031, %v2032, %v2028
        %v2034 = vadd.s32 %v2029, %v2033
        %v2035 = vadd.s32 %v2034, 536870912
        %v2036 = vshrl.u32 %v2035, 30
        %v2037 = vshll.u32 %v2036, 30
        %v2038 = vsub.s32 %v2034, %v2037
        %vm2039 = vcmp.lt.s32.totalorder %v2038, 0
        %v2040 = vsub.s32 0, %v2038
        %v2041 = vsel %vm2039, %v2040, %v2038
        %v2042 = vclz %v2041
        %v2043 = vsub.s32 %v2042, 2
        %vm2044 = vcmp.gt.s32.totalorder 0, %v2043
        %v2045 = vsel %vm2044, 0, %v2043
        %v2046 = vsub.s32 32, %v2045
        %v2047 = vshll.u32 %v2038, %v2045
        %v2048 = vshrl.u32 %v2030, %v2046
        %v2049 = vor.u32 %v2047, %v2048
        %v2050 = vsub.s32 4294967266, %v2045
        %v2051 = vadd.s32 %v2050, 127
        %v2052 = vshll.u32 %v2051, 23
        %v2053 = vor.u32 4788187, %v2052
        %v2054 = vand.u32 2147483647, %v2053
        %v2056 = vcvt.s32.f32 %v2049
        %v2057 = vmul.f32 %v2056, %v2054
        %v2058 = vxor.u32 %v2057, 2147483648
        %v2059 = vsel %vm1976, %v2058, %v2057
        %v2060 = vsub.s32 4, %v2036
        %v2061 = vsel %vm1976, %v2060, %v2036
        %v2062 = vsel %vm1975, %v809, %v2059
        %v2063 = vsel %vm1975, 0, %v2061
        %v2064 = vcosq.f32.pop %v2062
        %v2065 = vsinq.f32.pop %v2062
        %vm2066 = vweird.f32 %v809
        %v2067 = vadd.s32 %v2063, 3
        %v2068 = vand.u32 %v2067, 3
        %vm2069 = vcmp.lt.s32.totalorder %v2068, 2
        %vm2070 = vcmp.eq.s32.totalorder %v2068, 0
        %v2071 = vxor.u32 %v2065, 2147483648
        %v2072 = vsel %vm2070, %v2064, %v2071
        %vm2073 = vcmp.eq.s32.totalorder %v2068, 2
        %v2074 = vxor.u32 %v2064, 2147483648
        %v2075 = vsel %vm2073, %v2074, %v2065
        %v2076 = vsel %vm2069, %v2072, %v2075
        %v2077 = vsel %vm2066, nan, %v2076
        %v2078 = vand.u32 2147483647, %v810
        %vm2079 = vcmp.le.f32.partialorder %v2078, 0.7853982
        %vm2080 = vcmp.lt.s32.totalorder %v810, 0
        %v2081 = vand.u32 %v810, 2139095040
        %v2082 = vshrl.u32 %v2081, 23
        %v2083 = vsub.s32 %v2082, 127
        %v2084 = vand.u32 2147483647, %v810
        %v2085 = vand.u32 %v2084, 8388607
        %v2086 = vor.u32 %v2085, 8388608
        %v2087 = vsub.s32 0, %v2086
        %v2088 = vadd.s32 %v2083, 1
        %vm2089 = vcmp.gt.s32.totalorder %v2088, 0
        %v2090 = vsel %vm2089, %v2088, 0
        %v2091 = vshrl.u32 %v2090, 5
        %v2092 = vand.u32 %v2090, 31
        %v2093 = vsub.s32 32, %v2092
        %v2094 = vshrl.u32 683565275, %v2093
        %v2095 = vshll.u32 683565275, %v2092
        %v2096 = vshrl.u32 2475754826, %v2093
        %v2097 = vor.u32 %v2095, %v2096
        %v2098 = vshll.u32 2475754826, %v2092
        %v2099 = vshrl.u32 2131351028, %v2093
        %v2100 = vor.u32 %v2098, %v2099
        %v2101 = vshll.u32 2131351028, %v2092
        %v2102 = vshrl.u32 2102212464, %v2093
        %v2103 = vor.u32 %v2101, %v2102
        %v2104 = vshll.u32 2102212464, %v2092
        %v2105 = vshrl.u32 920167782, %v2093
        %v2106 = vor.u32 %v2104, %v2105
        %v2107 = vshll.u32 920167782, %v2092
        %v2108 = vshrl.u32 1326507024, %v2093
        %v2109 = vor.u32 %v2107, %v2108
        %vm2110 = vcmp.lt.s32.totalorder %v2091, 1
        %vm2111 = vcmp.lt.s32.totalorder %v2091, 2
        %vm2112 = vcmp.lt.s32.totalorder %v2091, 3
        %vm2113 = vcmp.lt.s32.totalorder %v2091, 4
        %v2114 = vsel %vm2110, %v2094, %v2097
        %v2115 = vsel %vm2113, %v2103, 2102212464
        %v2116 = vsel %vm2112, %v2100, %v2115
        %v2117 = vsel %vm2111, %v2114, %v2116
        %v2118 = vsel %vm2110, %v2097, %v2100
        %v2119 = vsel %vm2113, %v2106, 920167782
        %v2120 = vsel %vm2112, %v2103, %v2119
        %v2121 = vsel %vm2111, %v2118, %v2120
        %v2122 = vsel %vm2110, %v2100, %v2103
        %v2123 = vsel %vm2113, %v2109, 1326507024
        %v2124 = vsel %vm2112, %v2106, %v2123
        %v2125 = vsel %vm2111, %v2122, %v2124
        %v2126 = vshll.u32 %v2086, 8
        %v2127 = vmul.u32.u64.compose %v2126, %v2125
        %v2128 = vextract.low.u32 %v2127
        %v2129 = vextract.high.u32 %v2127
        %v2130 = vmul.u32.u64.compose %v2126, %v2121
        %v2131 = vextract.low.u32 %v2130
        %v2132 = vextract.high.u32 %v2130
        %v2133 = vmul.u32 %v2126, %v2117
        %v2134 = vadd.s32 %v2129, %v2131
        %vm2135 = vc.u32 %v2129, %v2131
        %v2136 = vadd.s32 %v2132, 1
        %v2137 = vsel %vm2135, %v2136, %v2132
        %v2138 = vadd.s32 %v2133, %v2137
        %v2139 = vadd.s32 %v2138, 536870912
        %v2140 = vshrl.u32 %v2139, 30
        %v2141 = vshll.u32 %v2140, 30
        %v2142 = vsub.s32 %v2138, %v2141
        %vm2143 = vcmp.lt.s32.totalorder %v2142, 0
        %v2144 = vsub.s32 0, %v2142
        %v2145 = vsel %vm2143, %v2144, %v2142
        %v2146 = vclz %v2145
        %v2147 = vsub.s32 %v2146, 2
        %vm2148 = vcmp.gt.s32.totalorder 0, %v2147
        %v2149 = vsel %vm2148, 0, %v2147
        %v2150 = vsub.s32 32, %v2149
        %v2151 = vshll.u32 %v2142, %v2149
        %v2152 = vshrl.u32 %v2134, %v2150
        %v2153 = vor.u32 %v2151, %v2152
        %v2154 = vsub.s32 4294967266, %v2149
        %v2155 = vadd.s32 %v2154, 127
        %v2156 = vshll.u32 %v2155, 23
        %v2157 = vor.u32 4788187, %v2156
        %v2158 = vand.u32 2147483647, %v2157
        %v2160 = vcvt.s32.f32 %v2153
        %v2161 = vmul.f32 %v2160, %v2158
        %v2162 = vxor.u32 %v2161, 2147483648
        %v2163 = vsel %vm2080, %v2162, %v2161
        %v2164 = vsub.s32 4, %v2140
        %v2165 = vsel %vm2080, %v2164, %v2140
        %v2166 = vsel %vm2079, %v810, %v2163
        %v2167 = vsel %vm2079, 0, %v2165
        %v2168 = vcosq.f32.pop %v2166
        %v2169 = vsinq.f32.pop %v2166
        %vm2170 = vweird.f32 %v810
        %v2171 = vadd.s32 %v2167, 3
        %v2172 = vand.u32 %v2171, 3
        %vm2173 = vcmp.lt.s32.totalorder %v2172, 2
        %vm2174 = vcmp.eq.s32.totalorder %v2172, 0
        %v2175 = vxor.u32 %v2169, 2147483648
        %v2176 = vsel %vm2174, %v2168, %v2175
        %vm2177 = vcmp.eq.s32.totalorder %v2172, 2
        %v2178 = vxor.u32 %v2168, 2147483648
        %v2179 = vsel %vm2177, %v2178, %v2169
        %v2180 = vsel %vm2173, %v2176, %v2179
        %v2181 = vsel %vm2170, nan, %v2180
        %v2182 = vand.u32 2147483647, %v811
        %vm2183 = vcmp.le.f32.partialorder %v2182, 0.7853982
        %vm2184 = vcmp.lt.s32.totalorder %v811, 0
        %v2185 = vand.u32 %v811, 2139095040
        %v2186 = vshrl.u32 %v2185, 23
        %v2187 = vsub.s32 %v2186, 127
        %v2188 = vand.u32 2147483647, %v811
        %v2189 = vand.u32 %v2188, 8388607
        %v2190 = vor.u32 %v2189, 8388608
        %v2191 = vsub.s32 0, %v2190
        %v2192 = vadd.s32 %v2187, 1
        %vm2193 = vcmp.gt.s32.totalorder %v2192, 0
        %v2194 = vsel %vm2193, %v2192, 0
        %v2195 = vshrl.u32 %v2194, 5
        %v2196 = vand.u32 %v2194, 31
        %v2197 = vsub.s32 32, %v2196
        %v2198 = vshrl.u32 683565275, %v2197
        %v2199 = vshll.u32 683565275, %v2196
        %v2200 = vshrl.u32 2475754826, %v2197
        %v2201 = vor.u32 %v2199, %v2200
        %v2202 = vshll.u32 2475754826, %v2196
        %v2203 = vshrl.u32 2131351028, %v2197
        %v2204 = vor.u32 %v2202, %v2203
        %v2205 = vshll.u32 2131351028, %v2196
        %v2206 = vshrl.u32 2102212464, %v2197
        %v2207 = vor.u32 %v2205, %v2206
        %v2208 = vshll.u32 2102212464, %v2196
        %v2209 = vshrl.u32 920167782, %v2197
        %v2210 = vor.u32 %v2208, %v2209
        %v2211 = vshll.u32 920167782, %v2196
        %v2212 = vshrl.u32 1326507024, %v2197
        %v2213 = vor.u32 %v2211, %v2212
        %vm2214 = vcmp.lt.s32.totalorder %v2195, 1
        %vm2215 = vcmp.lt.s32.totalorder %v2195, 2
        %vm2216 = vcmp.lt.s32.totalorder %v2195, 3
        %vm2217 = vcmp.lt.s32.totalorder %v2195, 4
        %v2218 = vsel %vm2214, %v2198, %v2201
        %v2219 = vsel %vm2217, %v2207, 2102212464
        %v2220 = vsel %vm2216, %v2204, %v2219
        %v2221 = vsel %vm2215, %v2218, %v2220
        %v2222 = vsel %vm2214, %v2201, %v2204
        %v2223 = vsel %vm2217, %v2210, 920167782
        %v2224 = vsel %vm2216, %v2207, %v2223
        %v2225 = vsel %vm2215, %v2222, %v2224
        %v2226 = vsel %vm2214, %v2204, %v2207
        %v2227 = vsel %vm2217, %v2213, 1326507024
        %v2228 = vsel %vm2216, %v2210, %v2227
        %v2229 = vsel %vm2215, %v2226, %v2228
        %v2230 = vshll.u32 %v2190, 8
        %v2231 = vmul.u32.u64.compose %v2230, %v2229
        %v2232 = vextract.low.u32 %v2231
        %v2233 = vextract.high.u32 %v2231
        %v2234 = vmul.u32.u64.compose %v2230, %v2225
        %v2235 = vextract.low.u32 %v2234
        %v2236 = vextract.high.u32 %v2234
        %v2237 = vmul.u32 %v2230, %v2221
        %v2238 = vadd.s32 %v2233, %v2235
        %vm2239 = vc.u32 %v2233, %v2235
        %v2240 = vadd.s32 %v2236, 1
        %v2241 = vsel %vm2239, %v2240, %v2236
        %v2242 = vadd.s32 %v2237, %v2241
        %v2243 = vadd.s32 %v2242, 536870912
        %v2244 = vshrl.u32 %v2243, 30
        %v2245 = vshll.u32 %v2244, 30
        %v2246 = vsub.s32 %v2242, %v2245
        %vm2247 = vcmp.lt.s32.totalorder %v2246, 0
        %v2248 = vsub.s32 0, %v2246
        %v2249 = vsel %vm2247, %v2248, %v2246
        %v2250 = vclz %v2249
        %v2251 = vsub.s32 %v2250, 2
        %vm2252 = vcmp.gt.s32.totalorder 0, %v2251
        %v2253 = vsel %vm2252, 0, %v2251
        %v2254 = vsub.s32 32, %v2253
        %v2255 = vshll.u32 %v2246, %v2253
        %v2256 = vshrl.u32 %v2238, %v2254
        %v2257 = vor.u32 %v2255, %v2256
        %v2258 = vsub.s32 4294967266, %v2253
        %v2259 = vadd.s32 %v2258, 127
        %v2260 = vshll.u32 %v2259, 23
        %v2261 = vor.u32 4788187, %v2260
        %v2262 = vand.u32 2147483647, %v2261
        %v2264 = vcvt.s32.f32 %v2257
        %v2265 = vmul.f32 %v2264, %v2262
        %v2266 = vxor.u32 %v2265, 2147483648
        %v2267 = vsel %vm2184, %v2266, %v2265
        %v2268 = vsub.s32 4, %v2244
        %v2269 = vsel %vm2184, %v2268, %v2244
        %v2270 = vsel %vm2183, %v811, %v2267
        %v2271 = vsel %vm2183, 0, %v2269
        %v2272 = vcosq.f32.pop %v2270
        %v2273 = vsinq.f32.pop %v2270
        %vm2274 = vweird.f32 %v811
        %v2275 = vadd.s32 %v2271, 3
        %v2276 = vand.u32 %v2275, 3
        %vm2277 = vcmp.lt.s32.totalorder %v2276, 2
        %vm2278 = vcmp.eq.s32.totalorder %v2276, 0
        %v2279 = vxor.u32 %v2273, 2147483648
        %v2280 = vsel %vm2278, %v2272, %v2279
        %vm2281 = vcmp.eq.s32.totalorder %v2276, 2
        %v2282 = vxor.u32 %v2272, 2147483648
        %v2283 = vsel %vm2281, %v2282, %v2273
        %v2284 = vsel %vm2277, %v2280, %v2283
        %v2285 = vsel %vm2274, nan, %v2284
        %v2286 = vand.u32 2147483647, %v812
        %vm2287 = vcmp.le.f32.partialorder %v2286, 0.7853982
        %vm2288 = vcmp.lt.s32.totalorder %v812, 0
        %v2289 = vand.u32 %v812, 2139095040
        %v2290 = vshrl.u32 %v2289, 23
        %v2291 = vsub.s32 %v2290, 127
        %v2292 = vand.u32 2147483647, %v812
        %v2293 = vand.u32 %v2292, 8388607
        %v2294 = vor.u32 %v2293, 8388608
        %v2295 = vsub.s32 0, %v2294
        %v2296 = vadd.s32 %v2291, 1
        %vm2297 = vcmp.gt.s32.totalorder %v2296, 0
        %v2298 = vsel %vm2297, %v2296, 0
        %v2299 = vshrl.u32 %v2298, 5
        %v2300 = vand.u32 %v2298, 31
        %v2301 = vsub.s32 32, %v2300
        %v2302 = vshrl.u32 683565275, %v2301
        %v2303 = vshll.u32 683565275, %v2300
        %v2304 = vshrl.u32 2475754826, %v2301
        %v2305 = vor.u32 %v2303, %v2304
        %v2306 = vshll.u32 2475754826, %v2300
        %v2307 = vshrl.u32 2131351028, %v2301
        %v2308 = vor.u32 %v2306, %v2307
        %v2309 = vshll.u32 2131351028, %v2300
        %v2310 = vshrl.u32 2102212464, %v2301
        %v2311 = vor.u32 %v2309, %v2310
        %v2312 = vshll.u32 2102212464, %v2300
        %v2313 = vshrl.u32 920167782, %v2301
        %v2314 = vor.u32 %v2312, %v2313
        %v2315 = vshll.u32 920167782, %v2300
        %v2316 = vshrl.u32 1326507024, %v2301
        %v2317 = vor.u32 %v2315, %v2316
        %vm2318 = vcmp.lt.s32.totalorder %v2299, 1
        %vm2319 = vcmp.lt.s32.totalorder %v2299, 2
        %vm2320 = vcmp.lt.s32.totalorder %v2299, 3
        %vm2321 = vcmp.lt.s32.totalorder %v2299, 4
        %v2322 = vsel %vm2318, %v2302, %v2305
        %v2323 = vsel %vm2321, %v2311, 2102212464
        %v2324 = vsel %vm2320, %v2308, %v2323
        %v2325 = vsel %vm2319, %v2322, %v2324
        %v2326 = vsel %vm2318, %v2305, %v2308
        %v2327 = vsel %vm2321, %v2314, 920167782
        %v2328 = vsel %vm2320, %v2311, %v2327
        %v2329 = vsel %vm2319, %v2326, %v2328
        %v2330 = vsel %vm2318, %v2308, %v2311
        %v2331 = vsel %vm2321, %v2317, 1326507024
        %v2332 = vsel %vm2320, %v2314, %v2331
        %v2333 = vsel %vm2319, %v2330, %v2332
        %v2334 = vshll.u32 %v2294, 8
        %v2335 = vmul.u32.u64.compose %v2334, %v2333
        %v2336 = vextract.low.u32 %v2335
        %v2337 = vextract.high.u32 %v2335
        %v2338 = vmul.u32.u64.compose %v2334, %v2329
        %v2339 = vextract.low.u32 %v2338
        %v2340 = vextract.high.u32 %v2338
        %v2341 = vmul.u32 %v2334, %v2325
        %v2342 = vadd.s32 %v2337, %v2339
        %vm2343 = vc.u32 %v2337, %v2339
        %v2344 = vadd.s32 %v2340, 1
        %v2345 = vsel %vm2343, %v2344, %v2340
        %v2346 = vadd.s32 %v2341, %v2345
        %v2347 = vadd.s32 %v2346, 536870912
        %v2348 = vshrl.u32 %v2347, 30
        %v2349 = vshll.u32 %v2348, 30
        %v2350 = vsub.s32 %v2346, %v2349
        %vm2351 = vcmp.lt.s32.totalorder %v2350, 0
        %v2352 = vsub.s32 0, %v2350
        %v2353 = vsel %vm2351, %v2352, %v2350
        %v2354 = vclz %v2353
        %v2355 = vsub.s32 %v2354, 2
        %vm2356 = vcmp.gt.s32.totalorder 0, %v2355
        %v2357 = vsel %vm2356, 0, %v2355
        %v2358 = vsub.s32 32, %v2357
        %v2359 = vshll.u32 %v2350, %v2357
        %v2360 = vshrl.u32 %v2342, %v2358
        %v2361 = vor.u32 %v2359, %v2360
        %v2362 = vsub.s32 4294967266, %v2357
        %v2363 = vadd.s32 %v2362, 127
        %v2364 = vshll.u32 %v2363, 23
        %v2365 = vor.u32 4788187, %v2364
        %v2366 = vand.u32 2147483647, %v2365
        %v2368 = vcvt.s32.f32 %v2361
        %v2369 = vmul.f32 %v2368, %v2366
        %v2370 = vxor.u32 %v2369, 2147483648
        %v2371 = vsel %vm2288, %v2370, %v2369
        %v2372 = vsub.s32 4, %v2348
        %v2373 = vsel %vm2288, %v2372, %v2348
        %v2374 = vsel %vm2287, %v812, %v2371
        %v2375 = vsel %vm2287, 0, %v2373
        %v2376 = vcosq.f32.pop %v2374
        %v2377 = vsinq.f32.pop %v2374
        %vm2378 = vweird.f32 %v812
        %v2379 = vadd.s32 %v2375, 3
        %v2380 = vand.u32 %v2379, 3
        %vm2381 = vcmp.lt.s32.totalorder %v2380, 2
        %vm2382 = vcmp.eq.s32.totalorder %v2380, 0
        %v2383 = vxor.u32 %v2377, 2147483648
        %v2384 = vsel %vm2382, %v2376, %v2383
        %vm2385 = vcmp.eq.s32.totalorder %v2380, 2
        %v2386 = vxor.u32 %v2376, 2147483648
        %v2387 = vsel %vm2385, %v2386, %v2377
        %v2388 = vsel %vm2381, %v2384, %v2387
        %v2389 = vsel %vm2378, nan, %v2388
        %v2390 = vand.u32 2147483647, %v813
        %vm2391 = vcmp.le.f32.partialorder %v2390, 0.7853982
        %vm2392 = vcmp.lt.s32.totalorder %v813, 0
        %v2393 = vand.u32 %v813, 2139095040
        %v2394 = vshrl.u32 %v2393, 23
        %v2395 = vsub.s32 %v2394, 127
        %v2396 = vand.u32 2147483647, %v813
        %v2397 = vand.u32 %v2396, 8388607
        %v2398 = vor.u32 %v2397, 8388608
        %v2399 = vsub.s32 0, %v2398
        %v2400 = vadd.s32 %v2395, 1
        %vm2401 = vcmp.gt.s32.totalorder %v2400, 0
        %v2402 = vsel %vm2401, %v2400, 0
        %v2403 = vshrl.u32 %v2402, 5
        %v2404 = vand.u32 %v2402, 31
        %v2405 = vsub.s32 32, %v2404
        %v2406 = vshrl.u32 683565275, %v2405
        %v2407 = vshll.u32 683565275, %v2404
        %v2408 = vshrl.u32 2475754826, %v2405
        %v2409 = vor.u32 %v2407, %v2408
        %v2410 = vshll.u32 2475754826, %v2404
        %v2411 = vshrl.u32 2131351028, %v2405
        %v2412 = vor.u32 %v2410, %v2411
        %v2413 = vshll.u32 2131351028, %v2404
        %v2414 = vshrl.u32 2102212464, %v2405
        %v2415 = vor.u32 %v2413, %v2414
        %v2416 = vshll.u32 2102212464, %v2404
        %v2417 = vshrl.u32 920167782, %v2405
        %v2418 = vor.u32 %v2416, %v2417
        %v2419 = vshll.u32 920167782, %v2404
        %v2420 = vshrl.u32 1326507024, %v2405
        %v2421 = vor.u32 %v2419, %v2420
        %vm2422 = vcmp.lt.s32.totalorder %v2403, 1
        %vm2423 = vcmp.lt.s32.totalorder %v2403, 2
        %vm2424 = vcmp.lt.s32.totalorder %v2403, 3
        %vm2425 = vcmp.lt.s32.totalorder %v2403, 4
        %v2426 = vsel %vm2422, %v2406, %v2409
        %v2427 = vsel %vm2425, %v2415, 2102212464
        %v2428 = vsel %vm2424, %v2412, %v2427
        %v2429 = vsel %vm2423, %v2426, %v2428
        %v2430 = vsel %vm2422, %v2409, %v2412
        %v2431 = vsel %vm2425, %v2418, 920167782
        %v2432 = vsel %vm2424, %v2415, %v2431
        %v2433 = vsel %vm2423, %v2430, %v2432
        %v2434 = vsel %vm2422, %v2412, %v2415
        %v2435 = vsel %vm2425, %v2421, 1326507024
        %v2436 = vsel %vm2424, %v2418, %v2435
        %v2437 = vsel %vm2423, %v2434, %v2436
        %v2438 = vshll.u32 %v2398, 8
        %v2439 = vmul.u32.u64.compose %v2438, %v2437
        %v2440 = vextract.low.u32 %v2439
        %v2441 = vextract.high.u32 %v2439
        %v2442 = vmul.u32.u64.compose %v2438, %v2433
        %v2443 = vextract.low.u32 %v2442
        %v2444 = vextract.high.u32 %v2442
        %v2445 = vmul.u32 %v2438, %v2429
        %v2446 = vadd.s32 %v2441, %v2443
        %vm2447 = vc.u32 %v2441, %v2443
        %v2448 = vadd.s32 %v2444, 1
        %v2449 = vsel %vm2447, %v2448, %v2444
        %v2450 = vadd.s32 %v2445, %v2449
        %v2451 = vadd.s32 %v2450, 536870912
        %v2452 = vshrl.u32 %v2451, 30
        %v2453 = vshll.u32 %v2452, 30
        %v2454 = vsub.s32 %v2450, %v2453
        %vm2455 = vcmp.lt.s32.totalorder %v2454, 0
        %v2456 = vsub.s32 0, %v2454
        %v2457 = vsel %vm2455, %v2456, %v2454
        %v2458 = vclz %v2457
        %v2459 = vsub.s32 %v2458, 2
        %vm2460 = vcmp.gt.s32.totalorder 0, %v2459
        %v2461 = vsel %vm2460, 0, %v2459
        %v2462 = vsub.s32 32, %v2461
        %v2463 = vshll.u32 %v2454, %v2461
        %v2464 = vshrl.u32 %v2446, %v2462
        %v2465 = vor.u32 %v2463, %v2464
        %v2466 = vsub.s32 4294967266, %v2461
        %v2467 = vadd.s32 %v2466, 127
        %v2468 = vshll.u32 %v2467, 23
        %v2469 = vor.u32 4788187, %v2468
        %v2470 = vand.u32 2147483647, %v2469
        %v2472 = vcvt.s32.f32 %v2465
        %v2473 = vmul.f32 %v2472, %v2470
        %v2474 = vxor.u32 %v2473, 2147483648
        %v2475 = vsel %vm2392, %v2474, %v2473
        %v2476 = vsub.s32 4, %v2452
        %v2477 = vsel %vm2392, %v2476, %v2452
        %v2478 = vsel %vm2391, %v813, %v2475
        %v2479 = vsel %vm2391, 0, %v2477
        %v2480 = vcosq.f32.pop %v2478
        %v2481 = vsinq.f32.pop %v2478
        %vm2482 = vweird.f32 %v813
        %v2483 = vadd.s32 %v2479, 3
        %v2484 = vand.u32 %v2483, 3
        %vm2485 = vcmp.lt.s32.totalorder %v2484, 2
        %vm2486 = vcmp.eq.s32.totalorder %v2484, 0
        %v2487 = vxor.u32 %v2481, 2147483648
        %v2488 = vsel %vm2486, %v2480, %v2487
        %vm2489 = vcmp.eq.s32.totalorder %v2484, 2
        %v2490 = vxor.u32 %v2480, 2147483648
        %v2491 = vsel %vm2489, %v2490, %v2481
        %v2492 = vsel %vm2485, %v2488, %v2491
        %v2493 = vsel %vm2482, nan, %v2492
        %v2494 = vand.u32 2147483647, %v814
        %vm2495 = vcmp.le.f32.partialorder %v2494, 0.7853982
        %vm2496 = vcmp.lt.s32.totalorder %v814, 0
        %v2497 = vand.u32 %v814, 2139095040
        %v2498 = vshrl.u32 %v2497, 23
        %v2499 = vsub.s32 %v2498, 127
        %v2500 = vand.u32 2147483647, %v814
        %v2501 = vand.u32 %v2500, 8388607
        %v2502 = vor.u32 %v2501, 8388608
        %v2503 = vsub.s32 0, %v2502
        %v2504 = vadd.s32 %v2499, 1
        %vm2505 = vcmp.gt.s32.totalorder %v2504, 0
        %v2506 = vsel %vm2505, %v2504, 0
        %v2507 = vshrl.u32 %v2506, 5
        %v2508 = vand.u32 %v2506, 31
        %v2509 = vsub.s32 32, %v2508
        %v2510 = vshrl.u32 683565275, %v2509
        %v2511 = vshll.u32 683565275, %v2508
        %v2512 = vshrl.u32 2475754826, %v2509
        %v2513 = vor.u32 %v2511, %v2512
        %v2514 = vshll.u32 2475754826, %v2508
        %v2515 = vshrl.u32 2131351028, %v2509
        %v2516 = vor.u32 %v2514, %v2515
        %v2517 = vshll.u32 2131351028, %v2508
        %v2518 = vshrl.u32 2102212464, %v2509
        %v2519 = vor.u32 %v2517, %v2518
        %v2520 = vshll.u32 2102212464, %v2508
        %v2521 = vshrl.u32 920167782, %v2509
        %v2522 = vor.u32 %v2520, %v2521
        %v2523 = vshll.u32 920167782, %v2508
        %v2524 = vshrl.u32 1326507024, %v2509
        %v2525 = vor.u32 %v2523, %v2524
        %vm2526 = vcmp.lt.s32.totalorder %v2507, 1
        %vm2527 = vcmp.lt.s32.totalorder %v2507, 2
        %vm2528 = vcmp.lt.s32.totalorder %v2507, 3
        %vm2529 = vcmp.lt.s32.totalorder %v2507, 4
        %v2530 = vsel %vm2526, %v2510, %v2513
        %v2531 = vsel %vm2529, %v2519, 2102212464
        %v2532 = vsel %vm2528, %v2516, %v2531
        %v2533 = vsel %vm2527, %v2530, %v2532
        %v2534 = vsel %vm2526, %v2513, %v2516
        %v2535 = vsel %vm2529, %v2522, 920167782
        %v2536 = vsel %vm2528, %v2519, %v2535
        %v2537 = vsel %vm2527, %v2534, %v2536
        %v2538 = vsel %vm2526, %v2516, %v2519
        %v2539 = vsel %vm2529, %v2525, 1326507024
        %v2540 = vsel %vm2528, %v2522, %v2539
        %v2541 = vsel %vm2527, %v2538, %v2540
        %v2542 = vshll.u32 %v2502, 8
        %v2543 = vmul.u32.u64.compose %v2542, %v2541
        %v2544 = vextract.low.u32 %v2543
        %v2545 = vextract.high.u32 %v2543
        %v2546 = vmul.u32.u64.compose %v2542, %v2537
        %v2547 = vextract.low.u32 %v2546
        %v2548 = vextract.high.u32 %v2546
        %v2549 = vmul.u32 %v2542, %v2533
        %v2550 = vadd.s32 %v2545, %v2547
        %vm2551 = vc.u32 %v2545, %v2547
        %v2552 = vadd.s32 %v2548, 1
        %v2553 = vsel %vm2551, %v2552, %v2548
        %v2554 = vadd.s32 %v2549, %v2553
        %v2555 = vadd.s32 %v2554, 536870912
        %v2556 = vshrl.u32 %v2555, 30
        %v2557 = vshll.u32 %v2556, 30
        %v2558 = vsub.s32 %v2554, %v2557
        %vm2559 = vcmp.lt.s32.totalorder %v2558, 0
        %v2560 = vsub.s32 0, %v2558
        %v2561 = vsel %vm2559, %v2560, %v2558
        %v2562 = vclz %v2561
        %v2563 = vsub.s32 %v2562, 2
        %vm2564 = vcmp.gt.s32.totalorder 0, %v2563
        %v2565 = vsel %vm2564, 0, %v2563
        %v2566 = vsub.s32 32, %v2565
        %v2567 = vshll.u32 %v2558, %v2565
        %v2568 = vshrl.u32 %v2550, %v2566
        %v2569 = vor.u32 %v2567, %v2568
        %v2570 = vsub.s32 4294967266, %v2565
        %v2571 = vadd.s32 %v2570, 127
        %v2572 = vshll.u32 %v2571, 23
        %v2573 = vor.u32 4788187, %v2572
        %v2574 = vand.u32 2147483647, %v2573
        %v2576 = vcvt.s32.f32 %v2569
        %v2577 = vmul.f32 %v2576, %v2574
        %v2578 = vxor.u32 %v2577, 2147483648
        %v2579 = vsel %vm2496, %v2578, %v2577
        %v2580 = vsub.s32 4, %v2556
        %v2581 = vsel %vm2496, %v2580, %v2556
        %v2582 = vsel %vm2495, %v814, %v2579
        %v2583 = vsel %vm2495, 0, %v2581
        %v2584 = vcosq.f32.pop %v2582
        %v2585 = vsinq.f32.pop %v2582
        %vm2586 = vweird.f32 %v814
        %v2587 = vadd.s32 %v2583, 3
        %v2588 = vand.u32 %v2587, 3
        %vm2589 = vcmp.lt.s32.totalorder %v2588, 2
        %vm2590 = vcmp.eq.s32.totalorder %v2588, 0
        %v2591 = vxor.u32 %v2585, 2147483648
        %v2592 = vsel %vm2590, %v2584, %v2591
        %vm2593 = vcmp.eq.s32.totalorder %v2588, 2
        %v2594 = vxor.u32 %v2584, 2147483648
        %v2595 = vsel %vm2593, %v2594, %v2585
        %v2596 = vsel %vm2589, %v2592, %v2595
        %v2597 = vsel %vm2586, nan, %v2596
        %v2598 = vand.u32 2147483647, %v815
        %vm2599 = vcmp.le.f32.partialorder %v2598, 0.7853982
        %vm2600 = vcmp.lt.s32.totalorder %v815, 0
        %v2601 = vand.u32 %v815, 2139095040
        %v2602 = vshrl.u32 %v2601, 23
        %v2603 = vsub.s32 %v2602, 127
        %v2604 = vand.u32 2147483647, %v815
        %v2605 = vand.u32 %v2604, 8388607
        %v2606 = vor.u32 %v2605, 8388608
        %v2607 = vsub.s32 0, %v2606
        %v2608 = vadd.s32 %v2603, 1
        %vm2609 = vcmp.gt.s32.totalorder %v2608, 0
        %v2610 = vsel %vm2609, %v2608, 0
        %v2611 = vshrl.u32 %v2610, 5
        %v2612 = vand.u32 %v2610, 31
        %v2613 = vsub.s32 32, %v2612
        %v2614 = vshrl.u32 683565275, %v2613
        %v2615 = vshll.u32 683565275, %v2612
        %v2616 = vshrl.u32 2475754826, %v2613
        %v2617 = vor.u32 %v2615, %v2616
        %v2618 = vshll.u32 2475754826, %v2612
        %v2619 = vshrl.u32 2131351028, %v2613
        %v2620 = vor.u32 %v2618, %v2619
        %v2621 = vshll.u32 2131351028, %v2612
        %v2622 = vshrl.u32 2102212464, %v2613
        %v2623 = vor.u32 %v2621, %v2622
        %v2624 = vshll.u32 2102212464, %v2612
        %v2625 = vshrl.u32 920167782, %v2613
        %v2626 = vor.u32 %v2624, %v2625
        %v2627 = vshll.u32 920167782, %v2612
        %v2628 = vshrl.u32 1326507024, %v2613
        %v2629 = vor.u32 %v2627, %v2628
        %vm2630 = vcmp.lt.s32.totalorder %v2611, 1
        %vm2631 = vcmp.lt.s32.totalorder %v2611, 2
        %vm2632 = vcmp.lt.s32.totalorder %v2611, 3
        %vm2633 = vcmp.lt.s32.totalorder %v2611, 4
        %v2634 = vsel %vm2630, %v2614, %v2617
        %v2635 = vsel %vm2633, %v2623, 2102212464
        %v2636 = vsel %vm2632, %v2620, %v2635
        %v2637 = vsel %vm2631, %v2634, %v2636
        %v2638 = vsel %vm2630, %v2617, %v2620
        %v2639 = vsel %vm2633, %v2626, 920167782
        %v2640 = vsel %vm2632, %v2623, %v2639
        %v2641 = vsel %vm2631, %v2638, %v2640
        %v2642 = vsel %vm2630, %v2620, %v2623
        %v2643 = vsel %vm2633, %v2629, 1326507024
        %v2644 = vsel %vm2632, %v2626, %v2643
        %v2645 = vsel %vm2631, %v2642, %v2644
        %v2646 = vshll.u32 %v2606, 8
        %v2647 = vmul.u32.u64.compose %v2646, %v2645
        %v2648 = vextract.low.u32 %v2647
        %v2649 = vextract.high.u32 %v2647
        %v2650 = vmul.u32.u64.compose %v2646, %v2641
        %v2651 = vextract.low.u32 %v2650
        %v2652 = vextract.high.u32 %v2650
        %v2653 = vmul.u32 %v2646, %v2637
        %v2654 = vadd.s32 %v2649, %v2651
        %vm2655 = vc.u32 %v2649, %v2651
        %v2656 = vadd.s32 %v2652, 1
        %v2657 = vsel %vm2655, %v2656, %v2652
        %v2658 = vadd.s32 %v2653, %v2657
        %v2659 = vadd.s32 %v2658, 536870912
        %v2660 = vshrl.u32 %v2659, 30
        %v2661 = vshll.u32 %v2660, 30
        %v2662 = vsub.s32 %v2658, %v2661
        %vm2663 = vcmp.lt.s32.totalorder %v2662, 0
        %v2664 = vsub.s32 0, %v2662
        %v2665 = vsel %vm2663, %v2664, %v2662
        %v2666 = vclz %v2665
        %v2667 = vsub.s32 %v2666, 2
        %vm2668 = vcmp.gt.s32.totalorder 0, %v2667
        %v2669 = vsel %vm2668, 0, %v2667
        %v2670 = vsub.s32 32, %v2669
        %v2671 = vshll.u32 %v2662, %v2669
        %v2672 = vshrl.u32 %v2654, %v2670
        %v2673 = vor.u32 %v2671, %v2672
        %v2674 = vsub.s32 4294967266, %v2669
        %v2675 = vadd.s32 %v2674, 127
        %v2676 = vshll.u32 %v2675, 23
        %v2677 = vor.u32 4788187, %v2676
        %v2678 = vand.u32 2147483647, %v2677
        %v2680 = vcvt.s32.f32 %v2673
        %v2681 = vmul.f32 %v2680, %v2678
        %v2682 = vxor.u32 %v2681, 2147483648
        %v2683 = vsel %vm2600, %v2682, %v2681
        %v2684 = vsub.s32 4, %v2660
        %v2685 = vsel %vm2600, %v2684, %v2660
        %v2686 = vsel %vm2599, %v815, %v2683
        %v2687 = vsel %vm2599, 0, %v2685
        %v2688 = vcosq.f32.pop %v2686
        %v2689 = vsinq.f32.pop %v2686
        %vm2690 = vweird.f32 %v815
        %v2691 = vadd.s32 %v2687, 3
        %v2692 = vand.u32 %v2691, 3
        %vm2693 = vcmp.lt.s32.totalorder %v2692, 2
        %vm2694 = vcmp.eq.s32.totalorder %v2692, 0
        %v2695 = vxor.u32 %v2689, 2147483648
        %v2696 = vsel %vm2694, %v2688, %v2695
        %vm2697 = vcmp.eq.s32.totalorder %v2692, 2
        %v2698 = vxor.u32 %v2688, 2147483648
        %v2699 = vsel %vm2697, %v2698, %v2689
        %v2700 = vsel %vm2693, %v2696, %v2699
        %v2701 = vsel %vm2690, nan, %v2700
        %v2702 = vand.u32 2147483647, %v816
        %vm2703 = vcmp.le.f32.partialorder %v2702, 0.7853982
        %vm2704 = vcmp.lt.s32.totalorder %v816, 0
        %v2705 = vand.u32 %v816, 2139095040
        %v2706 = vshrl.u32 %v2705, 23
        %v2707 = vsub.s32 %v2706, 127
        %v2708 = vand.u32 2147483647, %v816
        %v2709 = vand.u32 %v2708, 8388607
        %v2710 = vor.u32 %v2709, 8388608
        %v2711 = vsub.s32 0, %v2710
        %v2712 = vadd.s32 %v2707, 1
        %vm2713 = vcmp.gt.s32.totalorder %v2712, 0
        %v2714 = vsel %vm2713, %v2712, 0
        %v2715 = vshrl.u32 %v2714, 5
        %v2716 = vand.u32 %v2714, 31
        %v2717 = vsub.s32 32, %v2716
        %v2718 = vshrl.u32 683565275, %v2717
        %v2719 = vshll.u32 683565275, %v2716
        %v2720 = vshrl.u32 2475754826, %v2717
        %v2721 = vor.u32 %v2719, %v2720
        %v2722 = vshll.u32 2475754826, %v2716
        %v2723 = vshrl.u32 2131351028, %v2717
        %v2724 = vor.u32 %v2722, %v2723
        %v2725 = vshll.u32 2131351028, %v2716
        %v2726 = vshrl.u32 2102212464, %v2717
        %v2727 = vor.u32 %v2725, %v2726
        %v2728 = vshll.u32 2102212464, %v2716
        %v2729 = vshrl.u32 920167782, %v2717
        %v2730 = vor.u32 %v2728, %v2729
        %v2731 = vshll.u32 920167782, %v2716
        %v2732 = vshrl.u32 1326507024, %v2717
        %v2733 = vor.u32 %v2731, %v2732
        %vm2734 = vcmp.lt.s32.totalorder %v2715, 1
        %vm2735 = vcmp.lt.s32.totalorder %v2715, 2
        %vm2736 = vcmp.lt.s32.totalorder %v2715, 3
        %vm2737 = vcmp.lt.s32.totalorder %v2715, 4
        %v2738 = vsel %vm2734, %v2718, %v2721
        %v2739 = vsel %vm2737, %v2727, 2102212464
        %v2740 = vsel %vm2736, %v2724, %v2739
        %v2741 = vsel %vm2735, %v2738, %v2740
        %v2742 = vsel %vm2734, %v2721, %v2724
        %v2743 = vsel %vm2737, %v2730, 920167782
        %v2744 = vsel %vm2736, %v2727, %v2743
        %v2745 = vsel %vm2735, %v2742, %v2744
        %v2746 = vsel %vm2734, %v2724, %v2727
        %v2747 = vsel %vm2737, %v2733, 1326507024
        %v2748 = vsel %vm2736, %v2730, %v2747
        %v2749 = vsel %vm2735, %v2746, %v2748
        %v2750 = vshll.u32 %v2710, 8
        %v2751 = vmul.u32.u64.compose %v2750, %v2749
        %v2752 = vextract.low.u32 %v2751
        %v2753 = vextract.high.u32 %v2751
        %v2754 = vmul.u32.u64.compose %v2750, %v2745
        %v2755 = vextract.low.u32 %v2754
        %v2756 = vextract.high.u32 %v2754
        %v2757 = vmul.u32 %v2750, %v2741
        %v2758 = vadd.s32 %v2753, %v2755
        %vm2759 = vc.u32 %v2753, %v2755
        %v2760 = vadd.s32 %v2756, 1
        %v2761 = vsel %vm2759, %v2760, %v2756
        %v2762 = vadd.s32 %v2757, %v2761
        %v2763 = vadd.s32 %v2762, 536870912
        %v2764 = vshrl.u32 %v2763, 30
        %v2765 = vshll.u32 %v2764, 30
        %v2766 = vsub.s32 %v2762, %v2765
        %vm2767 = vcmp.lt.s32.totalorder %v2766, 0
        %v2768 = vsub.s32 0, %v2766
        %v2769 = vsel %vm2767, %v2768, %v2766
        %v2770 = vclz %v2769
        %v2771 = vsub.s32 %v2770, 2
        %vm2772 = vcmp.gt.s32.totalorder 0, %v2771
        %v2773 = vsel %vm2772, 0, %v2771
        %v2774 = vsub.s32 32, %v2773
        %v2775 = vshll.u32 %v2766, %v2773
        %v2776 = vshrl.u32 %v2758, %v2774
        %v2777 = vor.u32 %v2775, %v2776
        %v2778 = vsub.s32 4294967266, %v2773
        %v2779 = vadd.s32 %v2778, 127
        %v2780 = vshll.u32 %v2779, 23
        %v2781 = vor.u32 4788187, %v2780
        %v2782 = vand.u32 2147483647, %v2781
        %v2784 = vcvt.s32.f32 %v2777
        %v2785 = vmul.f32 %v2784, %v2782
        %v2786 = vxor.u32 %v2785, 2147483648
        %v2787 = vsel %vm2704, %v2786, %v2785
        %v2788 = vsub.s32 4, %v2764
        %v2789 = vsel %vm2704, %v2788, %v2764
        %v2790 = vsel %vm2703, %v816, %v2787
        %v2791 = vsel %vm2703, 0, %v2789
        %v2792 = vcosq.f32.pop %v2790
        %v2793 = vsinq.f32.pop %v2790
        %vm2794 = vweird.f32 %v816
        %v2795 = vadd.s32 %v2791, 3
        %v2796 = vand.u32 %v2795, 3
        %vm2797 = vcmp.lt.s32.totalorder %v2796, 2
        %vm2798 = vcmp.eq.s32.totalorder %v2796, 0
        %v2799 = vxor.u32 %v2793, 2147483648
        %v2800 = vsel %vm2798, %v2792, %v2799
        %vm2801 = vcmp.eq.s32.totalorder %v2796, 2
        %v2802 = vxor.u32 %v2792, 2147483648
        %v2803 = vsel %vm2801, %v2802, %v2793
        %v2804 = vsel %vm2797, %v2800, %v2803
        %v2805 = vsel %vm2794, nan, %v2804
        %v2806 = vand.u32 2147483647, %v817
        %vm2807 = vcmp.le.f32.partialorder %v2806, 0.7853982
        %vm2808 = vcmp.lt.s32.totalorder %v817, 0
        %v2809 = vand.u32 %v817, 2139095040
        %v2810 = vshrl.u32 %v2809, 23
        %v2811 = vsub.s32 %v2810, 127
        %v2812 = vand.u32 2147483647, %v817
        %v2813 = vand.u32 %v2812, 8388607
        %v2814 = vor.u32 %v2813, 8388608
        %v2815 = vsub.s32 0, %v2814
        %v2816 = vadd.s32 %v2811, 1
        %vm2817 = vcmp.gt.s32.totalorder %v2816, 0
        %v2818 = vsel %vm2817, %v2816, 0
        %v2819 = vshrl.u32 %v2818, 5
        %v2820 = vand.u32 %v2818, 31
        %v2821 = vsub.s32 32, %v2820
        %v2822 = vshrl.u32 683565275, %v2821
        %v2823 = vshll.u32 683565275, %v2820
        %v2824 = vshrl.u32 2475754826, %v2821
        %v2825 = vor.u32 %v2823, %v2824
        %v2826 = vshll.u32 2475754826, %v2820
        %v2827 = vshrl.u32 2131351028, %v2821
        %v2828 = vor.u32 %v2826, %v2827
        %v2829 = vshll.u32 2131351028, %v2820
        %v2830 = vshrl.u32 2102212464, %v2821
        %v2831 = vor.u32 %v2829, %v2830
        %v2832 = vshll.u32 2102212464, %v2820
        %v2833 = vshrl.u32 920167782, %v2821
        %v2834 = vor.u32 %v2832, %v2833
        %v2835 = vshll.u32 920167782, %v2820
        %v2836 = vshrl.u32 1326507024, %v2821
        %v2837 = vor.u32 %v2835, %v2836
        %vm2838 = vcmp.lt.s32.totalorder %v2819, 1
        %vm2839 = vcmp.lt.s32.totalorder %v2819, 2
        %vm2840 = vcmp.lt.s32.totalorder %v2819, 3
        %vm2841 = vcmp.lt.s32.totalorder %v2819, 4
        %v2842 = vsel %vm2838, %v2822, %v2825
        %v2843 = vsel %vm2841, %v2831, 2102212464
        %v2844 = vsel %vm2840, %v2828, %v2843
        %v2845 = vsel %vm2839, %v2842, %v2844
        %v2846 = vsel %vm2838, %v2825, %v2828
        %v2847 = vsel %vm2841, %v2834, 920167782
        %v2848 = vsel %vm2840, %v2831, %v2847
        %v2849 = vsel %vm2839, %v2846, %v2848
        %v2850 = vsel %vm2838, %v2828, %v2831
        %v2851 = vsel %vm2841, %v2837, 1326507024
        %v2852 = vsel %vm2840, %v2834, %v2851
        %v2853 = vsel %vm2839, %v2850, %v2852
        %v2854 = vshll.u32 %v2814, 8
        %v2855 = vmul.u32.u64.compose %v2854, %v2853
        %v2856 = vextract.low.u32 %v2855
        %v2857 = vextract.high.u32 %v2855
        %v2858 = vmul.u32.u64.compose %v2854, %v2849
        %v2859 = vextract.low.u32 %v2858
        %v2860 = vextract.high.u32 %v2858
        %v2861 = vmul.u32 %v2854, %v2845
        %v2862 = vadd.s32 %v2857, %v2859
        %vm2863 = vc.u32 %v2857, %v2859
        %v2864 = vadd.s32 %v2860, 1
        %v2865 = vsel %vm2863, %v2864, %v2860
        %v2866 = vadd.s32 %v2861, %v2865
        %v2867 = vadd.s32 %v2866, 536870912
        %v2868 = vshrl.u32 %v2867, 30
        %v2869 = vshll.u32 %v2868, 30
        %v2870 = vsub.s32 %v2866, %v2869
        %vm2871 = vcmp.lt.s32.totalorder %v2870, 0
        %v2872 = vsub.s32 0, %v2870
        %v2873 = vsel %vm2871, %v2872, %v2870
        %v2874 = vclz %v2873
        %v2875 = vsub.s32 %v2874, 2
        %vm2876 = vcmp.gt.s32.totalorder 0, %v2875
        %v2877 = vsel %vm2876, 0, %v2875
        %v2878 = vsub.s32 32, %v2877
        %v2879 = vshll.u32 %v2870, %v2877
        %v2880 = vshrl.u32 %v2862, %v2878
        %v2881 = vor.u32 %v2879, %v2880
        %v2882 = vsub.s32 4294967266, %v2877
        %v2883 = vadd.s32 %v2882, 127
        %v2884 = vshll.u32 %v2883, 23
        %v2885 = vor.u32 4788187, %v2884
        %v2886 = vand.u32 2147483647, %v2885
        %v2888 = vcvt.s32.f32 %v2881
        %v2889 = vmul.f32 %v2888, %v2886
        %v2890 = vxor.u32 %v2889, 2147483648
        %v2891 = vsel %vm2808, %v2890, %v2889
        %v2892 = vsub.s32 4, %v2868
        %v2893 = vsel %vm2808, %v2892, %v2868
        %v2894 = vsel %vm2807, %v817, %v2891
        %v2895 = vsel %vm2807, 0, %v2893
        %v2896 = vcosq.f32.pop %v2894
        %v2897 = vsinq.f32.pop %v2894
        %vm2898 = vweird.f32 %v817
        %v2899 = vadd.s32 %v2895, 3
        %v2900 = vand.u32 %v2899, 3
        %vm2901 = vcmp.lt.s32.totalorder %v2900, 2
        %vm2902 = vcmp.eq.s32.totalorder %v2900, 0
        %v2903 = vxor.u32 %v2897, 2147483648
        %v2904 = vsel %vm2902, %v2896, %v2903
        %vm2905 = vcmp.eq.s32.totalorder %v2900, 2
        %v2906 = vxor.u32 %v2896, 2147483648
        %v2907 = vsel %vm2905, %v2906, %v2897
        %v2908 = vsel %vm2901, %v2904, %v2907
        %v2909 = vsel %vm2898, nan, %v2908
        %v2910 = vand.u32 2147483647, %v818
        %vm2911 = vcmp.le.f32.partialorder %v2910, 0.7853982
        %vm2912 = vcmp.lt.s32.totalorder %v818, 0
        %v2913 = vand.u32 %v818, 2139095040
        %v2914 = vshrl.u32 %v2913, 23
        %v2915 = vsub.s32 %v2914, 127
        %v2916 = vand.u32 2147483647, %v818
        %v2917 = vand.u32 %v2916, 8388607
        %v2918 = vor.u32 %v2917, 8388608
        %v2919 = vsub.s32 0, %v2918
        %v2920 = vadd.s32 %v2915, 1
        %vm2921 = vcmp.gt.s32.totalorder %v2920, 0
        %v2922 = vsel %vm2921, %v2920, 0
        %v2923 = vshrl.u32 %v2922, 5
        %v2924 = vand.u32 %v2922, 31
        %v2925 = vsub.s32 32, %v2924
        %v2926 = vshrl.u32 683565275, %v2925
        %v2927 = vshll.u32 683565275, %v2924
        %v2928 = vshrl.u32 2475754826, %v2925
        %v2929 = vor.u32 %v2927, %v2928
        %v2930 = vshll.u32 2475754826, %v2924
        %v2931 = vshrl.u32 2131351028, %v2925
        %v2932 = vor.u32 %v2930, %v2931
        %v2933 = vshll.u32 2131351028, %v2924
        %v2934 = vshrl.u32 2102212464, %v2925
        %v2935 = vor.u32 %v2933, %v2934
        %v2936 = vshll.u32 2102212464, %v2924
        %v2937 = vshrl.u32 920167782, %v2925
        %v2938 = vor.u32 %v2936, %v2937
        %v2939 = vshll.u32 920167782, %v2924
        %v2940 = vshrl.u32 1326507024, %v2925
        %v2941 = vor.u32 %v2939, %v2940
        %vm2942 = vcmp.lt.s32.totalorder %v2923, 1
        %vm2943 = vcmp.lt.s32.totalorder %v2923, 2
        %vm2944 = vcmp.lt.s32.totalorder %v2923, 3
        %vm2945 = vcmp.lt.s32.totalorder %v2923, 4
        %v2946 = vsel %vm2942, %v2926, %v2929
        %v2947 = vsel %vm2945, %v2935, 2102212464
        %v2948 = vsel %vm2944, %v2932, %v2947
        %v2949 = vsel %vm2943, %v2946, %v2948
        %v2950 = vsel %vm2942, %v2929, %v2932
        %v2951 = vsel %vm2945, %v2938, 920167782
        %v2952 = vsel %vm2944, %v2935, %v2951
        %v2953 = vsel %vm2943, %v2950, %v2952
        %v2954 = vsel %vm2942, %v2932, %v2935
        %v2955 = vsel %vm2945, %v2941, 1326507024
        %v2956 = vsel %vm2944, %v2938, %v2955
        %v2957 = vsel %vm2943, %v2954, %v2956
        %v2958 = vshll.u32 %v2918, 8
        %v2959 = vmul.u32.u64.compose %v2958, %v2957
        %v2960 = vextract.low.u32 %v2959
        %v2961 = vextract.high.u32 %v2959
        %v2962 = vmul.u32.u64.compose %v2958, %v2953
        %v2963 = vextract.low.u32 %v2962
        %v2964 = vextract.high.u32 %v2962
        %v2965 = vmul.u32 %v2958, %v2949
        %v2966 = vadd.s32 %v2961, %v2963
        %vm2967 = vc.u32 %v2961, %v2963
        %v2968 = vadd.s32 %v2964, 1
        %v2969 = vsel %vm2967, %v2968, %v2964
        %v2970 = vadd.s32 %v2965, %v2969
        %v2971 = vadd.s32 %v2970, 536870912
        %v2972 = vshrl.u32 %v2971, 30
        %v2973 = vshll.u32 %v2972, 30
        %v2974 = vsub.s32 %v2970, %v2973
        %vm2975 = vcmp.lt.s32.totalorder %v2974, 0
        %v2976 = vsub.s32 0, %v2974
        %v2977 = vsel %vm2975, %v2976, %v2974
        %v2978 = vclz %v2977
        %v2979 = vsub.s32 %v2978, 2
        %vm2980 = vcmp.gt.s32.totalorder 0, %v2979
        %v2981 = vsel %vm2980, 0, %v2979
        %v2982 = vsub.s32 32, %v2981
        %v2983 = vshll.u32 %v2974, %v2981
        %v2984 = vshrl.u32 %v2966, %v2982
        %v2985 = vor.u32 %v2983, %v2984
        %v2986 = vsub.s32 4294967266, %v2981
        %v2987 = vadd.s32 %v2986, 127
        %v2988 = vshll.u32 %v2987, 23
        %v2989 = vor.u32 4788187, %v2988
        %v2990 = vand.u32 2147483647, %v2989
        %v2992 = vcvt.s32.f32 %v2985
        %v2993 = vmul.f32 %v2992, %v2990
        %v2994 = vxor.u32 %v2993, 2147483648
        %v2995 = vsel %vm2912, %v2994, %v2993
        %v2996 = vsub.s32 4, %v2972
        %v2997 = vsel %vm2912, %v2996, %v2972
        %v2998 = vsel %vm2911, %v818, %v2995
        %v2999 = vsel %vm2911, 0, %v2997
        %v3000 = vcosq.f32.pop %v2998
        %v3001 = vsinq.f32.pop %v2998
        %vm3002 = vweird.f32 %v818
        %v3003 = vadd.s32 %v2999, 3
        %v3004 = vand.u32 %v3003, 3
        %vm3005 = vcmp.lt.s32.totalorder %v3004, 2
        %vm3006 = vcmp.eq.s32.totalorder %v3004, 0
        %v3007 = vxor.u32 %v3001, 2147483648
        %v3008 = vsel %vm3006, %v3000, %v3007
        %vm3009 = vcmp.eq.s32.totalorder %v3004, 2
        %v3010 = vxor.u32 %v3000, 2147483648
        %v3011 = vsel %vm3009, %v3010, %v3001
        %v3012 = vsel %vm3005, %v3008, %v3011
        %v3013 = vsel %vm3002, nan, %v3012
        %v3014 = vand.u32 2147483647, %v819
        %vm3015 = vcmp.le.f32.partialorder %v3014, 0.7853982
        %vm3016 = vcmp.lt.s32.totalorder %v819, 0
        %v3017 = vand.u32 %v819, 2139095040
        %v3018 = vshrl.u32 %v3017, 23
        %v3019 = vsub.s32 %v3018, 127
        %v3020 = vand.u32 2147483647, %v819
        %v3021 = vand.u32 %v3020, 8388607
        %v3022 = vor.u32 %v3021, 8388608
        %v3023 = vsub.s32 0, %v3022
        %v3024 = vadd.s32 %v3019, 1
        %vm3025 = vcmp.gt.s32.totalorder %v3024, 0
        %v3026 = vsel %vm3025, %v3024, 0
        %v3027 = vshrl.u32 %v3026, 5
        %v3028 = vand.u32 %v3026, 31
        %v3029 = vsub.s32 32, %v3028
        %v3030 = vshrl.u32 683565275, %v3029
        %v3031 = vshll.u32 683565275, %v3028
        %v3032 = vshrl.u32 2475754826, %v3029
        %v3033 = vor.u32 %v3031, %v3032
        %v3034 = vshll.u32 2475754826, %v3028
        %v3035 = vshrl.u32 2131351028, %v3029
        %v3036 = vor.u32 %v3034, %v3035
        %v3037 = vshll.u32 2131351028, %v3028
        %v3038 = vshrl.u32 2102212464, %v3029
        %v3039 = vor.u32 %v3037, %v3038
        %v3040 = vshll.u32 2102212464, %v3028
        %v3041 = vshrl.u32 920167782, %v3029
        %v3042 = vor.u32 %v3040, %v3041
        %v3043 = vshll.u32 920167782, %v3028
        %v3044 = vshrl.u32 1326507024, %v3029
        %v3045 = vor.u32 %v3043, %v3044
        %vm3046 = vcmp.lt.s32.totalorder %v3027, 1
        %vm3047 = vcmp.lt.s32.totalorder %v3027, 2
        %vm3048 = vcmp.lt.s32.totalorder %v3027, 3
        %vm3049 = vcmp.lt.s32.totalorder %v3027, 4
        %v3050 = vsel %vm3046, %v3030, %v3033
        %v3051 = vsel %vm3049, %v3039, 2102212464
        %v3052 = vsel %vm3048, %v3036, %v3051
        %v3053 = vsel %vm3047, %v3050, %v3052
        %v3054 = vsel %vm3046, %v3033, %v3036
        %v3055 = vsel %vm3049, %v3042, 920167782
        %v3056 = vsel %vm3048, %v3039, %v3055
        %v3057 = vsel %vm3047, %v3054, %v3056
        %v3058 = vsel %vm3046, %v3036, %v3039
        %v3059 = vsel %vm3049, %v3045, 1326507024
        %v3060 = vsel %vm3048, %v3042, %v3059
        %v3061 = vsel %vm3047, %v3058, %v3060
        %v3062 = vshll.u32 %v3022, 8
        %v3063 = vmul.u32.u64.compose %v3062, %v3061
        %v3064 = vextract.low.u32 %v3063
        %v3065 = vextract.high.u32 %v3063
        %v3066 = vmul.u32.u64.compose %v3062, %v3057
        %v3067 = vextract.low.u32 %v3066
        %v3068 = vextract.high.u32 %v3066
        %v3069 = vmul.u32 %v3062, %v3053
        %v3070 = vadd.s32 %v3065, %v3067
        %vm3071 = vc.u32 %v3065, %v3067
        %v3072 = vadd.s32 %v3068, 1
        %v3073 = vsel %vm3071, %v3072, %v3068
        %v3074 = vadd.s32 %v3069, %v3073
        %v3075 = vadd.s32 %v3074, 536870912
        %v3076 = vshrl.u32 %v3075, 30
        %v3077 = vshll.u32 %v3076, 30
        %v3078 = vsub.s32 %v3074, %v3077
        %vm3079 = vcmp.lt.s32.totalorder %v3078, 0
        %v3080 = vsub.s32 0, %v3078
        %v3081 = vsel %vm3079, %v3080, %v3078
        %v3082 = vclz %v3081
        %v3083 = vsub.s32 %v3082, 2
        %vm3084 = vcmp.gt.s32.totalorder 0, %v3083
        %v3085 = vsel %vm3084, 0, %v3083
        %v3086 = vsub.s32 32, %v3085
        %v3087 = vshll.u32 %v3078, %v3085
        %v3088 = vshrl.u32 %v3070, %v3086
        %v3089 = vor.u32 %v3087, %v3088
        %v3090 = vsub.s32 4294967266, %v3085
        %v3091 = vadd.s32 %v3090, 127
        %v3092 = vshll.u32 %v3091, 23
        %v3093 = vor.u32 4788187, %v3092
        %v3094 = vand.u32 2147483647, %v3093
        %v3096 = vcvt.s32.f32 %v3089
        %v3097 = vmul.f32 %v3096, %v3094
        %v3098 = vxor.u32 %v3097, 2147483648
        %v3099 = vsel %vm3016, %v3098, %v3097
        %v3100 = vsub.s32 4, %v3076
        %v3101 = vsel %vm3016, %v3100, %v3076
        %v3102 = vsel %vm3015, %v819, %v3099
        %v3103 = vsel %vm3015, 0, %v3101
        %v3104 = vcosq.f32.pop %v3102
        %v3105 = vsinq.f32.pop %v3102
        %vm3106 = vweird.f32 %v819
        %v3107 = vadd.s32 %v3103, 3
        %v3108 = vand.u32 %v3107, 3
        %vm3109 = vcmp.lt.s32.totalorder %v3108, 2
        %vm3110 = vcmp.eq.s32.totalorder %v3108, 0
        %v3111 = vxor.u32 %v3105, 2147483648
        %v3112 = vsel %vm3110, %v3104, %v3111
        %vm3113 = vcmp.eq.s32.totalorder %v3108, 2
        %v3114 = vxor.u32 %v3104, 2147483648
        %v3115 = vsel %vm3113, %v3114, %v3105
        %v3116 = vsel %vm3109, %v3112, %v3115
        %v3117 = vsel %vm3106, nan, %v3116
        %v3118 = vand.u32 2147483647, %v820
        %vm3119 = vcmp.le.f32.partialorder %v3118, 0.7853982
        %vm3120 = vcmp.lt.s32.totalorder %v820, 0
        %v3121 = vand.u32 %v820, 2139095040
        %v3122 = vshrl.u32 %v3121, 23
        %v3123 = vsub.s32 %v3122, 127
        %v3124 = vand.u32 2147483647, %v820
        %v3125 = vand.u32 %v3124, 8388607
        %v3126 = vor.u32 %v3125, 8388608
        %v3127 = vsub.s32 0, %v3126
        %v3128 = vadd.s32 %v3123, 1
        %vm3129 = vcmp.gt.s32.totalorder %v3128, 0
        %v3130 = vsel %vm3129, %v3128, 0
        %v3131 = vshrl.u32 %v3130, 5
        %v3132 = vand.u32 %v3130, 31
        %v3133 = vsub.s32 32, %v3132
        %v3134 = vshrl.u32 683565275, %v3133
        %v3135 = vshll.u32 683565275, %v3132
        %v3136 = vshrl.u32 2475754826, %v3133
        %v3137 = vor.u32 %v3135, %v3136
        %v3138 = vshll.u32 2475754826, %v3132
        %v3139 = vshrl.u32 2131351028, %v3133
        %v3140 = vor.u32 %v3138, %v3139
        %v3141 = vshll.u32 2131351028, %v3132
        %v3142 = vshrl.u32 2102212464, %v3133
        %v3143 = vor.u32 %v3141, %v3142
        %v3144 = vshll.u32 2102212464, %v3132
        %v3145 = vshrl.u32 920167782, %v3133
        %v3146 = vor.u32 %v3144, %v3145
        %v3147 = vshll.u32 920167782, %v3132
        %v3148 = vshrl.u32 1326507024, %v3133
        %v3149 = vor.u32 %v3147, %v3148
        %vm3150 = vcmp.lt.s32.totalorder %v3131, 1
        %vm3151 = vcmp.lt.s32.totalorder %v3131, 2
        %vm3152 = vcmp.lt.s32.totalorder %v3131, 3
        %vm3153 = vcmp.lt.s32.totalorder %v3131, 4
        %v3154 = vsel %vm3150, %v3134, %v3137
        %v3155 = vsel %vm3153, %v3143, 2102212464
        %v3156 = vsel %vm3152, %v3140, %v3155
        %v3157 = vsel %vm3151, %v3154, %v3156
        %v3158 = vsel %vm3150, %v3137, %v3140
        %v3159 = vsel %vm3153, %v3146, 920167782
        %v3160 = vsel %vm3152, %v3143, %v3159
        %v3161 = vsel %vm3151, %v3158, %v3160
        %v3162 = vsel %vm3150, %v3140, %v3143
        %v3163 = vsel %vm3153, %v3149, 1326507024
        %v3164 = vsel %vm3152, %v3146, %v3163
        %v3165 = vsel %vm3151, %v3162, %v3164
        %v3166 = vshll.u32 %v3126, 8
        %v3167 = vmul.u32.u64.compose %v3166, %v3165
        %v3168 = vextract.low.u32 %v3167
        %v3169 = vextract.high.u32 %v3167
        %v3170 = vmul.u32.u64.compose %v3166, %v3161
        %v3171 = vextract.low.u32 %v3170
        %v3172 = vextract.high.u32 %v3170
        %v3173 = vmul.u32 %v3166, %v3157
        %v3174 = vadd.s32 %v3169, %v3171
        %vm3175 = vc.u32 %v3169, %v3171
        %v3176 = vadd.s32 %v3172, 1
        %v3177 = vsel %vm3175, %v3176, %v3172
        %v3178 = vadd.s32 %v3173, %v3177
        %v3179 = vadd.s32 %v3178, 536870912
        %v3180 = vshrl.u32 %v3179, 30
        %v3181 = vshll.u32 %v3180, 30
        %v3182 = vsub.s32 %v3178, %v3181
        %vm3183 = vcmp.lt.s32.totalorder %v3182, 0
        %v3184 = vsub.s32 0, %v3182
        %v3185 = vsel %vm3183, %v3184, %v3182
        %v3186 = vclz %v3185
        %v3187 = vsub.s32 %v3186, 2
        %vm3188 = vcmp.gt.s32.totalorder 0, %v3187
        %v3189 = vsel %vm3188, 0, %v3187
        %v3190 = vsub.s32 32, %v3189
        %v3191 = vshll.u32 %v3182, %v3189
        %v3192 = vshrl.u32 %v3174, %v3190
        %v3193 = vor.u32 %v3191, %v3192
        %v3194 = vsub.s32 4294967266, %v3189
        %v3195 = vadd.s32 %v3194, 127
        %v3196 = vshll.u32 %v3195, 23
        %v3197 = vor.u32 4788187, %v3196
        %v3198 = vand.u32 2147483647, %v3197
        %v3200 = vcvt.s32.f32 %v3193
        %v3201 = vmul.f32 %v3200, %v3198
        %v3202 = vxor.u32 %v3201, 2147483648
        %v3203 = vsel %vm3120, %v3202, %v3201
        %v3204 = vsub.s32 4, %v3180
        %v3205 = vsel %vm3120, %v3204, %v3180
        %v3206 = vsel %vm3119, %v820, %v3203
        %v3207 = vsel %vm3119, 0, %v3205
        %v3208 = vcosq.f32.pop %v3206
        %v3209 = vsinq.f32.pop %v3206
        %vm3210 = vweird.f32 %v820
        %v3211 = vadd.s32 %v3207, 3
        %v3212 = vand.u32 %v3211, 3
        %vm3213 = vcmp.lt.s32.totalorder %v3212, 2
        %vm3214 = vcmp.eq.s32.totalorder %v3212, 0
        %v3215 = vxor.u32 %v3209, 2147483648
        %v3216 = vsel %vm3214, %v3208, %v3215
        %vm3217 = vcmp.eq.s32.totalorder %v3212, 2
        %v3218 = vxor.u32 %v3208, 2147483648
        %v3219 = vsel %vm3217, %v3218, %v3209
        %v3220 = vsel %vm3213, %v3216, %v3219
        %v3221 = vsel %vm3210, nan, %v3220
        %v3222 = vand.u32 2147483647, %v821
        %vm3223 = vcmp.le.f32.partialorder %v3222, 0.7853982
        %vm3224 = vcmp.lt.s32.totalorder %v821, 0
        %v3225 = vand.u32 %v821, 2139095040
        %v3226 = vshrl.u32 %v3225, 23
        %v3227 = vsub.s32 %v3226, 127
        %v3228 = vand.u32 2147483647, %v821
        %v3229 = vand.u32 %v3228, 8388607
        %v3230 = vor.u32 %v3229, 8388608
        %v3231 = vsub.s32 0, %v3230
        %v3232 = vadd.s32 %v3227, 1
        %vm3233 = vcmp.gt.s32.totalorder %v3232, 0
        %v3234 = vsel %vm3233, %v3232, 0
        %v3235 = vshrl.u32 %v3234, 5
        %v3236 = vand.u32 %v3234, 31
        %v3237 = vsub.s32 32, %v3236
        %v3238 = vshrl.u32 683565275, %v3237
        %v3239 = vshll.u32 683565275, %v3236
        %v3240 = vshrl.u32 2475754826, %v3237
        %v3241 = vor.u32 %v3239, %v3240
        %v3242 = vshll.u32 2475754826, %v3236
        %v3243 = vshrl.u32 2131351028, %v3237
        %v3244 = vor.u32 %v3242, %v3243
        %v3245 = vshll.u32 2131351028, %v3236
        %v3246 = vshrl.u32 2102212464, %v3237
        %v3247 = vor.u32 %v3245, %v3246
        %v3248 = vshll.u32 2102212464, %v3236
        %v3249 = vshrl.u32 920167782, %v3237
        %v3250 = vor.u32 %v3248, %v3249
        %v3251 = vshll.u32 920167782, %v3236
        %v3252 = vshrl.u32 1326507024, %v3237
        %v3253 = vor.u32 %v3251, %v3252
        %vm3254 = vcmp.lt.s32.totalorder %v3235, 1
        %vm3255 = vcmp.lt.s32.totalorder %v3235, 2
        %vm3256 = vcmp.lt.s32.totalorder %v3235, 3
        %vm3257 = vcmp.lt.s32.totalorder %v3235, 4
        %v3258 = vsel %vm3254, %v3238, %v3241
        %v3259 = vsel %vm3257, %v3247, 2102212464
        %v3260 = vsel %vm3256, %v3244, %v3259
        %v3261 = vsel %vm3255, %v3258, %v3260
        %v3262 = vsel %vm3254, %v3241, %v3244
        %v3263 = vsel %vm3257, %v3250, 920167782
        %v3264 = vsel %vm3256, %v3247, %v3263
        %v3265 = vsel %vm3255, %v3262, %v3264
        %v3266 = vsel %vm3254, %v3244, %v3247
        %v3267 = vsel %vm3257, %v3253, 1326507024
        %v3268 = vsel %vm3256, %v3250, %v3267
        %v3269 = vsel %vm3255, %v3266, %v3268
        %v3270 = vshll.u32 %v3230, 8
        %v3271 = vmul.u32.u64.compose %v3270, %v3269
        %v3272 = vextract.low.u32 %v3271
        %v3273 = vextract.high.u32 %v3271
        %v3274 = vmul.u32.u64.compose %v3270, %v3265
        %v3275 = vextract.low.u32 %v3274
        %v3276 = vextract.high.u32 %v3274
        %v3277 = vmul.u32 %v3270, %v3261
        %v3278 = vadd.s32 %v3273, %v3275
        %vm3279 = vc.u32 %v3273, %v3275
        %v3280 = vadd.s32 %v3276, 1
        %v3281 = vsel %vm3279, %v3280, %v3276
        %v3282 = vadd.s32 %v3277, %v3281
        %v3283 = vadd.s32 %v3282, 536870912
        %v3284 = vshrl.u32 %v3283, 30
        %v3285 = vshll.u32 %v3284, 30
        %v3286 = vsub.s32 %v3282, %v3285
        %vm3287 = vcmp.lt.s32.totalorder %v3286, 0
        %v3288 = vsub.s32 0, %v3286
        %v3289 = vsel %vm3287, %v3288, %v3286
        %v3290 = vclz %v3289
        %v3291 = vsub.s32 %v3290, 2
        %vm3292 = vcmp.gt.s32.totalorder 0, %v3291
        %v3293 = vsel %vm3292, 0, %v3291
        %v3294 = vsub.s32 32, %v3293
        %v3295 = vshll.u32 %v3286, %v3293
        %v3296 = vshrl.u32 %v3278, %v3294
        %v3297 = vor.u32 %v3295, %v3296
        %v3298 = vsub.s32 4294967266, %v3293
        %v3299 = vadd.s32 %v3298, 127
        %v3300 = vshll.u32 %v3299, 23
        %v3301 = vor.u32 4788187, %v3300
        %v3302 = vand.u32 2147483647, %v3301
        %v3304 = vcvt.s32.f32 %v3297
        %v3305 = vmul.f32 %v3304, %v3302
        %v3306 = vxor.u32 %v3305, 2147483648
        %v3307 = vsel %vm3224, %v3306, %v3305
        %v3308 = vsub.s32 4, %v3284
        %v3309 = vsel %vm3224, %v3308, %v3284
        %v3310 = vsel %vm3223, %v821, %v3307
        %v3311 = vsel %vm3223, 0, %v3309
        %v3312 = vcosq.f32.pop %v3310
        %v3313 = vsinq.f32.pop %v3310
        %vm3314 = vweird.f32 %v821
        %v3315 = vadd.s32 %v3311, 3
        %v3316 = vand.u32 %v3315, 3
        %vm3317 = vcmp.lt.s32.totalorder %v3316, 2
        %vm3318 = vcmp.eq.s32.totalorder %v3316, 0
        %v3319 = vxor.u32 %v3313, 2147483648
        %v3320 = vsel %vm3318, %v3312, %v3319
        %vm3321 = vcmp.eq.s32.totalorder %v3316, 2
        %v3322 = vxor.u32 %v3312, 2147483648
        %v3323 = vsel %vm3321, %v3322, %v3313
        %v3324 = vsel %vm3317, %v3320, %v3323
        %v3325 = vsel %vm3314, nan, %v3324
        %v3326 = vand.u32 2147483647, %v822
        %vm3327 = vcmp.le.f32.partialorder %v3326, 0.7853982
        %vm3328 = vcmp.lt.s32.totalorder %v822, 0
        %v3329 = vand.u32 %v822, 2139095040
        %v3330 = vshrl.u32 %v3329, 23
        %v3331 = vsub.s32 %v3330, 127
        %v3332 = vand.u32 2147483647, %v822
        %v3333 = vand.u32 %v3332, 8388607
        %v3334 = vor.u32 %v3333, 8388608
        %v3335 = vsub.s32 0, %v3334
        %v3336 = vadd.s32 %v3331, 1
        %vm3337 = vcmp.gt.s32.totalorder %v3336, 0
        %v3338 = vsel %vm3337, %v3336, 0
        %v3339 = vshrl.u32 %v3338, 5
        %v3340 = vand.u32 %v3338, 31
        %v3341 = vsub.s32 32, %v3340
        %v3342 = vshrl.u32 683565275, %v3341
        %v3343 = vshll.u32 683565275, %v3340
        %v3344 = vshrl.u32 2475754826, %v3341
        %v3345 = vor.u32 %v3343, %v3344
        %v3346 = vshll.u32 2475754826, %v3340
        %v3347 = vshrl.u32 2131351028, %v3341
        %v3348 = vor.u32 %v3346, %v3347
        %v3349 = vshll.u32 2131351028, %v3340
        %v3350 = vshrl.u32 2102212464, %v3341
        %v3351 = vor.u32 %v3349, %v3350
        %v3352 = vshll.u32 2102212464, %v3340
        %v3353 = vshrl.u32 920167782, %v3341
        %v3354 = vor.u32 %v3352, %v3353
        %v3355 = vshll.u32 920167782, %v3340
        %v3356 = vshrl.u32 1326507024, %v3341
        %v3357 = vor.u32 %v3355, %v3356
        %vm3358 = vcmp.lt.s32.totalorder %v3339, 1
        %vm3359 = vcmp.lt.s32.totalorder %v3339, 2
        %vm3360 = vcmp.lt.s32.totalorder %v3339, 3
        %vm3361 = vcmp.lt.s32.totalorder %v3339, 4
        %v3362 = vsel %vm3358, %v3342, %v3345
        %v3363 = vsel %vm3361, %v3351, 2102212464
        %v3364 = vsel %vm3360, %v3348, %v3363
        %v3365 = vsel %vm3359, %v3362, %v3364
        %v3366 = vsel %vm3358, %v3345, %v3348
        %v3367 = vsel %vm3361, %v3354, 920167782
        %v3368 = vsel %vm3360, %v3351, %v3367
        %v3369 = vsel %vm3359, %v3366, %v3368
        %v3370 = vsel %vm3358, %v3348, %v3351
        %v3371 = vsel %vm3361, %v3357, 1326507024
        %v3372 = vsel %vm3360, %v3354, %v3371
        %v3373 = vsel %vm3359, %v3370, %v3372
        %v3374 = vshll.u32 %v3334, 8
        %v3375 = vmul.u32.u64.compose %v3374, %v3373
        %v3376 = vextract.low.u32 %v3375
        %v3377 = vextract.high.u32 %v3375
        %v3378 = vmul.u32.u64.compose %v3374, %v3369
        %v3379 = vextract.low.u32 %v3378
        %v3380 = vextract.high.u32 %v3378
        %v3381 = vmul.u32 %v3374, %v3365
        %v3382 = vadd.s32 %v3377, %v3379
        %vm3383 = vc.u32 %v3377, %v3379
        %v3384 = vadd.s32 %v3380, 1
        %v3385 = vsel %vm3383, %v3384, %v3380
        %v3386 = vadd.s32 %v3381, %v3385
        %v3387 = vadd.s32 %v3386, 536870912
        %v3388 = vshrl.u32 %v3387, 30
        %v3389 = vshll.u32 %v3388, 30
        %v3390 = vsub.s32 %v3386, %v3389
        %vm3391 = vcmp.lt.s32.totalorder %v3390, 0
        %v3392 = vsub.s32 0, %v3390
        %v3393 = vsel %vm3391, %v3392, %v3390
        %v3394 = vclz %v3393
        %v3395 = vsub.s32 %v3394, 2
        %vm3396 = vcmp.gt.s32.totalorder 0, %v3395
        %v3397 = vsel %vm3396, 0, %v3395
        %v3398 = vsub.s32 32, %v3397
        %v3399 = vshll.u32 %v3390, %v3397
        %v3400 = vshrl.u32 %v3382, %v3398
        %v3401 = vor.u32 %v3399, %v3400
        %v3402 = vsub.s32 4294967266, %v3397
        %v3403 = vadd.s32 %v3402, 127
        %v3404 = vshll.u32 %v3403, 23
        %v3405 = vor.u32 4788187, %v3404
        %v3406 = vand.u32 2147483647, %v3405
        %v3408 = vcvt.s32.f32 %v3401
        %v3409 = vmul.f32 %v3408, %v3406
        %v3410 = vxor.u32 %v3409, 2147483648
        %v3411 = vsel %vm3328, %v3410, %v3409
        %v3412 = vsub.s32 4, %v3388
        %v3413 = vsel %vm3328, %v3412, %v3388
        %v3414 = vsel %vm3327, %v822, %v3411
        %v3415 = vsel %vm3327, 0, %v3413
        %v3416 = vcosq.f32.pop %v3414
        %v3417 = vsinq.f32.pop %v3414
        %vm3418 = vweird.f32 %v822
        %v3419 = vadd.s32 %v3415, 3
        %v3420 = vand.u32 %v3419, 3
        %vm3421 = vcmp.lt.s32.totalorder %v3420, 2
        %vm3422 = vcmp.eq.s32.totalorder %v3420, 0
        %v3423 = vxor.u32 %v3417, 2147483648
        %v3424 = vsel %vm3422, %v3416, %v3423
        %vm3425 = vcmp.eq.s32.totalorder %v3420, 2
        %v3426 = vxor.u32 %v3416, 2147483648
        %v3427 = vsel %vm3425, %v3426, %v3417
        %v3428 = vsel %vm3421, %v3424, %v3427
        %v3429 = vsel %vm3418, nan, %v3428
        %v3430 = vand.u32 2147483647, %v823
        %vm3431 = vcmp.le.f32.partialorder %v3430, 0.7853982
        %vm3432 = vcmp.lt.s32.totalorder %v823, 0
        %v3433 = vand.u32 %v823, 2139095040
        %v3434 = vshrl.u32 %v3433, 23
        %v3435 = vsub.s32 %v3434, 127
        %v3436 = vand.u32 2147483647, %v823
        %v3437 = vand.u32 %v3436, 8388607
        %v3438 = vor.u32 %v3437, 8388608
        %v3439 = vsub.s32 0, %v3438
        %v3440 = vadd.s32 %v3435, 1
        %vm3441 = vcmp.gt.s32.totalorder %v3440, 0
        %v3442 = vsel %vm3441, %v3440, 0
        %v3443 = vshrl.u32 %v3442, 5
        %v3444 = vand.u32 %v3442, 31
        %v3445 = vsub.s32 32, %v3444
        %v3446 = vshrl.u32 683565275, %v3445
        %v3447 = vshll.u32 683565275, %v3444
        %v3448 = vshrl.u32 2475754826, %v3445
        %v3449 = vor.u32 %v3447, %v3448
        %v3450 = vshll.u32 2475754826, %v3444
        %v3451 = vshrl.u32 2131351028, %v3445
        %v3452 = vor.u32 %v3450, %v3451
        %v3453 = vshll.u32 2131351028, %v3444
        %v3454 = vshrl.u32 2102212464, %v3445
        %v3455 = vor.u32 %v3453, %v3454
        %v3456 = vshll.u32 2102212464, %v3444
        %v3457 = vshrl.u32 920167782, %v3445
        %v3458 = vor.u32 %v3456, %v3457
        %v3459 = vshll.u32 920167782, %v3444
        %v3460 = vshrl.u32 1326507024, %v3445
        %v3461 = vor.u32 %v3459, %v3460
        %vm3462 = vcmp.lt.s32.totalorder %v3443, 1
        %vm3463 = vcmp.lt.s32.totalorder %v3443, 2
        %vm3464 = vcmp.lt.s32.totalorder %v3443, 3
        %vm3465 = vcmp.lt.s32.totalorder %v3443, 4
        %v3466 = vsel %vm3462, %v3446, %v3449
        %v3467 = vsel %vm3465, %v3455, 2102212464
        %v3468 = vsel %vm3464, %v3452, %v3467
        %v3469 = vsel %vm3463, %v3466, %v3468
        %v3470 = vsel %vm3462, %v3449, %v3452
        %v3471 = vsel %vm3465, %v3458, 920167782
        %v3472 = vsel %vm3464, %v3455, %v3471
        %v3473 = vsel %vm3463, %v3470, %v3472
        %v3474 = vsel %vm3462, %v3452, %v3455
        %v3475 = vsel %vm3465, %v3461, 1326507024
        %v3476 = vsel %vm3464, %v3458, %v3475
        %v3477 = vsel %vm3463, %v3474, %v3476
        %v3478 = vshll.u32 %v3438, 8
        %v3479 = vmul.u32.u64.compose %v3478, %v3477
        %v3480 = vextract.low.u32 %v3479
        %v3481 = vextract.high.u32 %v3479
        %v3482 = vmul.u32.u64.compose %v3478, %v3473
        %v3483 = vextract.low.u32 %v3482
        %v3484 = vextract.high.u32 %v3482
        %v3485 = vmul.u32 %v3478, %v3469
        %v3486 = vadd.s32 %v3481, %v3483
        %vm3487 = vc.u32 %v3481, %v3483
        %v3488 = vadd.s32 %v3484, 1
        %v3489 = vsel %vm3487, %v3488, %v3484
        %v3490 = vadd.s32 %v3485, %v3489
        %v3491 = vadd.s32 %v3490, 536870912
        %v3492 = vshrl.u32 %v3491, 30
        %v3493 = vshll.u32 %v3492, 30
        %v3494 = vsub.s32 %v3490, %v3493
        %vm3495 = vcmp.lt.s32.totalorder %v3494, 0
        %v3496 = vsub.s32 0, %v3494
        %v3497 = vsel %vm3495, %v3496, %v3494
        %v3498 = vclz %v3497
        %v3499 = vsub.s32 %v3498, 2
        %vm3500 = vcmp.gt.s32.totalorder 0, %v3499
        %v3501 = vsel %vm3500, 0, %v3499
        %v3502 = vsub.s32 32, %v3501
        %v3503 = vshll.u32 %v3494, %v3501
        %v3504 = vshrl.u32 %v3486, %v3502
        %v3505 = vor.u32 %v3503, %v3504
        %v3506 = vsub.s32 4294967266, %v3501
        %v3507 = vadd.s32 %v3506, 127
        %v3508 = vshll.u32 %v3507, 23
        %v3509 = vor.u32 4788187, %v3508
        %v3510 = vand.u32 2147483647, %v3509
        %v3512 = vcvt.s32.f32 %v3505
        %v3513 = vmul.f32 %v3512, %v3510
        %v3514 = vxor.u32 %v3513, 2147483648
        %v3515 = vsel %vm3432, %v3514, %v3513
        %v3516 = vsub.s32 4, %v3492
        %v3517 = vsel %vm3432, %v3516, %v3492
        %v3518 = vsel %vm3431, %v823, %v3515
        %v3519 = vsel %vm3431, 0, %v3517
        %v3520 = vcosq.f32.pop %v3518
        %v3521 = vsinq.f32.pop %v3518
        %vm3522 = vweird.f32 %v823
        %v3523 = vadd.s32 %v3519, 3
        %v3524 = vand.u32 %v3523, 3
        %vm3525 = vcmp.lt.s32.totalorder %v3524, 2
        %vm3526 = vcmp.eq.s32.totalorder %v3524, 0
        %v3527 = vxor.u32 %v3521, 2147483648
        %v3528 = vsel %vm3526, %v3520, %v3527
        %vm3529 = vcmp.eq.s32.totalorder %v3524, 2
        %v3530 = vxor.u32 %v3520, 2147483648
        %v3531 = vsel %vm3529, %v3530, %v3521
        %v3532 = vsel %vm3525, %v3528, %v3531
        %v3533 = vsel %vm3522, nan, %v3532
        %v3534 = vand.u32 2147483647, %v824
        %vm3535 = vcmp.le.f32.partialorder %v3534, 0.7853982
        %vm3536 = vcmp.lt.s32.totalorder %v824, 0
        %v3537 = vand.u32 %v824, 2139095040
        %v3538 = vshrl.u32 %v3537, 23
        %v3539 = vsub.s32 %v3538, 127
        %v3540 = vand.u32 2147483647, %v824
        %v3541 = vand.u32 %v3540, 8388607
        %v3542 = vor.u32 %v3541, 8388608
        %v3543 = vsub.s32 0, %v3542
        %v3544 = vadd.s32 %v3539, 1
        %vm3545 = vcmp.gt.s32.totalorder %v3544, 0
        %v3546 = vsel %vm3545, %v3544, 0
        %v3547 = vshrl.u32 %v3546, 5
        %v3548 = vand.u32 %v3546, 31
        %v3549 = vsub.s32 32, %v3548
        %v3550 = vshrl.u32 683565275, %v3549
        %v3551 = vshll.u32 683565275, %v3548
        %v3552 = vshrl.u32 2475754826, %v3549
        %v3553 = vor.u32 %v3551, %v3552
        %v3554 = vshll.u32 2475754826, %v3548
        %v3555 = vshrl.u32 2131351028, %v3549
        %v3556 = vor.u32 %v3554, %v3555
        %v3557 = vshll.u32 2131351028, %v3548
        %v3558 = vshrl.u32 2102212464, %v3549
        %v3559 = vor.u32 %v3557, %v3558
        %v3560 = vshll.u32 2102212464, %v3548
        %v3561 = vshrl.u32 920167782, %v3549
        %v3562 = vor.u32 %v3560, %v3561
        %v3563 = vshll.u32 920167782, %v3548
        %v3564 = vshrl.u32 1326507024, %v3549
        %v3565 = vor.u32 %v3563, %v3564
        %vm3566 = vcmp.lt.s32.totalorder %v3547, 1
        %vm3567 = vcmp.lt.s32.totalorder %v3547, 2
        %vm3568 = vcmp.lt.s32.totalorder %v3547, 3
        %vm3569 = vcmp.lt.s32.totalorder %v3547, 4
        %v3570 = vsel %vm3566, %v3550, %v3553
        %v3571 = vsel %vm3569, %v3559, 2102212464
        %v3572 = vsel %vm3568, %v3556, %v3571
        %v3573 = vsel %vm3567, %v3570, %v3572
        %v3574 = vsel %vm3566, %v3553, %v3556
        %v3575 = vsel %vm3569, %v3562, 920167782
        %v3576 = vsel %vm3568, %v3559, %v3575
        %v3577 = vsel %vm3567, %v3574, %v3576
        %v3578 = vsel %vm3566, %v3556, %v3559
        %v3579 = vsel %vm3569, %v3565, 1326507024
        %v3580 = vsel %vm3568, %v3562, %v3579
        %v3581 = vsel %vm3567, %v3578, %v3580
        %v3582 = vshll.u32 %v3542, 8
        %v3583 = vmul.u32.u64.compose %v3582, %v3581
        %v3584 = vextract.low.u32 %v3583
        %v3585 = vextract.high.u32 %v3583
        %v3586 = vmul.u32.u64.compose %v3582, %v3577
        %v3587 = vextract.low.u32 %v3586
        %v3588 = vextract.high.u32 %v3586
        %v3589 = vmul.u32 %v3582, %v3573
        %v3590 = vadd.s32 %v3585, %v3587
        %vm3591 = vc.u32 %v3585, %v3587
        %v3592 = vadd.s32 %v3588, 1
        %v3593 = vsel %vm3591, %v3592, %v3588
        %v3594 = vadd.s32 %v3589, %v3593
        %v3595 = vadd.s32 %v3594, 536870912
        %v3596 = vshrl.u32 %v3595, 30
        %v3597 = vshll.u32 %v3596, 30
        %v3598 = vsub.s32 %v3594, %v3597
        %vm3599 = vcmp.lt.s32.totalorder %v3598, 0
        %v3600 = vsub.s32 0, %v3598
        %v3601 = vsel %vm3599, %v3600, %v3598
        %v3602 = vclz %v3601
        %v3603 = vsub.s32 %v3602, 2
        %vm3604 = vcmp.gt.s32.totalorder 0, %v3603
        %v3605 = vsel %vm3604, 0, %v3603
        %v3606 = vsub.s32 32, %v3605
        %v3607 = vshll.u32 %v3598, %v3605
        %v3608 = vshrl.u32 %v3590, %v3606
        %v3609 = vor.u32 %v3607, %v3608
        %v3610 = vsub.s32 4294967266, %v3605
        %v3611 = vadd.s32 %v3610, 127
        %v3612 = vshll.u32 %v3611, 23
        %v3613 = vor.u32 4788187, %v3612
        %v3614 = vand.u32 2147483647, %v3613
        %v3616 = vcvt.s32.f32 %v3609
        %v3617 = vmul.f32 %v3616, %v3614
        %v3618 = vxor.u32 %v3617, 2147483648
        %v3619 = vsel %vm3536, %v3618, %v3617
        %v3620 = vsub.s32 4, %v3596
        %v3621 = vsel %vm3536, %v3620, %v3596
        %v3622 = vsel %vm3535, %v824, %v3619
        %v3623 = vsel %vm3535, 0, %v3621
        %v3624 = vcosq.f32.pop %v3622
        %v3625 = vsinq.f32.pop %v3622
        %vm3626 = vweird.f32 %v824
        %v3627 = vadd.s32 %v3623, 3
        %v3628 = vand.u32 %v3627, 3
        %vm3629 = vcmp.lt.s32.totalorder %v3628, 2
        %vm3630 = vcmp.eq.s32.totalorder %v3628, 0
        %v3631 = vxor.u32 %v3625, 2147483648
        %v3632 = vsel %vm3630, %v3624, %v3631
        %vm3633 = vcmp.eq.s32.totalorder %v3628, 2
        %v3634 = vxor.u32 %v3624, 2147483648
        %v3635 = vsel %vm3633, %v3634, %v3625
        %v3636 = vsel %vm3629, %v3632, %v3635
        %v3637 = vsel %vm3626, nan, %v3636
        %v3638 = vand.u32 2147483647, %v825
        %vm3639 = vcmp.le.f32.partialorder %v3638, 0.7853982
        %vm3640 = vcmp.lt.s32.totalorder %v825, 0
        %v3641 = vand.u32 %v825, 2139095040
        %v3642 = vshrl.u32 %v3641, 23
        %v3643 = vsub.s32 %v3642, 127
        %v3644 = vand.u32 2147483647, %v825
        %v3645 = vand.u32 %v3644, 8388607
        %v3646 = vor.u32 %v3645, 8388608
        %v3647 = vsub.s32 0, %v3646
        %v3648 = vadd.s32 %v3643, 1
        %vm3649 = vcmp.gt.s32.totalorder %v3648, 0
        %v3650 = vsel %vm3649, %v3648, 0
        %v3651 = vshrl.u32 %v3650, 5
        %v3652 = vand.u32 %v3650, 31
        %v3653 = vsub.s32 32, %v3652
        %v3654 = vshrl.u32 683565275, %v3653
        %v3655 = vshll.u32 683565275, %v3652
        %v3656 = vshrl.u32 2475754826, %v3653
        %v3657 = vor.u32 %v3655, %v3656
        %v3658 = vshll.u32 2475754826, %v3652
        %v3659 = vshrl.u32 2131351028, %v3653
        %v3660 = vor.u32 %v3658, %v3659
        %v3661 = vshll.u32 2131351028, %v3652
        %v3662 = vshrl.u32 2102212464, %v3653
        %v3663 = vor.u32 %v3661, %v3662
        %v3664 = vshll.u32 2102212464, %v3652
        %v3665 = vshrl.u32 920167782, %v3653
        %v3666 = vor.u32 %v3664, %v3665
        %v3667 = vshll.u32 920167782, %v3652
        %v3668 = vshrl.u32 1326507024, %v3653
        %v3669 = vor.u32 %v3667, %v3668
        %vm3670 = vcmp.lt.s32.totalorder %v3651, 1
        %vm3671 = vcmp.lt.s32.totalorder %v3651, 2
        %vm3672 = vcmp.lt.s32.totalorder %v3651, 3
        %vm3673 = vcmp.lt.s32.totalorder %v3651, 4
        %v3674 = vsel %vm3670, %v3654, %v3657
        %v3675 = vsel %vm3673, %v3663, 2102212464
        %v3676 = vsel %vm3672, %v3660, %v3675
        %v3677 = vsel %vm3671, %v3674, %v3676
        %v3678 = vsel %vm3670, %v3657, %v3660
        %v3679 = vsel %vm3673, %v3666, 920167782
        %v3680 = vsel %vm3672, %v3663, %v3679
        %v3681 = vsel %vm3671, %v3678, %v3680
        %v3682 = vsel %vm3670, %v3660, %v3663
        %v3683 = vsel %vm3673, %v3669, 1326507024
        %v3684 = vsel %vm3672, %v3666, %v3683
        %v3685 = vsel %vm3671, %v3682, %v3684
        %v3686 = vshll.u32 %v3646, 8
        %v3687 = vmul.u32.u64.compose %v3686, %v3685
        %v3688 = vextract.low.u32 %v3687
        %v3689 = vextract.high.u32 %v3687
        %v3690 = vmul.u32.u64.compose %v3686, %v3681
        %v3691 = vextract.low.u32 %v3690
        %v3692 = vextract.high.u32 %v3690
        %v3693 = vmul.u32 %v3686, %v3677
        %v3694 = vadd.s32 %v3689, %v3691
        %vm3695 = vc.u32 %v3689, %v3691
        %v3696 = vadd.s32 %v3692, 1
        %v3697 = vsel %vm3695, %v3696, %v3692
        %v3698 = vadd.s32 %v3693, %v3697
        %v3699 = vadd.s32 %v3698, 536870912
        %v3700 = vshrl.u32 %v3699, 30
        %v3701 = vshll.u32 %v3700, 30
        %v3702 = vsub.s32 %v3698, %v3701
        %vm3703 = vcmp.lt.s32.totalorder %v3702, 0
        %v3704 = vsub.s32 0, %v3702
        %v3705 = vsel %vm3703, %v3704, %v3702
        %v3706 = vclz %v3705
        %v3707 = vsub.s32 %v3706, 2
        %vm3708 = vcmp.gt.s32.totalorder 0, %v3707
        %v3709 = vsel %vm3708, 0, %v3707
        %v3710 = vsub.s32 32, %v3709
        %v3711 = vshll.u32 %v3702, %v3709
        %v3712 = vshrl.u32 %v3694, %v3710
        %v3713 = vor.u32 %v3711, %v3712
        %v3714 = vsub.s32 4294967266, %v3709
        %v3715 = vadd.s32 %v3714, 127
        %v3716 = vshll.u32 %v3715, 23
        %v3717 = vor.u32 4788187, %v3716
        %v3718 = vand.u32 2147483647, %v3717
        %v3720 = vcvt.s32.f32 %v3713
        %v3721 = vmul.f32 %v3720, %v3718
        %v3722 = vxor.u32 %v3721, 2147483648
        %v3723 = vsel %vm3640, %v3722, %v3721
        %v3724 = vsub.s32 4, %v3700
        %v3725 = vsel %vm3640, %v3724, %v3700
        %v3726 = vsel %vm3639, %v825, %v3723
        %v3727 = vsel %vm3639, 0, %v3725
        %v3728 = vcosq.f32.pop %v3726
        %v3729 = vsinq.f32.pop %v3726
        %vm3730 = vweird.f32 %v825
        %v3731 = vadd.s32 %v3727, 3
        %v3732 = vand.u32 %v3731, 3
        %vm3733 = vcmp.lt.s32.totalorder %v3732, 2
        %vm3734 = vcmp.eq.s32.totalorder %v3732, 0
        %v3735 = vxor.u32 %v3729, 2147483648
        %v3736 = vsel %vm3734, %v3728, %v3735
        %vm3737 = vcmp.eq.s32.totalorder %v3732, 2
        %v3738 = vxor.u32 %v3728, 2147483648
        %v3739 = vsel %vm3737, %v3738, %v3729
        %v3740 = vsel %vm3733, %v3736, %v3739
        %v3741 = vsel %vm3730, nan, %v3740
        %v3742 = vand.u32 2147483647, %v826
        %vm3743 = vcmp.le.f32.partialorder %v3742, 0.7853982
        %vm3744 = vcmp.lt.s32.totalorder %v826, 0
        %v3745 = vand.u32 %v826, 2139095040
        %v3746 = vshrl.u32 %v3745, 23
        %v3747 = vsub.s32 %v3746, 127
        %v3748 = vand.u32 2147483647, %v826
        %v3749 = vand.u32 %v3748, 8388607
        %v3750 = vor.u32 %v3749, 8388608
        %v3751 = vsub.s32 0, %v3750
        %v3752 = vadd.s32 %v3747, 1
        %vm3753 = vcmp.gt.s32.totalorder %v3752, 0
        %v3754 = vsel %vm3753, %v3752, 0
        %v3755 = vshrl.u32 %v3754, 5
        %v3756 = vand.u32 %v3754, 31
        %v3757 = vsub.s32 32, %v3756
        %v3758 = vshrl.u32 683565275, %v3757
        %v3759 = vshll.u32 683565275, %v3756
        %v3760 = vshrl.u32 2475754826, %v3757
        %v3761 = vor.u32 %v3759, %v3760
        %v3762 = vshll.u32 2475754826, %v3756
        %v3763 = vshrl.u32 2131351028, %v3757
        %v3764 = vor.u32 %v3762, %v3763
        %v3765 = vshll.u32 2131351028, %v3756
        %v3766 = vshrl.u32 2102212464, %v3757
        %v3767 = vor.u32 %v3765, %v3766
        %v3768 = vshll.u32 2102212464, %v3756
        %v3769 = vshrl.u32 920167782, %v3757
        %v3770 = vor.u32 %v3768, %v3769
        %v3771 = vshll.u32 920167782, %v3756
        %v3772 = vshrl.u32 1326507024, %v3757
        %v3773 = vor.u32 %v3771, %v3772
        %vm3774 = vcmp.lt.s32.totalorder %v3755, 1
        %vm3775 = vcmp.lt.s32.totalorder %v3755, 2
        %vm3776 = vcmp.lt.s32.totalorder %v3755, 3
        %vm3777 = vcmp.lt.s32.totalorder %v3755, 4
        %v3778 = vsel %vm3774, %v3758, %v3761
        %v3779 = vsel %vm3777, %v3767, 2102212464
        %v3780 = vsel %vm3776, %v3764, %v3779
        %v3781 = vsel %vm3775, %v3778, %v3780
        %v3782 = vsel %vm3774, %v3761, %v3764
        %v3783 = vsel %vm3777, %v3770, 920167782
        %v3784 = vsel %vm3776, %v3767, %v3783
        %v3785 = vsel %vm3775, %v3782, %v3784
        %v3786 = vsel %vm3774, %v3764, %v3767
        %v3787 = vsel %vm3777, %v3773, 1326507024
        %v3788 = vsel %vm3776, %v3770, %v3787
        %v3789 = vsel %vm3775, %v3786, %v3788
        %v3790 = vshll.u32 %v3750, 8
        %v3791 = vmul.u32.u64.compose %v3790, %v3789
        %v3792 = vextract.low.u32 %v3791
        %v3793 = vextract.high.u32 %v3791
        %v3794 = vmul.u32.u64.compose %v3790, %v3785
        %v3795 = vextract.low.u32 %v3794
        %v3796 = vextract.high.u32 %v3794
        %v3797 = vmul.u32 %v3790, %v3781
        %v3798 = vadd.s32 %v3793, %v3795
        %vm3799 = vc.u32 %v3793, %v3795
        %v3800 = vadd.s32 %v3796, 1
        %v3801 = vsel %vm3799, %v3800, %v3796
        %v3802 = vadd.s32 %v3797, %v3801
        %v3803 = vadd.s32 %v3802, 536870912
        %v3804 = vshrl.u32 %v3803, 30
        %v3805 = vshll.u32 %v3804, 30
        %v3806 = vsub.s32 %v3802, %v3805
        %vm3807 = vcmp.lt.s32.totalorder %v3806, 0
        %v3808 = vsub.s32 0, %v3806
        %v3809 = vsel %vm3807, %v3808, %v3806
        %v3810 = vclz %v3809
        %v3811 = vsub.s32 %v3810, 2
        %vm3812 = vcmp.gt.s32.totalorder 0, %v3811
        %v3813 = vsel %vm3812, 0, %v3811
        %v3814 = vsub.s32 32, %v3813
        %v3815 = vshll.u32 %v3806, %v3813
        %v3816 = vshrl.u32 %v3798, %v3814
        %v3817 = vor.u32 %v3815, %v3816
        %v3818 = vsub.s32 4294967266, %v3813
        %v3819 = vadd.s32 %v3818, 127
        %v3820 = vshll.u32 %v3819, 23
        %v3821 = vor.u32 4788187, %v3820
        %v3822 = vand.u32 2147483647, %v3821
        %v3824 = vcvt.s32.f32 %v3817
        %v3825 = vmul.f32 %v3824, %v3822
        %v3826 = vxor.u32 %v3825, 2147483648
        %v3827 = vsel %vm3744, %v3826, %v3825
        %v3828 = vsub.s32 4, %v3804
        %v3829 = vsel %vm3744, %v3828, %v3804
        %v3830 = vsel %vm3743, %v826, %v3827
        %v3831 = vsel %vm3743, 0, %v3829
        %v3832 = vcosq.f32.pop %v3830
        %v3833 = vsinq.f32.pop %v3830
        %vm3834 = vweird.f32 %v826
        %v3835 = vadd.s32 %v3831, 3
        %v3836 = vand.u32 %v3835, 3
        %vm3837 = vcmp.lt.s32.totalorder %v3836, 2
        %vm3838 = vcmp.eq.s32.totalorder %v3836, 0
        %v3839 = vxor.u32 %v3833, 2147483648
        %v3840 = vsel %vm3838, %v3832, %v3839
        %vm3841 = vcmp.eq.s32.totalorder %v3836, 2
        %v3842 = vxor.u32 %v3832, 2147483648
        %v3843 = vsel %vm3841, %v3842, %v3833
        %v3844 = vsel %vm3837, %v3840, %v3843
        %v3845 = vsel %vm3834, nan, %v3844
        %v3846 = vand.u32 2147483647, %v827
        %vm3847 = vcmp.le.f32.partialorder %v3846, 0.7853982
        %vm3848 = vcmp.lt.s32.totalorder %v827, 0
        %v3849 = vand.u32 %v827, 2139095040
        %v3850 = vshrl.u32 %v3849, 23
        %v3851 = vsub.s32 %v3850, 127
        %v3852 = vand.u32 2147483647, %v827
        %v3853 = vand.u32 %v3852, 8388607
        %v3854 = vor.u32 %v3853, 8388608
        %v3855 = vsub.s32 0, %v3854
        %v3856 = vadd.s32 %v3851, 1
        %vm3857 = vcmp.gt.s32.totalorder %v3856, 0
        %v3858 = vsel %vm3857, %v3856, 0
        %v3859 = vshrl.u32 %v3858, 5
        %v3860 = vand.u32 %v3858, 31
        %v3861 = vsub.s32 32, %v3860
        %v3862 = vshrl.u32 683565275, %v3861
        %v3863 = vshll.u32 683565275, %v3860
        %v3864 = vshrl.u32 2475754826, %v3861
        %v3865 = vor.u32 %v3863, %v3864
        %v3866 = vshll.u32 2475754826, %v3860
        %v3867 = vshrl.u32 2131351028, %v3861
        %v3868 = vor.u32 %v3866, %v3867
        %v3869 = vshll.u32 2131351028, %v3860
        %v3870 = vshrl.u32 2102212464, %v3861
        %v3871 = vor.u32 %v3869, %v3870
        %v3872 = vshll.u32 2102212464, %v3860
        %v3873 = vshrl.u32 920167782, %v3861
        %v3874 = vor.u32 %v3872, %v3873
        %v3875 = vshll.u32 920167782, %v3860
        %v3876 = vshrl.u32 1326507024, %v3861
        %v3877 = vor.u32 %v3875, %v3876
        %vm3878 = vcmp.lt.s32.totalorder %v3859, 1
        %vm3879 = vcmp.lt.s32.totalorder %v3859, 2
        %vm3880 = vcmp.lt.s32.totalorder %v3859, 3
        %vm3881 = vcmp.lt.s32.totalorder %v3859, 4
        %v3882 = vsel %vm3878, %v3862, %v3865
        %v3883 = vsel %vm3881, %v3871, 2102212464
        %v3884 = vsel %vm3880, %v3868, %v3883
        %v3885 = vsel %vm3879, %v3882, %v3884
        %v3886 = vsel %vm3878, %v3865, %v3868
        %v3887 = vsel %vm3881, %v3874, 920167782
        %v3888 = vsel %vm3880, %v3871, %v3887
        %v3889 = vsel %vm3879, %v3886, %v3888
        %v3890 = vsel %vm3878, %v3868, %v3871
        %v3891 = vsel %vm3881, %v3877, 1326507024
        %v3892 = vsel %vm3880, %v3874, %v3891
        %v3893 = vsel %vm3879, %v3890, %v3892
        %v3894 = vshll.u32 %v3854, 8
        %v3895 = vmul.u32.u64.compose %v3894, %v3893
        %v3896 = vextract.low.u32 %v3895
        %v3897 = vextract.high.u32 %v3895
        %v3898 = vmul.u32.u64.compose %v3894, %v3889
        %v3899 = vextract.low.u32 %v3898
        %v3900 = vextract.high.u32 %v3898
        %v3901 = vmul.u32 %v3894, %v3885
        %v3902 = vadd.s32 %v3897, %v3899
        %vm3903 = vc.u32 %v3897, %v3899
        %v3904 = vadd.s32 %v3900, 1
        %v3905 = vsel %vm3903, %v3904, %v3900
        %v3906 = vadd.s32 %v3901, %v3905
        %v3907 = vadd.s32 %v3906, 536870912
        %v3908 = vshrl.u32 %v3907, 30
        %v3909 = vshll.u32 %v3908, 30
        %v3910 = vsub.s32 %v3906, %v3909
        %vm3911 = vcmp.lt.s32.totalorder %v3910, 0
        %v3912 = vsub.s32 0, %v3910
        %v3913 = vsel %vm3911, %v3912, %v3910
        %v3914 = vclz %v3913
        %v3915 = vsub.s32 %v3914, 2
        %vm3916 = vcmp.gt.s32.totalorder 0, %v3915
        %v3917 = vsel %vm3916, 0, %v3915
        %v3918 = vsub.s32 32, %v3917
        %v3919 = vshll.u32 %v3910, %v3917
        %v3920 = vshrl.u32 %v3902, %v3918
        %v3921 = vor.u32 %v3919, %v3920
        %v3922 = vsub.s32 4294967266, %v3917
        %v3923 = vadd.s32 %v3922, 127
        %v3924 = vshll.u32 %v3923, 23
        %v3925 = vor.u32 4788187, %v3924
        %v3926 = vand.u32 2147483647, %v3925
        %v3928 = vcvt.s32.f32 %v3921
        %v3929 = vmul.f32 %v3928, %v3926
        %v3930 = vxor.u32 %v3929, 2147483648
        %v3931 = vsel %vm3848, %v3930, %v3929
        %v3932 = vsub.s32 4, %v3908
        %v3933 = vsel %vm3848, %v3932, %v3908
        %v3934 = vsel %vm3847, %v827, %v3931
        %v3935 = vsel %vm3847, 0, %v3933
        %v3936 = vcosq.f32.pop %v3934
        %v3937 = vsinq.f32.pop %v3934
        %vm3938 = vweird.f32 %v827
        %v3939 = vadd.s32 %v3935, 3
        %v3940 = vand.u32 %v3939, 3
        %vm3941 = vcmp.lt.s32.totalorder %v3940, 2
        %vm3942 = vcmp.eq.s32.totalorder %v3940, 0
        %v3943 = vxor.u32 %v3937, 2147483648
        %v3944 = vsel %vm3942, %v3936, %v3943
        %vm3945 = vcmp.eq.s32.totalorder %v3940, 2
        %v3946 = vxor.u32 %v3936, 2147483648
        %v3947 = vsel %vm3945, %v3946, %v3937
        %v3948 = vsel %vm3941, %v3944, %v3947
        %v3949 = vsel %vm3938, nan, %v3948
        %v3950 = vand.u32 2147483647, %v828
        %vm3951 = vcmp.le.f32.partialorder %v3950, 0.7853982
        %vm3952 = vcmp.lt.s32.totalorder %v828, 0
        %v3953 = vand.u32 %v828, 2139095040
        %v3954 = vshrl.u32 %v3953, 23
        %v3955 = vsub.s32 %v3954, 127
        %v3956 = vand.u32 2147483647, %v828
        %v3957 = vand.u32 %v3956, 8388607
        %v3958 = vor.u32 %v3957, 8388608
        %v3959 = vsub.s32 0, %v3958
        %v3960 = vadd.s32 %v3955, 1
        %vm3961 = vcmp.gt.s32.totalorder %v3960, 0
        %v3962 = vsel %vm3961, %v3960, 0
        %v3963 = vshrl.u32 %v3962, 5
        %v3964 = vand.u32 %v3962, 31
        %v3965 = vsub.s32 32, %v3964
        %v3966 = vshrl.u32 683565275, %v3965
        %v3967 = vshll.u32 683565275, %v3964
        %v3968 = vshrl.u32 2475754826, %v3965
        %v3969 = vor.u32 %v3967, %v3968
        %v3970 = vshll.u32 2475754826, %v3964
        %v3971 = vshrl.u32 2131351028, %v3965
        %v3972 = vor.u32 %v3970, %v3971
        %v3973 = vshll.u32 2131351028, %v3964
        %v3974 = vshrl.u32 2102212464, %v3965
        %v3975 = vor.u32 %v3973, %v3974
        %v3976 = vshll.u32 2102212464, %v3964
        %v3977 = vshrl.u32 920167782, %v3965
        %v3978 = vor.u32 %v3976, %v3977
        %v3979 = vshll.u32 920167782, %v3964
        %v3980 = vshrl.u32 1326507024, %v3965
        %v3981 = vor.u32 %v3979, %v3980
        %vm3982 = vcmp.lt.s32.totalorder %v3963, 1
        %vm3983 = vcmp.lt.s32.totalorder %v3963, 2
        %vm3984 = vcmp.lt.s32.totalorder %v3963, 3
        %vm3985 = vcmp.lt.s32.totalorder %v3963, 4
        %v3986 = vsel %vm3982, %v3966, %v3969
        %v3987 = vsel %vm3985, %v3975, 2102212464
        %v3988 = vsel %vm3984, %v3972, %v3987
        %v3989 = vsel %vm3983, %v3986, %v3988
        %v3990 = vsel %vm3982, %v3969, %v3972
        %v3991 = vsel %vm3985, %v3978, 920167782
        %v3992 = vsel %vm3984, %v3975, %v3991
        %v3993 = vsel %vm3983, %v3990, %v3992
        %v3994 = vsel %vm3982, %v3972, %v3975
        %v3995 = vsel %vm3985, %v3981, 1326507024
        %v3996 = vsel %vm3984, %v3978, %v3995
        %v3997 = vsel %vm3983, %v3994, %v3996
        %v3998 = vshll.u32 %v3958, 8
        %v3999 = vmul.u32.u64.compose %v3998, %v3997
        %v4000 = vextract.low.u32 %v3999
        %v4001 = vextract.high.u32 %v3999
        %v4002 = vmul.u32.u64.compose %v3998, %v3993
        %v4003 = vextract.low.u32 %v4002
        %v4004 = vextract.high.u32 %v4002
        %v4005 = vmul.u32 %v3998, %v3989
        %v4006 = vadd.s32 %v4001, %v4003
        %vm4007 = vc.u32 %v4001, %v4003
        %v4008 = vadd.s32 %v4004, 1
        %v4009 = vsel %vm4007, %v4008, %v4004
        %v4010 = vadd.s32 %v4005, %v4009
        %v4011 = vadd.s32 %v4010, 536870912
        %v4012 = vshrl.u32 %v4011, 30
        %v4013 = vshll.u32 %v4012, 30
        %v4014 = vsub.s32 %v4010, %v4013
        %vm4015 = vcmp.lt.s32.totalorder %v4014, 0
        %v4016 = vsub.s32 0, %v4014
        %v4017 = vsel %vm4015, %v4016, %v4014
        %v4018 = vclz %v4017
        %v4019 = vsub.s32 %v4018, 2
        %vm4020 = vcmp.gt.s32.totalorder 0, %v4019
        %v4021 = vsel %vm4020, 0, %v4019
        %v4022 = vsub.s32 32, %v4021
        %v4023 = vshll.u32 %v4014, %v4021
        %v4024 = vshrl.u32 %v4006, %v4022
        %v4025 = vor.u32 %v4023, %v4024
        %v4026 = vsub.s32 4294967266, %v4021
        %v4027 = vadd.s32 %v4026, 127
        %v4028 = vshll.u32 %v4027, 23
        %v4029 = vor.u32 4788187, %v4028
        %v4030 = vand.u32 2147483647, %v4029
        %v4032 = vcvt.s32.f32 %v4025
        %v4033 = vmul.f32 %v4032, %v4030
        %v4034 = vxor.u32 %v4033, 2147483648
        %v4035 = vsel %vm3952, %v4034, %v4033
        %v4036 = vsub.s32 4, %v4012
        %v4037 = vsel %vm3952, %v4036, %v4012
        %v4038 = vsel %vm3951, %v828, %v4035
        %v4039 = vsel %vm3951, 0, %v4037
        %v4040 = vcosq.f32.pop %v4038
        %v4041 = vsinq.f32.pop %v4038
        %vm4042 = vweird.f32 %v828
        %v4043 = vadd.s32 %v4039, 3
        %v4044 = vand.u32 %v4043, 3
        %vm4045 = vcmp.lt.s32.totalorder %v4044, 2
        %vm4046 = vcmp.eq.s32.totalorder %v4044, 0
        %v4047 = vxor.u32 %v4041, 2147483648
        %v4048 = vsel %vm4046, %v4040, %v4047
        %vm4049 = vcmp.eq.s32.totalorder %v4044, 2
        %v4050 = vxor.u32 %v4040, 2147483648
        %v4051 = vsel %vm4049, %v4050, %v4041
        %v4052 = vsel %vm4045, %v4048, %v4051
        %v4053 = vsel %vm4042, nan, %v4052
        %v4054 = vand.u32 2147483647, %v829
        %vm4055 = vcmp.le.f32.partialorder %v4054, 0.7853982
        %vm4056 = vcmp.lt.s32.totalorder %v829, 0
        %v4057 = vand.u32 %v829, 2139095040
        %v4058 = vshrl.u32 %v4057, 23
        %v4059 = vsub.s32 %v4058, 127
        %v4060 = vand.u32 2147483647, %v829
        %v4061 = vand.u32 %v4060, 8388607
        %v4062 = vor.u32 %v4061, 8388608
        %v4063 = vsub.s32 0, %v4062
        %v4064 = vadd.s32 %v4059, 1
        %vm4065 = vcmp.gt.s32.totalorder %v4064, 0
        %v4066 = vsel %vm4065, %v4064, 0
        %v4067 = vshrl.u32 %v4066, 5
        %v4068 = vand.u32 %v4066, 31
        %v4069 = vsub.s32 32, %v4068
        %v4070 = vshrl.u32 683565275, %v4069
        %v4071 = vshll.u32 683565275, %v4068
        %v4072 = vshrl.u32 2475754826, %v4069
        %v4073 = vor.u32 %v4071, %v4072
        %v4074 = vshll.u32 2475754826, %v4068
        %v4075 = vshrl.u32 2131351028, %v4069
        %v4076 = vor.u32 %v4074, %v4075
        %v4077 = vshll.u32 2131351028, %v4068
        %v4078 = vshrl.u32 2102212464, %v4069
        %v4079 = vor.u32 %v4077, %v4078
        %v4080 = vshll.u32 2102212464, %v4068
        %v4081 = vshrl.u32 920167782, %v4069
        %v4082 = vor.u32 %v4080, %v4081
        %v4083 = vshll.u32 920167782, %v4068
        %v4084 = vshrl.u32 1326507024, %v4069
        %v4085 = vor.u32 %v4083, %v4084
        %vm4086 = vcmp.lt.s32.totalorder %v4067, 1
        %vm4087 = vcmp.lt.s32.totalorder %v4067, 2
        %vm4088 = vcmp.lt.s32.totalorder %v4067, 3
        %vm4089 = vcmp.lt.s32.totalorder %v4067, 4
        %v4090 = vsel %vm4086, %v4070, %v4073
        %v4091 = vsel %vm4089, %v4079, 2102212464
        %v4092 = vsel %vm4088, %v4076, %v4091
        %v4093 = vsel %vm4087, %v4090, %v4092
        %v4094 = vsel %vm4086, %v4073, %v4076
        %v4095 = vsel %vm4089, %v4082, 920167782
        %v4096 = vsel %vm4088, %v4079, %v4095
        %v4097 = vsel %vm4087, %v4094, %v4096
        %v4098 = vsel %vm4086, %v4076, %v4079
        %v4099 = vsel %vm4089, %v4085, 1326507024
        %v4100 = vsel %vm4088, %v4082, %v4099
        %v4101 = vsel %vm4087, %v4098, %v4100
        %v4102 = vshll.u32 %v4062, 8
        %v4103 = vmul.u32.u64.compose %v4102, %v4101
        %v4104 = vextract.low.u32 %v4103
        %v4105 = vextract.high.u32 %v4103
        %v4106 = vmul.u32.u64.compose %v4102, %v4097
        %v4107 = vextract.low.u32 %v4106
        %v4108 = vextract.high.u32 %v4106
        %v4109 = vmul.u32 %v4102, %v4093
        %v4110 = vadd.s32 %v4105, %v4107
        %vm4111 = vc.u32 %v4105, %v4107
        %v4112 = vadd.s32 %v4108, 1
        %v4113 = vsel %vm4111, %v4112, %v4108
        %v4114 = vadd.s32 %v4109, %v4113
        %v4115 = vadd.s32 %v4114, 536870912
        %v4116 = vshrl.u32 %v4115, 30
        %v4117 = vshll.u32 %v4116, 30
        %v4118 = vsub.s32 %v4114, %v4117
        %vm4119 = vcmp.lt.s32.totalorder %v4118, 0
        %v4120 = vsub.s32 0, %v4118
        %v4121 = vsel %vm4119, %v4120, %v4118
        %v4122 = vclz %v4121
        %v4123 = vsub.s32 %v4122, 2
        %vm4124 = vcmp.gt.s32.totalorder 0, %v4123
        %v4125 = vsel %vm4124, 0, %v4123
        %v4126 = vsub.s32 32, %v4125
        %v4127 = vshll.u32 %v4118, %v4125
        %v4128 = vshrl.u32 %v4110, %v4126
        %v4129 = vor.u32 %v4127, %v4128
        %v4130 = vsub.s32 4294967266, %v4125
        %v4131 = vadd.s32 %v4130, 127
        %v4132 = vshll.u32 %v4131, 23
        %v4133 = vor.u32 4788187, %v4132
        %v4134 = vand.u32 2147483647, %v4133
        %v4136 = vcvt.s32.f32 %v4129
        %v4137 = vmul.f32 %v4136, %v4134
        %v4138 = vxor.u32 %v4137, 2147483648
        %v4139 = vsel %vm4056, %v4138, %v4137
        %v4140 = vsub.s32 4, %v4116
        %v4141 = vsel %vm4056, %v4140, %v4116
        %v4142 = vsel %vm4055, %v829, %v4139
        %v4143 = vsel %vm4055, 0, %v4141
        %v4144 = vcosq.f32.pop %v4142
        %v4145 = vsinq.f32.pop %v4142
        %vm4146 = vweird.f32 %v829
        %v4147 = vadd.s32 %v4143, 3
        %v4148 = vand.u32 %v4147, 3
        %vm4149 = vcmp.lt.s32.totalorder %v4148, 2
        %vm4150 = vcmp.eq.s32.totalorder %v4148, 0
        %v4151 = vxor.u32 %v4145, 2147483648
        %v4152 = vsel %vm4150, %v4144, %v4151
        %vm4153 = vcmp.eq.s32.totalorder %v4148, 2
        %v4154 = vxor.u32 %v4144, 2147483648
        %v4155 = vsel %vm4153, %v4154, %v4145
        %v4156 = vsel %vm4149, %v4152, %v4155
        %v4157 = vsel %vm4146, nan, %v4156
        %4158 = vst [vmem:[%s164] sm:$0xff] %v933
        %4159 = vst [vmem:[%s164 + $0x8] sm:$0xff] %v1037
        %4160 = vst [vmem:[%s164 + $0x10] sm:$0xff] %v1141
        %4161 = vst [vmem:[%s164 + $0x18] sm:$0xff] %v1245
        %4162 = vst [vmem:[%s164 + $0x20] sm:$0xff] %v1349
        %4163 = vst [vmem:[%s164 + $0x28] sm:$0xff] %v1453
        %4164 = vst [vmem:[%s164 + $0x30] sm:$0xff] %v1557
        %4165 = vst [vmem:[%s164 + $0x38] sm:$0xff] %v1661
        %4166 = vst [vmem:[%s164 + $0x40] sm:$0xff] %v1765
        %4167 = vst [vmem:[%s164 + $0x48] sm:$0xff] %v1869
        %4168 = vst [vmem:[%s164 + $0x50] sm:$0xff] %v1973
        %4169 = vst [vmem:[%s164 + $0x58] sm:$0xff] %v2077
        %4170 = vst [vmem:[%s164 + $0x60] sm:$0xff] %v2181
        %4171 = vst [vmem:[%s164 + $0x68] sm:$0xff] %v2285
        %4172 = vst [vmem:[%s164 + $0x70] sm:$0xff] %v2389
        %4173 = vst [vmem:[%s164 + $0x78] sm:$0xff] %v2493
        %4174 = vst [vmem:[%s164 + $0x80] sm:$0xff] %v2597
        %4175 = vst [vmem:[%s164 + $0x88] sm:$0xff] %v2701
        %4176 = vst [vmem:[%s164 + $0x90] sm:$0xff] %v2805
        %4177 = vst [vmem:[%s164 + $0x98] sm:$0xff] %v2909
        %4178 = vst [vmem:[%s164 + $0xa0] sm:$0xff] %v3013
        %4179 = vst [vmem:[%s164 + $0xa8] sm:$0xff] %v3117
        %4180 = vst [vmem:[%s164 + $0xb0] sm:$0xff] %v3221
        %4181 = vst [vmem:[%s164 + $0xb8] sm:$0xff] %v3325
        %4182 = vst [vmem:[%s164 + $0xc0] sm:$0xff] %v3429
        %4183 = vst [vmem:[%s164 + $0xc8] sm:$0xff] %v3533
        %4184 = vst [vmem:[%s164 + $0xd0] sm:$0xff] %v3637
        %4185 = vst [vmem:[%s164 + $0xd8] sm:$0xff] %v3741
        %4186 = vst [vmem:[%s164 + $0xe0] sm:$0xff] %v3845
        %4187 = vst [vmem:[%s164 + $0xe8] sm:$0xff] %v3949
        %4188 = vst [vmem:[%s164 + $0xf0] sm:$0xff] %v4053
        %4189 = vst [vmem:[%s164 + $0xf8] sm:$0xff] %v4157
        %s4190 = sand.u32 %s93, 1
        %s4191 = scalar_lea.sflag [#allocation3], %s4190
        %s4192 = sand.u32 %s93, 1
        %s4193 = smul.addr %s4192, 256
        %s4194 = scalar_lea.vmem [#allocation2], %s4193
        // Predicated region
        $region33: #{tpu_custom_call.1} parent=31 // pred_check
          %p4195 = pneg %p103
        $region34: #{tpu_custom_call.1} parent=31 // pred_check_branch
          %4197 = sbr.rel (%p4195) target = $region36
        $region35: #{tpu_custom_call.1} parent=31 // pred_region
          %s4198 = smul.u32 32, %s17
          %s4200 = ssub.s32 4096, 4096
          %4201 = vsyncadd %s4191, %s4200
          %s4202 = smul.addr %s4198, 128
          %s4203 = scalar_lea.hbm %s3, %s4202
          %s4204 = sshll.u32 %s4194, 4
          %s4205 = int_to_ptr.vmem [resolvable:$true] %s4204
          %4210 = dma.vmem_to_hbm [thread:$0]  %s4205, 4096, %s4203, %s4191, 128, 128, 8
        $region36: #{tpu_custom_call.1} parent=31 // pred_fallthru
          _
      $region32: #{tpu_custom_call.1} parent=5 // pred_fallthru
        _
      %p4211 = scmp.le.s32.totalorder 2, %s12
      // Predicated region
      $region37: #{tpu_custom_call.1} parent=5 // pred_check
        %p4212 = pneg %p4211
      $region38: #{tpu_custom_call.1} parent=5 // pred_check_branch
        %4214 = sbr.rel (%p4212) target = $region40
      $region39: #{tpu_custom_call.1} parent=5 // pred_region
        %s4215 = ssub.s32 %s12, 2
        // Predicated region
        $region41: #{tpu_custom_call.1} parent=39 // pred_check
          %p4216 = pneg %p109
        $region42: #{tpu_custom_call.1} parent=39 // pred_check_branch
          %4218 = sbr.rel (%p4216) target = $region44
        $region43: #{tpu_custom_call.1} parent=39 // pred_region
          %s4219 = sand.u32 %s94, 1
          %s4220 = scalar_lea.sflag [#allocation3], %s4219
          %s4221 = sand.u32 %s94, 1
          %s4222 = smul.addr %s4221, 256
          %s4223 = scalar_lea.vmem [#allocation2], %s4222
          %4224 = dma.done %s4220, 4096
        $region44: #{tpu_custom_call.1} parent=39 // pred_fallthru
          _
      $region40: #{tpu_custom_call.1} parent=5 // pred_fallthru
        _
    $region6: #{tpu_custom_call.1} parent=1 // loop_footer
      %s16 = sadd.s32 1, %s12
    $region7: #{tpu_custom_call.1} parent=1 // loop_footer_branch
      %11 = sbr.rel target = $region3
    $region8: #{tpu_custom_call.1} parent=1 // loop_exit
      _
    %4225 = vsyncpa [#allocation3], 1
    %s4226 = scalar_lea.sflag [#allocation3], 1
    %4227 = vsyncpa %s4226, 1

</llo_original>
